<compile_context>
chip_gen: v6e
topology: v6e:2x2x1
jax: 0.10.0
libtpu: 0.0.40
codegen_flags: <defaults>
</compile_context>

<pallas_src>
import jax
import jax.numpy as jnp
from jax.experimental import pallas as pl
from jax.experimental.pallas import tpu as pltpu


# --------------------------------------------------------------------------- #
# helpers                                                                      #
# --------------------------------------------------------------------------- #

def _round_up(x, m):
    return (x + m - 1) // m * m


def _vmem_limit_bytes():
    """Per-generation scoped-VMEM limit: ~half of physical VMEM.

    v5e/v6e (128 MiB physical) -> 64 MiB, v7x (64 MiB) -> 32 MiB.  The kernel
    needs < 8 MiB, but lifting v5e's 16 MiB scoped default is free headroom.
    """
    try:
        cap = int(getattr(pltpu.get_tpu_info(), "vmem_capacity_bytes", 0))
    except Exception:                      # query unavailable on some runtimes
        cap = 0
    if cap <= 0:
        cap = 64 * 1024 * 1024
    return max(32 * 1024 * 1024, min(cap // 2, 96 * 1024 * 1024))


# --------------------------------------------------------------------------- #
# the fused kernel                                                             #
# --------------------------------------------------------------------------- #

def _ws_fused_kernel(p_ref, w1_ref, b1_ref, w2_ref, b2_ref,
                     fw1_ref, fb1_ref, fw2_ref, fb2_ref, fw3_ref, fb3_ref,
                     o_ref):
    """Whole WSModel forward for one batch tile; only p_ref / o_ref touch HBM.

    p_ref : [288*tb, 9]  conv1 im2col patches, row = (w, pos, branch, n) with
            w   = conv1 2x2-pool window element (wi*2+wj),
            pos = pooled conv1 position (i1*6+j1),
            col k = di*3+dj (3x3 tap).
    o_ref : [tb, 2]      logits for the tile's tb images.
    """
    tb = o_ref.shape[0]          # images per tile (multiple of 8)
    R = 2 * tb                   # rows per spatial position (branch-major batch)
    M1 = 36 * R                  # rows per pool-window element after conv1

    def mxu(a, b):               # f32 accumulation on every generation
        return jnp.dot(a, b, preferred_element_type=jnp.float32)

    # ---- conv1: ONE merged GEMM over all 4 pool-window elems x 36 positions --
    c1 = mxu(p_ref[...], w1_ref[...])                       # [4*M1, 64]
    h1 = jnp.maximum(jnp.maximum(c1[0:M1], c1[M1:2 * M1]),
                     jnp.maximum(c1[2 * M1:3 * M1], c1[3 * M1:4 * M1]))
    h1 = jnp.maximum(h1 + b1_ref[...], 0.0)                 # [36*R, 64]
    h1 = h1.astype(w2_ref.dtype)                            # rows (i*6+j, br, n)

    # ---- conv2 (3x3, 64->128): 9-tap accumulation over shifted h1 slices -----
    # im2col taps come straight from VMEM-resident h1 -> the 9x-duplicated
    # patch tensor of the previous version never exists in HBM.
    acc2 = None
    for di in range(3):
        for dj in range(3):
            tap = jnp.concatenate(
                [h1[((oi + di) * 6 + dj) * R:((oi + di) * 6 + dj + 4) * R, :]
                 for oi in range(4)], axis=0)               # [16*R, 64]
            part = mxu(tap, w2_ref[di * 3 + dj])            # [16*R, 128]
            acc2 = part if acc2 is None else acc2 + part    # rows (oi, oj, br, n)

    # ---- 2x2 max-pool + bias + relu on the conv2 output ----------------------
    slabs = []                                              # index ip*2+jp -> [R,128]
    for ip in range(2):
        for jp in range(2):
            m = None
            for wi in range(2):
                for wj in range(2):
                    off = ((2 * ip + wi) * 4 + (2 * jp + wj)) * R
                    piece = acc2[off:off + R, :]
                    m = piece if m is None else jnp.maximum(m, piece)
            slabs.append(jnp.maximum(m + b2_ref[...], 0.0))

    # ---- flatten + two-branch concat (torch column order folded into fw1) ----
    feat = jnp.concatenate(
        [slabs[p][br * tb:(br + 1) * tb, :] for br in range(2) for p in range(4)],
        axis=-1)                                            # [tb, 1024]
    feat = feat.astype(fw1_ref.dtype)

    # ---- fc head: full1 -> relu -> full2 -> relu -> full3 --------------------
    h = jnp.maximum(mxu(feat, fw1_ref[...]) + fb1_ref[...], 0.0)   # [tb, HP]
    h = jnp.maximum(mxu(h, fw2_ref[...]) + fb2_ref[...], 0.0)      # [tb, 10]
    out = mxu(h, fw3_ref[...]) + fb3_ref[...]                      # [tb, 2]
    o_ref[...] = out.astype(o_ref.dtype)


# --------------------------------------------------------------------------- #
# JAX glue: conv1 im2col (tiny) + the single pallas_call                       #
# --------------------------------------------------------------------------- #

def _conv1_patches(x, bp, tb, dtype):
    """x [B,2,14,14] -> [bp//tb, 288*tb, 9] pool-window-major conv1 patches.

    Row (within a tile) = ((wi*2+wj)*36 + i1*6+j1)*2*tb + br*tb + n, column
    k = di*3+dj holds x[n, br, 2*i1+wi+di, 2*j1+wj+dj].  Only ~10 KB/image.
    """
    B = x.shape[0]
    taps = [x[:, :, di:di + 12, dj:dj + 12] for di in range(3) for dj in range(3)]
    p = jnp.stack(taps, axis=-1)                      # [B,2,12,12,9]
    p = p.reshape(B, 2, 6, 2, 6, 2, 9)                # (n, br, i1, wi, j1, wj, k)
    p = p.transpose(3, 5, 2, 4, 1, 0, 6)              # (wi, wj, i1, j1, br, n, k)
    p = p.reshape(288, B, 9)
    if bp != B:
        p = jnp.pad(p, ((0, 0), (0, bp - B), (0, 0)))
    p = p.reshape(288, bp // tb, tb, 9).transpose(1, 0, 2, 3)
    return p.reshape(bp // tb, 288 * tb, 9).astype(dtype)


def ws_model_forward(x, prep, *, batch_tile=32):
    """x: [B, 2, 14, 14] (NCHW, like the torch module) -> logits [B, 2]."""
    B = x.shape[0]
    assert x.shape[1:] == (2, 14, 14)
    tb = min(batch_tile, _round_up(B, 8))             # images per grid step
    assert tb % 8 == 0                                 # aligned sublane slices
    bp = _round_up(B, tb)
    assert bp % tb == 0                                # grid exactly covers batch
    n_tiles = bp // tb
    hp = prep["fw1"].shape[1]

    p1 = _conv1_patches(x, bp, tb, prep["w1"].dtype)

    out = pl.pallas_call(
        _ws_fused_kernel,
        out_shape=jax.ShapeDtypeStruct((bp, 2), jnp.float32),
        grid=(n_tiles,),
        in_specs=[
            # conv1 patches: one batch tile per grid step (leading dim squeezed)
            pl.BlockSpec((None, 288 * tb, 9), lambda i: (i, 0, 0)),
            # weights / biases: grid-invariant, VMEM-resident for the whole call
            pl.BlockSpec((9, 64), lambda i: (0, 0)),           # w1
            pl.BlockSpec((1, 64), lambda i: (0, 0)),           # b1
            pl.BlockSpec((9, 64, 128), lambda i: (0, 0, 0)),   # w2 (per 3x3 tap)
            pl.BlockSpec((1, 128), lambda i: (0, 0)),          # b2
            pl.BlockSpec((1024, hp), lambda i: (0, 0)),        # fw1 (perm folded)
            pl.BlockSpec((1, hp), lambda i: (0, 0)),           # fb1
            pl.BlockSpec((hp, 10), lambda i: (0, 0)),          # fw2
            pl.BlockSpec((1, 10), lambda i: (0, 0)),           # fb2
            pl.BlockSpec((10, 2), lambda i: (0, 0)),           # fw3
            pl.BlockSpec((1, 2), lambda i: (0, 0)),            # fb3
        ],
        out_specs=pl.BlockSpec((tb, 2), lambda i: (i, 0)),
        compiler_params=pltpu.CompilerParams(
            dimension_semantics=("parallel",),   # shard batch over v7x's 2 TCs
            vmem_limit_bytes=_vmem_limit_bytes(),
        ),
    )(p1, prep["w1"], prep["b1"], prep["w2"], prep["b2"],
      prep["fw1"], prep["fb1"], prep["fw2"], prep["fb2"],
      prep["fw3"], prep["fb3"])
    return out[:B]


# --------------------------------------------------------------------------- #
# one-time parameter preparation                                               #
# --------------------------------------------------------------------------- #

def prepare_params(params, *, use_bf16_mxu=False):
    """Hoist every weight transpose/reshape/pad/permutation out of the forward.

    When use_bf16_mxu=True the MXU operands of the deep GEMMs (conv1 / conv2
    taps / fc1) are pre-cast to bf16 once (accumulation stays f32): ~2-4x MXU
    throughput on v5e/v6e/v7x, none of which has a native f32 MXU path.
    """
    nb_hidden = params["full1_w"].shape[0]
    hp = _round_up(max(nb_hidden, 128), 128)            # lane-pad hidden 100->128
    mxu_dtype = jnp.bfloat16 if use_bf16_mxu else jnp.float32

    # conv weights [out, in, kh, kw] -> GEMM layouts
    w1 = params["cl1_w"].transpose(2, 3, 1, 0).reshape(9, 64)        # [tap, 64]
    w2 = params["cl2_w"].transpose(2, 3, 1, 0).reshape(9, 64, 128)   # [tap, 64, 128]

    # Fold torch's NCHW .view(-1, 512) flatten order (branch, c, i, j) into
    # full1's rows; the kernel's feature column order is (branch, p=i*2+j, c).
    perm = []
    for br in range(2):
        for p_ in range(4):
            for c in range(128):
                perm.append(br * 512 + c * 4 + p_)
    perm = jnp.asarray(perm, jnp.int32)

    fw1 = params["full1_w"].T[perm, :]                               # [1024, H]
    fw1 = jnp.pad(fw1, ((0, 0), (0, hp - nb_hidden)))                # [1024, HP]
    fb1 = jnp.pad(params["full1_b"], (0, hp - nb_hidden)).reshape(1, hp)
    fw2 = jnp.pad(params["full2_w"].T, ((0, hp - nb_hidden), (0, 0)))  # [HP, 10]

    return {
        "w1": w1.astype(mxu_dtype), "b1": params["cl1_b"].reshape(1, 64),
        "w2": w2.astype(mxu_dtype), "b2": params["cl2_b"].reshape(1, 128),
        "fw1": fw1.astype(mxu_dtype), "fb1": fb1,
        "fw2": fw2, "fb2": params["full2_b"].reshape(1, 10),
        "fw3": params["full3_w"].T, "fb3": params["full3_b"].reshape(1, 2),
    }


# --------------------------------------------------------------------------- #
# parameters (torch-default uniform init)                                      #
# --------------------------------------------------------------------------- #

def init_params(key, nb_hidden=100):
    def uni(k, shape, fan_in):
        bound = 1.0 / (fan_in ** 0.5)
        return jax.random.uniform(k, shape, jnp.float32, -bound, bound)

    ks = jax.random.split(key, 10)
    return {
        "cl1_w": uni(ks[0], (64, 1, 3, 3), 1 * 9),
        "cl1_b": uni(ks[1], (64,), 1 * 9),
        "cl2_w": uni(ks[2], (128, 64, 3, 3), 64 * 9),
        "cl2_b": uni(ks[3], (128,), 64 * 9),
        "full1_w": uni(ks[4], (nb_hidden, 1024), 1024),
        "full1_b": uni(ks[5], (nb_hidden,), 1024),
        "full2_w": uni(ks[6], (10, nb_hidden), nb_hidden),
        "full2_b": uni(ks[7], (10,), nb_hidden),
        "full3_w": uni(ks[8], (2, 10), 10),
        "full3_b": uni(ks[9], (2,), 10),
    }


# --------------------------------------------------------------------------- #
# pure-XLA full-precision reference (for the self-test)                        #
# --------------------------------------------------------------------------- #

def _reference_forward(x, params):
    hi = jax.lax.Precision.HIGHEST

    def conv(z, w, b):
        out = jax.lax.conv_general_dilated(
            z, w, window_strides=(1, 1), padding="VALID",
            dimension_numbers=("NCHW", "OIHW", "NCHW"), precision=hi)
        return out + b[None, :, None, None]

    def pool_relu(z):
        z = jax.lax.reduce_window(z, -jnp.inf, jax.lax.max,
                                  (1, 1, 2, 2), (1, 1, 2, 2), "VALID")
        return jnp.maximum(z, 0.0)

    def branch(img):
        z = pool_relu(conv(img, params["cl1_w"], params["cl1_b"]))
        z = pool_relu(conv(z, params["cl2_w"], params["cl2_b"]))
        return z.reshape(z.shape[0], -1)                    # [B, 512] (c, i, j)

    a = branch(x[:, 0:1])
    b = branch(x[:, 1:2])
    o = jnp.concatenate([a, b], axis=1)
    o = jnp.maximum(jnp.dot(o, params["full1_w"].T, precision=hi)
                    + params["full1_b"], 0.0)
    o = jnp.maximum(jnp.dot(o, params["full2_w"].T, precision=hi)
                    + params["full2_b"], 0.0)
    return jnp.dot(o, params["full3_w"].T, precision=hi) + params["full3_b"]


if __name__ == "__main__":
    key = jax.random.PRNGKey(0)
    k_x, k_p = jax.random.split(key)

    B = 2
    x = jax.random.normal(k_x, (B, 2, 14, 14), jnp.float32)
    params = init_params(k_p, nb_hidden=100)
    ref = _reference_forward(x, params)          # full-precision XLA reference

    fwd = jax.jit(ws_model_forward)

    # exact-parity path: every MXU operand stays f32.
    prep32 = prepare_params(params, use_bf16_mxu=False)
    out32 = jax.block_until_ready(fwd(x, prep32))
    assert out32.shape == (B, 2) and out32.dtype == jnp.float32
    err32 = float(jnp.max(jnp.abs(out32 - ref)))
    # Typically ~1e-5; 5e-3 bounds the loosest MXU f32-emulation mode while
    # staying ~2 orders of magnitude below any flatten/pool wiring bug.
    assert err32 < 5e-3, f"f32 path mismatch vs reference: max abs err = {err32}"

    # fast path: bf16 MXU operands for conv1 / conv2 / fc1 (f32 accumulation).
    prep16 = prepare_params(params, use_bf16_mxu=True)
    out16 = jax.block_until_ready(fwd(x, prep16))
    assert out16.shape == (B, 2)
    err16 = float(jnp.max(jnp.abs(out16 - ref)))
    assert err16 < 2.5e-1, f"bf16 path mismatch vs reference: max abs err = {err16}"

    print("KERNEL_OK")
</pallas_src>

<mosaic_0001>
module attributes {stable_mosaic.version = 11 : i64} {
  func.func @_ws_fused_kernel(%arg0: i32, %arg1: memref<1x2304x9xf32, #tpu.memory_space<vmem>>, %arg2: memref<9x64xf32, #tpu.memory_space<vmem>>, %arg3: memref<1x64xf32, #tpu.memory_space<vmem>>, %arg4: memref<9x64x128xf32, #tpu.memory_space<vmem>>, %arg5: memref<1x128xf32, #tpu.memory_space<vmem>>, %arg6: memref<1024x128xf32, #tpu.memory_space<vmem>>, %arg7: memref<1x128xf32, #tpu.memory_space<vmem>>, %arg8: memref<128x10xf32, #tpu.memory_space<vmem>>, %arg9: memref<1x10xf32, #tpu.memory_space<vmem>>, %arg10: memref<10x2xf32, #tpu.memory_space<vmem>>, %arg11: memref<1x2xf32, #tpu.memory_space<vmem>>, %arg12: memref<8x2xf32, #tpu.memory_space<vmem>>) attributes {dimension_semantics = [#tpu.dimension_semantics<parallel>], iteration_bounds = array<i64: 1>, scalar_prefetch = 0 : i64, scratch_operands = 0 : i64, tpu.core_type = #tpu.core_type<tc>, window_params = [{transform_indices = @transform_0, window_bounds = array<i64: 1, 2304, 9>}, {pipeline_mode = #tpu.pipeline_mode<synchronous>, transform_indices = @transform_1, window_bounds = array<i64: 9, 64>}, {pipeline_mode = #tpu.pipeline_mode<synchronous>, transform_indices = @transform_2, window_bounds = array<i64: 1, 64>}, {pipeline_mode = #tpu.pipeline_mode<synchronous>, transform_indices = @transform_3, window_bounds = array<i64: 9, 64, 128>}, {pipeline_mode = #tpu.pipeline_mode<synchronous>, transform_indices = @transform_4, window_bounds = array<i64: 1, 128>}, {pipeline_mode = #tpu.pipeline_mode<synchronous>, transform_indices = @transform_5, window_bounds = array<i64: 1024, 128>}, {pipeline_mode = #tpu.pipeline_mode<synchronous>, transform_indices = @transform_6, window_bounds = array<i64: 1, 128>}, {pipeline_mode = #tpu.pipeline_mode<synchronous>, transform_indices = @transform_7, window_bounds = array<i64: 128, 10>}, {pipeline_mode = #tpu.pipeline_mode<synchronous>, transform_indices = @transform_8, window_bounds = array<i64: 1, 10>}, {pipeline_mode = #tpu.pipeline_mode<synchronous>, transform_indices = @transform_9, window_bounds = array<i64: 10, 2>}, {pipeline_mode = #tpu.pipeline_mode<synchronous>, transform_indices = @transform_10, window_bounds = array<i64: 1, 2>}, {transform_indices = @transform_11, window_bounds = array<i64: 8, 2>}]} {
    %c0 = arith.constant 0 : index
    %c0_0 = arith.constant 0 : index
    %c0_1 = arith.constant 0 : index
    %0 = vector.load %arg1[%c0, %c0_0, %c0_1] : memref<1x2304x9xf32, #tpu.memory_space<vmem>>, vector<1x2304x9xf32>
    %1 = vector.shape_cast %0 : vector<1x2304x9xf32> to vector<2304x9xf32>
    %c0_2 = arith.constant 0 : index
    %c0_3 = arith.constant 0 : index
    %2 = vector.load %arg2[%c0_2, %c0_3] : memref<9x64xf32, #tpu.memory_space<vmem>>, vector<9x64xf32>
    %cst = arith.constant dense<0.000000e+00> : vector<2304x64xf32>
    %3 = tpu.matmul %1, %2, %cst {dimension_numbers = #tpu.dot_dimension_numbers<[1], [0], [0], [1], [0, 0, 1, 1], [], []>} : vector<2304x9xf32>, vector<9x64xf32>, vector<2304x64xf32> -> vector<2304x64xf32>
    %4 = vector.extract_strided_slice %3 {offsets = [0, 0], sizes = [576, 64], strides = [1, 1]} : vector<2304x64xf32> to vector<576x64xf32>
    %5 = vector.extract_strided_slice %3 {offsets = [576, 0], sizes = [576, 64], strides = [1, 1]} : vector<2304x64xf32> to vector<576x64xf32>
    %6 = arith.maximumf %4, %5 : vector<576x64xf32>
    %7 = vector.extract_strided_slice %3 {offsets = [1152, 0], sizes = [576, 64], strides = [1, 1]} : vector<2304x64xf32> to vector<576x64xf32>
    %8 = vector.extract_strided_slice %3 {offsets = [1728, 0], sizes = [576, 64], strides = [1, 1]} : vector<2304x64xf32> to vector<576x64xf32>
    %9 = arith.maximumf %7, %8 : vector<576x64xf32>
    %10 = arith.maximumf %6, %9 : vector<576x64xf32>
    %c0_4 = arith.constant 0 : index
    %c0_5 = arith.constant 0 : index
    %11 = vector.load %arg3[%c0_4, %c0_5] : memref<1x64xf32, #tpu.memory_space<vmem>>, vector<1x64xf32>
    %12 = vector.broadcast %11 : vector<1x64xf32> to vector<576x64xf32>
    %13 = arith.addf %10, %12 : vector<576x64xf32>
    %cst_6 = arith.constant 0.000000e+00 : f32
    %14 = vector.broadcast %cst_6 : f32 to vector<576x64xf32>
    %15 = arith.maximumf %13, %14 : vector<576x64xf32>
    %16 = vector.extract_strided_slice %15 {offsets = [0, 0], sizes = [64, 64], strides = [1, 1]} : vector<576x64xf32> to vector<64x64xf32>
    %17 = vector.extract_strided_slice %15 {offsets = [96, 0], sizes = [64, 64], strides = [1, 1]} : vector<576x64xf32> to vector<64x64xf32>
    %18 = vector.extract_strided_slice %15 {offsets = [192, 0], sizes = [64, 64], strides = [1, 1]} : vector<576x64xf32> to vector<64x64xf32>
    %19 = vector.extract_strided_slice %15 {offsets = [288, 0], sizes = [64, 64], strides = [1, 1]} : vector<576x64xf32> to vector<64x64xf32>
    %20 = tpu.concatenate %16, %17, %18, %19 in 0 : vector<64x64xf32>, vector<64x64xf32>, vector<64x64xf32>, vector<64x64xf32> -> vector<256x64xf32>
    %c0_7 = arith.constant 0 : index
    %c0_8 = arith.constant 0 : index
    %c0_9 = arith.constant 0 : index
    %21 = vector.load %arg4[%c0_7, %c0_8, %c0_9] : memref<9x64x128xf32, #tpu.memory_space<vmem>>, vector<1x64x128xf32>
    %22 = vector.shape_cast %21 : vector<1x64x128xf32> to vector<64x128xf32>
    %cst_10 = arith.constant dense<0.000000e+00> : vector<256x128xf32>
    %23 = tpu.matmul %20, %22, %cst_10 {dimension_numbers = #tpu.dot_dimension_numbers<[1], [0], [0], [1], [0, 0, 1, 1], [], []>} : vector<256x64xf32>, vector<64x128xf32>, vector<256x128xf32> -> vector<256x128xf32>
    %24 = vector.extract_strided_slice %15 {offsets = [16, 0], sizes = [64, 64], strides = [1, 1]} : vector<576x64xf32> to vector<64x64xf32>
    %25 = vector.extract_strided_slice %15 {offsets = [112, 0], sizes = [64, 64], strides = [1, 1]} : vector<576x64xf32> to vector<64x64xf32>
    %26 = vector.extract_strided_slice %15 {offsets = [208, 0], sizes = [64, 64], strides = [1, 1]} : vector<576x64xf32> to vector<64x64xf32>
    %27 = vector.extract_strided_slice %15 {offsets = [304, 0], sizes = [64, 64], strides = [1, 1]} : vector<576x64xf32> to vector<64x64xf32>
    %28 = tpu.concatenate %24, %25, %26, %27 in 0 : vector<64x64xf32>, vector<64x64xf32>, vector<64x64xf32>, vector<64x64xf32> -> vector<256x64xf32>
    %c1 = arith.constant 1 : index
    %c0_11 = arith.constant 0 : index
    %c0_12 = arith.constant 0 : index
    %29 = vector.load %arg4[%c1, %c0_11, %c0_12] : memref<9x64x128xf32, #tpu.memory_space<vmem>>, vector<1x64x128xf32>
    %30 = vector.shape_cast %29 : vector<1x64x128xf32> to vector<64x128xf32>
    %cst_13 = arith.constant dense<0.000000e+00> : vector<256x128xf32>
    %31 = tpu.matmul %28, %30, %cst_13 {dimension_numbers = #tpu.dot_dimension_numbers<[1], [0], [0], [1], [0, 0, 1, 1], [], []>} : vector<256x64xf32>, vector<64x128xf32>, vector<256x128xf32> -> vector<256x128xf32>
    %32 = arith.addf %23, %31 : vector<256x128xf32>
    %33 = vector.extract_strided_slice %15 {offsets = [32, 0], sizes = [64, 64], strides = [1, 1]} : vector<576x64xf32> to vector<64x64xf32>
    %34 = vector.extract_strided_slice %15 {offsets = [128, 0], sizes = [64, 64], strides = [1, 1]} : vector<576x64xf32> to vector<64x64xf32>
    %35 = vector.extract_strided_slice %15 {offsets = [224, 0], sizes = [64, 64], strides = [1, 1]} : vector<576x64xf32> to vector<64x64xf32>
    %36 = vector.extract_strided_slice %15 {offsets = [320, 0], sizes = [64, 64], strides = [1, 1]} : vector<576x64xf32> to vector<64x64xf32>
    %37 = tpu.concatenate %33, %34, %35, %36 in 0 : vector<64x64xf32>, vector<64x64xf32>, vector<64x64xf32>, vector<64x64xf32> -> vector<256x64xf32>
    %c2 = arith.constant 2 : index
    %c0_14 = arith.constant 0 : index
    %c0_15 = arith.constant 0 : index
    %38 = vector.load %arg4[%c2, %c0_14, %c0_15] : memref<9x64x128xf32, #tpu.memory_space<vmem>>, vector<1x64x128xf32>
    %39 = vector.shape_cast %38 : vector<1x64x128xf32> to vector<64x128xf32>
    %cst_16 = arith.constant dense<0.000000e+00> : vector<256x128xf32>
    %40 = tpu.matmul %37, %39, %cst_16 {dimension_numbers = #tpu.dot_dimension_numbers<[1], [0], [0], [1], [0, 0, 1, 1], [], []>} : vector<256x64xf32>, vector<64x128xf32>, vector<256x128xf32> -> vector<256x128xf32>
    %41 = arith.addf %32, %40 : vector<256x128xf32>
    %42 = vector.extract_strided_slice %15 {offsets = [96, 0], sizes = [64, 64], strides = [1, 1]} : vector<576x64xf32> to vector<64x64xf32>
    %43 = vector.extract_strided_slice %15 {offsets = [192, 0], sizes = [64, 64], strides = [1, 1]} : vector<576x64xf32> to vector<64x64xf32>
    %44 = vector.extract_strided_slice %15 {offsets = [288, 0], sizes = [64, 64], strides = [1, 1]} : vector<576x64xf32> to vector<64x64xf32>
    %45 = vector.extract_strided_slice %15 {offsets = [384, 0], sizes = [64, 64], strides = [1, 1]} : vector<576x64xf32> to vector<64x64xf32>
    %46 = tpu.concatenate %42, %43, %44, %45 in 0 : vector<64x64xf32>, vector<64x64xf32>, vector<64x64xf32>, vector<64x64xf32> -> vector<256x64xf32>
    %c3 = arith.constant 3 : index
    %c0_17 = arith.constant 0 : index
    %c0_18 = arith.constant 0 : index
    %47 = vector.load %arg4[%c3, %c0_17, %c0_18] : memref<9x64x128xf32, #tpu.memory_space<vmem>>, vector<1x64x128xf32>
    %48 = vector.shape_cast %47 : vector<1x64x128xf32> to vector<64x128xf32>
    %cst_19 = arith.constant dense<0.000000e+00> : vector<256x128xf32>
    %49 = tpu.matmul %46, %48, %cst_19 {dimension_numbers = #tpu.dot_dimension_numbers<[1], [0], [0], [1], [0, 0, 1, 1], [], []>} : vector<256x64xf32>, vector<64x128xf32>, vector<256x128xf32> -> vector<256x128xf32>
    %50 = arith.addf %41, %49 : vector<256x128xf32>
    %51 = vector.extract_strided_slice %15 {offsets = [112, 0], sizes = [64, 64], strides = [1, 1]} : vector<576x64xf32> to vector<64x64xf32>
    %52 = vector.extract_strided_slice %15 {offsets = [208, 0], sizes = [64, 64], strides = [1, 1]} : vector<576x64xf32> to vector<64x64xf32>
    %53 = vector.extract_strided_slice %15 {offsets = [304, 0], sizes = [64, 64], strides = [1, 1]} : vector<576x64xf32> to vector<64x64xf32>
    %54 = vector.extract_strided_slice %15 {offsets = [400, 0], sizes = [64, 64], strides = [1, 1]} : vector<576x64xf32> to vector<64x64xf32>
    %55 = tpu.concatenate %51, %52, %53, %54 in 0 : vector<64x64xf32>, vector<64x64xf32>, vector<64x64xf32>, vector<64x64xf32> -> vector<256x64xf32>
    %c4 = arith.constant 4 : index
    %c0_20 = arith.constant 0 : index
    %c0_21 = arith.constant 0 : index
    %56 = vector.load %arg4[%c4, %c0_20, %c0_21] : memref<9x64x128xf32, #tpu.memory_space<vmem>>, vector<1x64x128xf32>
    %57 = vector.shape_cast %56 : vector<1x64x128xf32> to vector<64x128xf32>
    %cst_22 = arith.constant dense<0.000000e+00> : vector<256x128xf32>
    %58 = tpu.matmul %55, %57, %cst_22 {dimension_numbers = #tpu.dot_dimension_numbers<[1], [0], [0], [1], [0, 0, 1, 1], [], []>} : vector<256x64xf32>, vector<64x128xf32>, vector<256x128xf32> -> vector<256x128xf32>
    %59 = arith.addf %50, %58 : vector<256x128xf32>
    %60 = vector.extract_strided_slice %15 {offsets = [128, 0], sizes = [64, 64], strides = [1, 1]} : vector<576x64xf32> to vector<64x64xf32>
    %61 = vector.extract_strided_slice %15 {offsets = [224, 0], sizes = [64, 64], strides = [1, 1]} : vector<576x64xf32> to vector<64x64xf32>
    %62 = vector.extract_strided_slice %15 {offsets = [320, 0], sizes = [64, 64], strides = [1, 1]} : vector<576x64xf32> to vector<64x64xf32>
    %63 = vector.extract_strided_slice %15 {offsets = [416, 0], sizes = [64, 64], strides = [1, 1]} : vector<576x64xf32> to vector<64x64xf32>
    %64 = tpu.concatenate %60, %61, %62, %63 in 0 : vector<64x64xf32>, vector<64x64xf32>, vector<64x64xf32>, vector<64x64xf32> -> vector<256x64xf32>
    %c5 = arith.constant 5 : index
    %c0_23 = arith.constant 0 : index
    %c0_24 = arith.constant 0 : index
    %65 = vector.load %arg4[%c5, %c0_23, %c0_24] : memref<9x64x128xf32, #tpu.memory_space<vmem>>, vector<1x64x128xf32>
    %66 = vector.shape_cast %65 : vector<1x64x128xf32> to vector<64x128xf32>
    %cst_25 = arith.constant dense<0.000000e+00> : vector<256x128xf32>
    %67 = tpu.matmul %64, %66, %cst_25 {dimension_numbers = #tpu.dot_dimension_numbers<[1], [0], [0], [1], [0, 0, 1, 1], [], []>} : vector<256x64xf32>, vector<64x128xf32>, vector<256x128xf32> -> vector<256x128xf32>
    %68 = arith.addf %59, %67 : vector<256x128xf32>
    %69 = vector.extract_strided_slice %15 {offsets = [192, 0], sizes = [64, 64], strides = [1, 1]} : vector<576x64xf32> to vector<64x64xf32>
    %70 = vector.extract_strided_slice %15 {offsets = [288, 0], sizes = [64, 64], strides = [1, 1]} : vector<576x64xf32> to vector<64x64xf32>
    %71 = vector.extract_strided_slice %15 {offsets = [384, 0], sizes = [64, 64], strides = [1, 1]} : vector<576x64xf32> to vector<64x64xf32>
    %72 = vector.extract_strided_slice %15 {offsets = [480, 0], sizes = [64, 64], strides = [1, 1]} : vector<576x64xf32> to vector<64x64xf32>
    %73 = tpu.concatenate %69, %70, %71, %72 in 0 : vector<64x64xf32>, vector<64x64xf32>, vector<64x64xf32>, vector<64x64xf32> -> vector<256x64xf32>
    %c6 = arith.constant 6 : index
    %c0_26 = arith.constant 0 : index
    %c0_27 = arith.constant 0 : index
    %74 = vector.load %arg4[%c6, %c0_26, %c0_27] : memref<9x64x128xf32, #tpu.memory_space<vmem>>, vector<1x64x128xf32>
    %75 = vector.shape_cast %74 : vector<1x64x128xf32> to vector<64x128xf32>
    %cst_28 = arith.constant dense<0.000000e+00> : vector<256x128xf32>
    %76 = tpu.matmul %73, %75, %cst_28 {dimension_numbers = #tpu.dot_dimension_numbers<[1], [0], [0], [1], [0, 0, 1, 1], [], []>} : vector<256x64xf32>, vector<64x128xf32>, vector<256x128xf32> -> vector<256x128xf32>
    %77 = arith.addf %68, %76 : vector<256x128xf32>
    %78 = vector.extract_strided_slice %15 {offsets = [208, 0], sizes = [64, 64], strides = [1, 1]} : vector<576x64xf32> to vector<64x64xf32>
    %79 = vector.extract_strided_slice %15 {offsets = [304, 0], sizes = [64, 64], strides = [1, 1]} : vector<576x64xf32> to vector<64x64xf32>
    %80 = vector.extract_strided_slice %15 {offsets = [400, 0], sizes = [64, 64], strides = [1, 1]} : vector<576x64xf32> to vector<64x64xf32>
    %81 = vector.extract_strided_slice %15 {offsets = [496, 0], sizes = [64, 64], strides = [1, 1]} : vector<576x64xf32> to vector<64x64xf32>
    %82 = tpu.concatenate %78, %79, %80, %81 in 0 : vector<64x64xf32>, vector<64x64xf32>, vector<64x64xf32>, vector<64x64xf32> -> vector<256x64xf32>
    %c7 = arith.constant 7 : index
    %c0_29 = arith.constant 0 : index
    %c0_30 = arith.constant 0 : index
    %83 = vector.load %arg4[%c7, %c0_29, %c0_30] : memref<9x64x128xf32, #tpu.memory_space<vmem>>, vector<1x64x128xf32>
    %84 = vector.shape_cast %83 : vector<1x64x128xf32> to vector<64x128xf32>
    %cst_31 = arith.constant dense<0.000000e+00> : vector<256x128xf32>
    %85 = tpu.matmul %82, %84, %cst_31 {dimension_numbers = #tpu.dot_dimension_numbers<[1], [0], [0], [1], [0, 0, 1, 1], [], []>} : vector<256x64xf32>, vector<64x128xf32>, vector<256x128xf32> -> vector<256x128xf32>
    %86 = arith.addf %77, %85 : vector<256x128xf32>
    %87 = vector.extract_strided_slice %15 {offsets = [224, 0], sizes = [64, 64], strides = [1, 1]} : vector<576x64xf32> to vector<64x64xf32>
    %88 = vector.extract_strided_slice %15 {offsets = [320, 0], sizes = [64, 64], strides = [1, 1]} : vector<576x64xf32> to vector<64x64xf32>
    %89 = vector.extract_strided_slice %15 {offsets = [416, 0], sizes = [64, 64], strides = [1, 1]} : vector<576x64xf32> to vector<64x64xf32>
    %90 = vector.extract_strided_slice %15 {offsets = [512, 0], sizes = [64, 64], strides = [1, 1]} : vector<576x64xf32> to vector<64x64xf32>
    %91 = tpu.concatenate %87, %88, %89, %90 in 0 : vector<64x64xf32>, vector<64x64xf32>, vector<64x64xf32>, vector<64x64xf32> -> vector<256x64xf32>
    %c8 = arith.constant 8 : index
    %c0_32 = arith.constant 0 : index
    %c0_33 = arith.constant 0 : index
    %92 = vector.load %arg4[%c8, %c0_32, %c0_33] : memref<9x64x128xf32, #tpu.memory_space<vmem>>, vector<1x64x128xf32>
    %93 = vector.shape_cast %92 : vector<1x64x128xf32> to vector<64x128xf32>
    %cst_34 = arith.constant dense<0.000000e+00> : vector<256x128xf32>
    %94 = tpu.matmul %91, %93, %cst_34 {dimension_numbers = #tpu.dot_dimension_numbers<[1], [0], [0], [1], [0, 0, 1, 1], [], []>} : vector<256x64xf32>, vector<64x128xf32>, vector<256x128xf32> -> vector<256x128xf32>
    %95 = arith.addf %86, %94 : vector<256x128xf32>
    %96 = vector.extract_strided_slice %95 {offsets = [0, 0], sizes = [16, 128], strides = [1, 1]} : vector<256x128xf32> to vector<16x128xf32>
    %97 = vector.extract_strided_slice %95 {offsets = [16, 0], sizes = [16, 128], strides = [1, 1]} : vector<256x128xf32> to vector<16x128xf32>
    %98 = arith.maximumf %96, %97 : vector<16x128xf32>
    %99 = vector.extract_strided_slice %95 {offsets = [64, 0], sizes = [16, 128], strides = [1, 1]} : vector<256x128xf32> to vector<16x128xf32>
    %100 = arith.maximumf %98, %99 : vector<16x128xf32>
    %101 = vector.extract_strided_slice %95 {offsets = [80, 0], sizes = [16, 128], strides = [1, 1]} : vector<256x128xf32> to vector<16x128xf32>
    %102 = arith.maximumf %100, %101 : vector<16x128xf32>
    %c0_35 = arith.constant 0 : index
    %c0_36 = arith.constant 0 : index
    %103 = vector.load %arg5[%c0_35, %c0_36] : memref<1x128xf32, #tpu.memory_space<vmem>>, vector<1x128xf32>
    %104 = vector.broadcast %103 : vector<1x128xf32> to vector<16x128xf32>
    %105 = arith.addf %102, %104 : vector<16x128xf32>
    %cst_37 = arith.constant 0.000000e+00 : f32
    %106 = vector.broadcast %cst_37 : f32 to vector<16x128xf32>
    %107 = arith.maximumf %105, %106 : vector<16x128xf32>
    %108 = vector.extract_strided_slice %95 {offsets = [32, 0], sizes = [16, 128], strides = [1, 1]} : vector<256x128xf32> to vector<16x128xf32>
    %109 = vector.extract_strided_slice %95 {offsets = [48, 0], sizes = [16, 128], strides = [1, 1]} : vector<256x128xf32> to vector<16x128xf32>
    %110 = arith.maximumf %108, %109 : vector<16x128xf32>
    %111 = vector.extract_strided_slice %95 {offsets = [96, 0], sizes = [16, 128], strides = [1, 1]} : vector<256x128xf32> to vector<16x128xf32>
    %112 = arith.maximumf %110, %111 : vector<16x128xf32>
    %113 = vector.extract_strided_slice %95 {offsets = [112, 0], sizes = [16, 128], strides = [1, 1]} : vector<256x128xf32> to vector<16x128xf32>
    %114 = arith.maximumf %112, %113 : vector<16x128xf32>
    %c0_38 = arith.constant 0 : index
    %c0_39 = arith.constant 0 : index
    %115 = vector.load %arg5[%c0_38, %c0_39] : memref<1x128xf32, #tpu.memory_space<vmem>>, vector<1x128xf32>
    %116 = vector.broadcast %115 : vector<1x128xf32> to vector<16x128xf32>
    %117 = arith.addf %114, %116 : vector<16x128xf32>
    %cst_40 = arith.constant 0.000000e+00 : f32
    %118 = vector.broadcast %cst_40 : f32 to vector<16x128xf32>
    %119 = arith.maximumf %117, %118 : vector<16x128xf32>
    %120 = vector.extract_strided_slice %95 {offsets = [128, 0], sizes = [16, 128], strides = [1, 1]} : vector<256x128xf32> to vector<16x128xf32>
    %121 = vector.extract_strided_slice %95 {offsets = [144, 0], sizes = [16, 128], strides = [1, 1]} : vector<256x128xf32> to vector<16x128xf32>
    %122 = arith.maximumf %120, %121 : vector<16x128xf32>
    %123 = vector.extract_strided_slice %95 {offsets = [192, 0], sizes = [16, 128], strides = [1, 1]} : vector<256x128xf32> to vector<16x128xf32>
    %124 = arith.maximumf %122, %123 : vector<16x128xf32>
    %125 = vector.extract_strided_slice %95 {offsets = [208, 0], sizes = [16, 128], strides = [1, 1]} : vector<256x128xf32> to vector<16x128xf32>
    %126 = arith.maximumf %124, %125 : vector<16x128xf32>
    %c0_41 = arith.constant 0 : index
    %c0_42 = arith.constant 0 : index
    %127 = vector.load %arg5[%c0_41, %c0_42] : memref<1x128xf32, #tpu.memory_space<vmem>>, vector<1x128xf32>
    %128 = vector.broadcast %127 : vector<1x128xf32> to vector<16x128xf32>
    %129 = arith.addf %126, %128 : vector<16x128xf32>
    %cst_43 = arith.constant 0.000000e+00 : f32
    %130 = vector.broadcast %cst_43 : f32 to vector<16x128xf32>
    %131 = arith.maximumf %129, %130 : vector<16x128xf32>
    %132 = vector.extract_strided_slice %95 {offsets = [160, 0], sizes = [16, 128], strides = [1, 1]} : vector<256x128xf32> to vector<16x128xf32>
    %133 = vector.extract_strided_slice %95 {offsets = [176, 0], sizes = [16, 128], strides = [1, 1]} : vector<256x128xf32> to vector<16x128xf32>
    %134 = arith.maximumf %132, %133 : vector<16x128xf32>
    %135 = vector.extract_strided_slice %95 {offsets = [224, 0], sizes = [16, 128], strides = [1, 1]} : vector<256x128xf32> to vector<16x128xf32>
    %136 = arith.maximumf %134, %135 : vector<16x128xf32>
    %137 = vector.extract_strided_slice %95 {offsets = [240, 0], sizes = [16, 128], strides = [1, 1]} : vector<256x128xf32> to vector<16x128xf32>
    %138 = arith.maximumf %136, %137 : vector<16x128xf32>
    %c0_44 = arith.constant 0 : index
    %c0_45 = arith.constant 0 : index
    %139 = vector.load %arg5[%c0_44, %c0_45] : memref<1x128xf32, #tpu.memory_space<vmem>>, vector<1x128xf32>
    %140 = vector.broadcast %139 : vector<1x128xf32> to vector<16x128xf32>
    %141 = arith.addf %138, %140 : vector<16x128xf32>
    %cst_46 = arith.constant 0.000000e+00 : f32
    %142 = vector.broadcast %cst_46 : f32 to vector<16x128xf32>
    %143 = arith.maximumf %141, %142 : vector<16x128xf32>
    %144 = vector.extract_strided_slice %107 {offsets = [0, 0], sizes = [8, 128], strides = [1, 1]} : vector<16x128xf32> to vector<8x128xf32>
    %145 = vector.extract_strided_slice %119 {offsets = [0, 0], sizes = [8, 128], strides = [1, 1]} : vector<16x128xf32> to vector<8x128xf32>
    %146 = vector.extract_strided_slice %131 {offsets = [0, 0], sizes = [8, 128], strides = [1, 1]} : vector<16x128xf32> to vector<8x128xf32>
    %147 = vector.extract_strided_slice %143 {offsets = [0, 0], sizes = [8, 128], strides = [1, 1]} : vector<16x128xf32> to vector<8x128xf32>
    %148 = vector.extract_strided_slice %107 {offsets = [8, 0], sizes = [8, 128], strides = [1, 1]} : vector<16x128xf32> to vector<8x128xf32>
    %149 = vector.extract_strided_slice %119 {offsets = [8, 0], sizes = [8, 128], strides = [1, 1]} : vector<16x128xf32> to vector<8x128xf32>
    %150 = vector.extract_strided_slice %131 {offsets = [8, 0], sizes = [8, 128], strides = [1, 1]} : vector<16x128xf32> to vector<8x128xf32>
    %151 = vector.extract_strided_slice %143 {offsets = [8, 0], sizes = [8, 128], strides = [1, 1]} : vector<16x128xf32> to vector<8x128xf32>
    %152 = tpu.concatenate %144, %145, %146, %147, %148, %149, %150, %151 in 1 : vector<8x128xf32>, vector<8x128xf32>, vector<8x128xf32>, vector<8x128xf32>, vector<8x128xf32>, vector<8x128xf32>, vector<8x128xf32>, vector<8x128xf32> -> vector<8x1024xf32>
    %c0_47 = arith.constant 0 : index
    %c0_48 = arith.constant 0 : index
    %153 = vector.load %arg6[%c0_47, %c0_48] : memref<1024x128xf32, #tpu.memory_space<vmem>>, vector<1024x128xf32>
    %cst_49 = arith.constant dense<0.000000e+00> : vector<8x128xf32>
    %154 = tpu.matmul %152, %153, %cst_49 {dimension_numbers = #tpu.dot_dimension_numbers<[1], [0], [0], [1], [0, 0, 1, 1], [], []>} : vector<8x1024xf32>, vector<1024x128xf32>, vector<8x128xf32> -> vector<8x128xf32>
    %c0_50 = arith.constant 0 : index
    %c0_51 = arith.constant 0 : index
    %155 = vector.load %arg7[%c0_50, %c0_51] : memref<1x128xf32, #tpu.memory_space<vmem>>, vector<1x128xf32>
    %156 = vector.broadcast %155 : vector<1x128xf32> to vector<8x128xf32>
    %157 = arith.addf %154, %156 : vector<8x128xf32>
    %cst_52 = arith.constant 0.000000e+00 : f32
    %158 = vector.broadcast %cst_52 : f32 to vector<8x128xf32>
    %159 = arith.maximumf %157, %158 : vector<8x128xf32>
    %c0_53 = arith.constant 0 : index
    %c0_54 = arith.constant 0 : index
    %160 = vector.load %arg8[%c0_53, %c0_54] : memref<128x10xf32, #tpu.memory_space<vmem>>, vector<128x10xf32>
    %cst_55 = arith.constant dense<0.000000e+00> : vector<8x10xf32>
    %161 = tpu.matmul %159, %160, %cst_55 {dimension_numbers = #tpu.dot_dimension_numbers<[1], [0], [0], [1], [0, 0, 1, 1], [], []>} : vector<8x128xf32>, vector<128x10xf32>, vector<8x10xf32> -> vector<8x10xf32>
    %c0_56 = arith.constant 0 : index
    %c0_57 = arith.constant 0 : index
    %162 = vector.load %arg9[%c0_56, %c0_57] : memref<1x10xf32, #tpu.memory_space<vmem>>, vector<1x10xf32>
    %163 = vector.broadcast %162 : vector<1x10xf32> to vector<8x10xf32>
    %164 = arith.addf %161, %163 : vector<8x10xf32>
    %cst_58 = arith.constant 0.000000e+00 : f32
    %165 = vector.broadcast %cst_58 : f32 to vector<8x10xf32>
    %166 = arith.maximumf %164, %165 : vector<8x10xf32>
    %c0_59 = arith.constant 0 : index
    %c0_60 = arith.constant 0 : index
    %167 = vector.load %arg10[%c0_59, %c0_60] : memref<10x2xf32, #tpu.memory_space<vmem>>, vector<10x2xf32>
    %cst_61 = arith.constant dense<0.000000e+00> : vector<8x2xf32>
    %168 = tpu.matmul %166, %167, %cst_61 {dimension_numbers = #tpu.dot_dimension_numbers<[1], [0], [0], [1], [0, 0, 1, 1], [], []>} : vector<8x10xf32>, vector<10x2xf32>, vector<8x2xf32> -> vector<8x2xf32>
    %c0_62 = arith.constant 0 : index
    %c0_63 = arith.constant 0 : index
    %169 = vector.load %arg11[%c0_62, %c0_63] : memref<1x2xf32, #tpu.memory_space<vmem>>, vector<1x2xf32>
    %170 = vector.broadcast %169 : vector<1x2xf32> to vector<8x2xf32>
    %171 = arith.addf %168, %170 : vector<8x2xf32>
    %c0_64 = arith.constant 0 : index
    %c0_65 = arith.constant 0 : index
    %172 = vector.load %arg12[%c0_64, %c0_65] : memref<8x2xf32, #tpu.memory_space<vmem>>, vector<8x2xf32>
    tpu.vector_store %arg12[%c0_64, %c0_65], %171 {strides = array<i32>} : memref<8x2xf32, #tpu.memory_space<vmem>>, vector<8x2xf32>,
    return
  }
  func.func @transform_0(%arg0: i32) -> (i32, i32, i32) {
    %c0_i32 = arith.constant 0 : i32
    %c0_i32_0 = arith.constant 0 : i32
    %c0_i32_1 = arith.constant 0 : i32
    return %arg0, %c0_i32, %c0_i32_0 : i32, i32, i32
  }
  func.func @transform_1(%arg0: i32) -> (i32, i32) {
    %c0_i32 = arith.constant 0 : i32
    %c0_i32_0 = arith.constant 0 : i32
    %c0_i32_1 = arith.constant 0 : i32
    return %c0_i32, %c0_i32_0 : i32, i32
  }
  func.func @transform_2(%arg0: i32) -> (i32, i32) {
    %c0_i32 = arith.constant 0 : i32
    %c0_i32_0 = arith.constant 0 : i32
    %c0_i32_1 = arith.constant 0 : i32
    return %c0_i32, %c0_i32_0 : i32, i32
  }
  func.func @transform_3(%arg0: i32) -> (i32, i32, i32) {
    %c0_i32 = arith.constant 0 : i32
    %c0_i32_0 = arith.constant 0 : i32
    %c0_i32_1 = arith.constant 0 : i32
    %c0_i32_2 = arith.constant 0 : i32
    return %c0_i32, %c0_i32_0, %c0_i32_1 : i32, i32, i32
  }
  func.func @transform_4(%arg0: i32) -> (i32, i32) {
    %c0_i32 = arith.constant 0 : i32
    %c0_i32_0 = arith.constant 0 : i32
    %c0_i32_1 = arith.constant 0 : i32
    return %c0_i32, %c0_i32_0 : i32, i32
  }
  func.func @transform_5(%arg0: i32) -> (i32, i32) {
    %c0_i32 = arith.constant 0 : i32
    %c0_i32_0 = arith.constant 0 : i32
    %c0_i32_1 = arith.constant 0 : i32
    return %c0_i32, %c0_i32_0 : i32, i32
  }
  func.func @transform_6(%arg0: i32) -> (i32, i32) {
    %c0_i32 = arith.constant 0 : i32
    %c0_i32_0 = arith.constant 0 : i32
    %c0_i32_1 = arith.constant 0 : i32
    return %c0_i32, %c0_i32_0 : i32, i32
  }
  func.func @transform_7(%arg0: i32) -> (i32, i32) {
    %c0_i32 = arith.constant 0 : i32
    %c0_i32_0 = arith.constant 0 : i32
    %c0_i32_1 = arith.constant 0 : i32
    return %c0_i32, %c0_i32_0 : i32, i32
  }
  func.func @transform_8(%arg0: i32) -> (i32, i32) {
    %c0_i32 = arith.constant 0 : i32
    %c0_i32_0 = arith.constant 0 : i32
    %c0_i32_1 = arith.constant 0 : i32
    return %c0_i32, %c0_i32_0 : i32, i32
  }
  func.func @transform_9(%arg0: i32) -> (i32, i32) {
    %c0_i32 = arith.constant 0 : i32
    %c0_i32_0 = arith.constant 0 : i32
    %c0_i32_1 = arith.constant 0 : i32
    return %c0_i32, %c0_i32_0 : i32, i32
  }
  func.func @transform_10(%arg0: i32) -> (i32, i32) {
    %c0_i32 = arith.constant 0 : i32
    %c0_i32_0 = arith.constant 0 : i32
    %c0_i32_1 = arith.constant 0 : i32
    return %c0_i32, %c0_i32_0 : i32, i32
  }
  func.func @transform_11(%arg0: i32) -> (i32, i32) {
    %c0_i32 = arith.constant 0 : i32
    %c0_i32_0 = arith.constant 0 : i32
    return %arg0, %c0_i32 : i32, i32
  }
}

</mosaic_0001>

<llo_original>
// kernel: ws_model_forward.1
$region0: #{ws_model_forward.1}
  #allocation0 [shape = 'u32[]', space=smem, size = 0x4, offset = 0x4, fixed_abs, tag = 'smem constant byte address 0x4 - core index']
  #allocation1 [shape = 'u32[144,128]{1,0:T(1,128)}', space=vmem, size = 0x12000, scoped, tag = 'internal scratch']
  %s0 = inlined_call_operand.vmem [shape: f32[1,2304,9], index: 0, kind: input, shape index: {}]
  %s1 = inlined_call_operand.vmem [shape: f32[9,64], index: 1, kind: input, shape index: {}]
  %s2 = inlined_call_operand.vmem [shape: f32[1,64], index: 2, kind: input, shape index: {}]
  %s3 = inlined_call_operand.vmem [shape: f32[9,64,128], index: 3, kind: input, shape index: {}]
  %s4 = inlined_call_operand.vmem [shape: f32[1,128], index: 4, kind: input, shape index: {}]
  %s5 = inlined_call_operand.vmem [shape: f32[1024,128], index: 5, kind: input, shape index: {}]
  %s6 = inlined_call_operand.vmem [shape: f32[1,128], index: 6, kind: input, shape index: {}]
  %s7 = inlined_call_operand.vmem [shape: f32[128,10], index: 7, kind: input, shape index: {}]
  %s8 = inlined_call_operand.vmem [shape: f32[1,10], index: 8, kind: input, shape index: {}]
  %s9 = inlined_call_operand.vmem [shape: f32[10,2], index: 9, kind: input, shape index: {}]
  %s10 = inlined_call_operand.vmem [shape: f32[1,2], index: 10, kind: input, shape index: {}]
  %s11 = inlined_call_operand.vmem [shape: f32[8,2], index: 11, kind: output, shape index: {}]
  %s12 = sld [smem:[#allocation0]]
  $region54: #{ws_model_forward.1} parent=0
    _
  %s14 = ssub.s32 1, %s12
  %s15 = scalar_select 0, %s14, %s12
  // Predicated region
  $region2: #{ws_model_forward.1} parent=0 // pred_check
    _
  $region3: #{ws_model_forward.1} parent=0 // pred_check_branch
    %17 = sbr.rel (0) target = $region5
  $region4: #{ws_model_forward.1} parent=0 // pred_region
    _
  $region5: #{ws_model_forward.1} parent=0 // pred_fallthru
    _
  // Predicated region
  $region6: #{ws_model_forward.1} parent=0 // pred_check
    _
  $region7: #{ws_model_forward.1} parent=0 // pred_check_branch
    %19 = sbr.rel (0) target = $region9
  $region8: #{ws_model_forward.1} parent=0 // pred_region
    _
  $region9: #{ws_model_forward.1} parent=0 // pred_fallthru
    _
  // Predicated region
  $region10: #{ws_model_forward.1} parent=0 // pred_check
    _
  $region11: #{ws_model_forward.1} parent=0 // pred_check_branch
    %21 = sbr.rel (0) target = $region13
  $region12: #{ws_model_forward.1} parent=0 // pred_region
    _
  $region13: #{ws_model_forward.1} parent=0 // pred_fallthru
    _
  // Predicated region
  $region14: #{ws_model_forward.1} parent=0 // pred_check
    _
  $region15: #{ws_model_forward.1} parent=0 // pred_check_branch
    %23 = sbr.rel (0) target = $region17
  $region16: #{ws_model_forward.1} parent=0 // pred_region
    _
  $region17: #{ws_model_forward.1} parent=0 // pred_fallthru
    _
  // Predicated region
  $region18: #{ws_model_forward.1} parent=0 // pred_check
    _
  $region19: #{ws_model_forward.1} parent=0 // pred_check_branch
    %25 = sbr.rel (0) target = $region21
  $region20: #{ws_model_forward.1} parent=0 // pred_region
    _
  $region21: #{ws_model_forward.1} parent=0 // pred_fallthru
    _
  // Predicated region
  $region22: #{ws_model_forward.1} parent=0 // pred_check
    _
  $region23: #{ws_model_forward.1} parent=0 // pred_check_branch
    %27 = sbr.rel (0) target = $region25
  $region24: #{ws_model_forward.1} parent=0 // pred_region
    _
  $region25: #{ws_model_forward.1} parent=0 // pred_fallthru
    _
  // Predicated region
  $region26: #{ws_model_forward.1} parent=0 // pred_check
    _
  $region27: #{ws_model_forward.1} parent=0 // pred_check_branch
    %29 = sbr.rel (0) target = $region29
  $region28: #{ws_model_forward.1} parent=0 // pred_region
    _
  $region29: #{ws_model_forward.1} parent=0 // pred_fallthru
    _
  // Predicated region
  $region30: #{ws_model_forward.1} parent=0 // pred_check
    _
  $region31: #{ws_model_forward.1} parent=0 // pred_check_branch
    %31 = sbr.rel (0) target = $region33
  $region32: #{ws_model_forward.1} parent=0 // pred_region
    _
  $region33: #{ws_model_forward.1} parent=0 // pred_fallthru
    _
  // Predicated region
  $region34: #{ws_model_forward.1} parent=0 // pred_check
    _
  $region35: #{ws_model_forward.1} parent=0 // pred_check_branch
    %33 = sbr.rel (0) target = $region37
  $region36: #{ws_model_forward.1} parent=0 // pred_region
    _
  $region37: #{ws_model_forward.1} parent=0 // pred_fallthru
    _
  // Predicated region
  $region38: #{ws_model_forward.1} parent=0 // pred_check
    _
  $region39: #{ws_model_forward.1} parent=0 // pred_check_branch
    %35 = sbr.rel (0) target = $region41
  $region40: #{ws_model_forward.1} parent=0 // pred_region
    _
  $region41: #{ws_model_forward.1} parent=0 // pred_fallthru
    _
  // Predicated region
  $region42: #{ws_model_forward.1} parent=0 // pred_check
    _
  $region43: #{ws_model_forward.1} parent=0 // pred_check_branch
    %37 = sbr.rel (0) target = $region45
  $region44: #{ws_model_forward.1} parent=0 // pred_region
    _
  $region45: #{ws_model_forward.1} parent=0 // pred_fallthru
    _
  %v38 = vld [vmem:[%s0] sm:$0xff]
  %v39 = vld [vmem:[%s0 + $0x8] sm:$0xff]
  %v40 = vld [vmem:[%s0 + $0x10] sm:$0xff]
  %v41 = vld [vmem:[%s0 + $0x18] sm:$0xff]
  %v42 = vld [vmem:[%s0 + $0x20] sm:$0xff]
  %v43 = vld [vmem:[%s0 + $0x28] sm:$0xff]
  %v44 = vld [vmem:[%s0 + $0x30] sm:$0xff]
  %v45 = vld [vmem:[%s0 + $0x38] sm:$0xff]
  %v46 = vld [vmem:[%s0 + $0x40] sm:$0xff]
  %v47 = vld [vmem:[%s0 + $0x48] sm:$0xff]
  %v48 = vld [vmem:[%s0 + $0x50] sm:$0xff]
  %v49 = vld [vmem:[%s0 + $0x58] sm:$0xff]
  %v50 = vld [vmem:[%s0 + $0x60] sm:$0xff]
  %v51 = vld [vmem:[%s0 + $0x68] sm:$0xff]
  %v52 = vld [vmem:[%s0 + $0x70] sm:$0xff]
  %v53 = vld [vmem:[%s0 + $0x78] sm:$0xff]
  %v54 = vld [vmem:[%s0 + $0x80] sm:$0xff]
  %v55 = vld [vmem:[%s0 + $0x88] sm:$0xff]
  %v56 = vld [vmem:[%s0 + $0x90] sm:$0xff]
  %v57 = vld [vmem:[%s0 + $0x98] sm:$0xff]
  %v58 = vld [vmem:[%s0 + $0xa0] sm:$0xff]
  %v59 = vld [vmem:[%s0 + $0xa8] sm:$0xff]
  %v60 = vld [vmem:[%s0 + $0xb0] sm:$0xff]
  %v61 = vld [vmem:[%s0 + $0xb8] sm:$0xff]
  %v62 = vld [vmem:[%s0 + $0xc0] sm:$0xff]
  %v63 = vld [vmem:[%s0 + $0xc8] sm:$0xff]
  %v64 = vld [vmem:[%s0 + $0xd0] sm:$0xff]
  %v65 = vld [vmem:[%s0 + $0xd8] sm:$0xff]
  %v66 = vld [vmem:[%s0 + $0xe0] sm:$0xff]
  %v67 = vld [vmem:[%s0 + $0xe8] sm:$0xff]
  %v68 = vld [vmem:[%s0 + $0xf0] sm:$0xff]
  %v69 = vld [vmem:[%s0 + $0xf8] sm:$0xff]
  %v70 = vld [vmem:[%s0 + $0x100] sm:$0xff]
  %v71 = vld [vmem:[%s0 + $0x108] sm:$0xff]
  %v72 = vld [vmem:[%s0 + $0x110] sm:$0xff]
  %v73 = vld [vmem:[%s0 + $0x118] sm:$0xff]
  %v74 = vld [vmem:[%s0 + $0x120] sm:$0xff]
  %v75 = vld [vmem:[%s0 + $0x128] sm:$0xff]
  %v76 = vld [vmem:[%s0 + $0x130] sm:$0xff]
  %v77 = vld [vmem:[%s0 + $0x138] sm:$0xff]
  %v78 = vld [vmem:[%s0 + $0x140] sm:$0xff]
  %v79 = vld [vmem:[%s0 + $0x148] sm:$0xff]
  %v80 = vld [vmem:[%s0 + $0x150] sm:$0xff]
  %v81 = vld [vmem:[%s0 + $0x158] sm:$0xff]
  %v82 = vld [vmem:[%s0 + $0x160] sm:$0xff]
  %v83 = vld [vmem:[%s0 + $0x168] sm:$0xff]
  %v84 = vld [vmem:[%s0 + $0x170] sm:$0xff]
  %v85 = vld [vmem:[%s0 + $0x178] sm:$0xff]
  %v86 = vld [vmem:[%s0 + $0x180] sm:$0xff]
  %v87 = vld [vmem:[%s0 + $0x188] sm:$0xff]
  %v88 = vld [vmem:[%s0 + $0x190] sm:$0xff]
  %v89 = vld [vmem:[%s0 + $0x198] sm:$0xff]
  %v90 = vld [vmem:[%s0 + $0x1a0] sm:$0xff]
  %v91 = vld [vmem:[%s0 + $0x1a8] sm:$0xff]
  %v92 = vld [vmem:[%s0 + $0x1b0] sm:$0xff]
  %v93 = vld [vmem:[%s0 + $0x1b8] sm:$0xff]
  %v94 = vld [vmem:[%s0 + $0x1c0] sm:$0xff]
  %v95 = vld [vmem:[%s0 + $0x1c8] sm:$0xff]
  %v96 = vld [vmem:[%s0 + $0x1d0] sm:$0xff]
  %v97 = vld [vmem:[%s0 + $0x1d8] sm:$0xff]
  %v98 = vld [vmem:[%s0 + $0x1e0] sm:$0xff]
  %v99 = vld [vmem:[%s0 + $0x1e8] sm:$0xff]
  %v100 = vld [vmem:[%s0 + $0x1f0] sm:$0xff]
  %v101 = vld [vmem:[%s0 + $0x1f8] sm:$0xff]
  %v102 = vld [vmem:[%s0 + $0x200] sm:$0xff]
  %v103 = vld [vmem:[%s0 + $0x208] sm:$0xff]
  %v104 = vld [vmem:[%s0 + $0x210] sm:$0xff]
  %v105 = vld [vmem:[%s0 + $0x218] sm:$0xff]
  %v106 = vld [vmem:[%s0 + $0x220] sm:$0xff]
  %v107 = vld [vmem:[%s0 + $0x228] sm:$0xff]
  %v108 = vld [vmem:[%s0 + $0x230] sm:$0xff]
  %v109 = vld [vmem:[%s0 + $0x238] sm:$0xff]
  %v110 = vld [vmem:[%s0 + $0x240] sm:$0xff]
  %v111 = vld [vmem:[%s0 + $0x248] sm:$0xff]
  %v112 = vld [vmem:[%s0 + $0x250] sm:$0xff]
  %v113 = vld [vmem:[%s0 + $0x258] sm:$0xff]
  %v114 = vld [vmem:[%s0 + $0x260] sm:$0xff]
  %v115 = vld [vmem:[%s0 + $0x268] sm:$0xff]
  %v116 = vld [vmem:[%s0 + $0x270] sm:$0xff]
  %v117 = vld [vmem:[%s0 + $0x278] sm:$0xff]
  %v118 = vld [vmem:[%s0 + $0x280] sm:$0xff]
  %v119 = vld [vmem:[%s0 + $0x288] sm:$0xff]
  %v120 = vld [vmem:[%s0 + $0x290] sm:$0xff]
  %v121 = vld [vmem:[%s0 + $0x298] sm:$0xff]
  %v122 = vld [vmem:[%s0 + $0x2a0] sm:$0xff]
  %v123 = vld [vmem:[%s0 + $0x2a8] sm:$0xff]
  %v124 = vld [vmem:[%s0 + $0x2b0] sm:$0xff]
  %v125 = vld [vmem:[%s0 + $0x2b8] sm:$0xff]
  %v126 = vld [vmem:[%s0 + $0x2c0] sm:$0xff]
  %v127 = vld [vmem:[%s0 + $0x2c8] sm:$0xff]
  %v128 = vld [vmem:[%s0 + $0x2d0] sm:$0xff]
  %v129 = vld [vmem:[%s0 + $0x2d8] sm:$0xff]
  %v130 = vld [vmem:[%s0 + $0x2e0] sm:$0xff]
  %v131 = vld [vmem:[%s0 + $0x2e8] sm:$0xff]
  %v132 = vld [vmem:[%s0 + $0x2f0] sm:$0xff]
  %v133 = vld [vmem:[%s0 + $0x2f8] sm:$0xff]
  %v134 = vld [vmem:[%s0 + $0x300] sm:$0xff]
  %v135 = vld [vmem:[%s0 + $0x308] sm:$0xff]
  %v136 = vld [vmem:[%s0 + $0x310] sm:$0xff]
  %v137 = vld [vmem:[%s0 + $0x318] sm:$0xff]
  %v138 = vld [vmem:[%s0 + $0x320] sm:$0xff]
  %v139 = vld [vmem:[%s0 + $0x328] sm:$0xff]
  %v140 = vld [vmem:[%s0 + $0x330] sm:$0xff]
  %v141 = vld [vmem:[%s0 + $0x338] sm:$0xff]
  %v142 = vld [vmem:[%s0 + $0x340] sm:$0xff]
  %v143 = vld [vmem:[%s0 + $0x348] sm:$0xff]
  %v144 = vld [vmem:[%s0 + $0x350] sm:$0xff]
  %v145 = vld [vmem:[%s0 + $0x358] sm:$0xff]
  %v146 = vld [vmem:[%s0 + $0x360] sm:$0xff]
  %v147 = vld [vmem:[%s0 + $0x368] sm:$0xff]
  %v148 = vld [vmem:[%s0 + $0x370] sm:$0xff]
  %v149 = vld [vmem:[%s0 + $0x378] sm:$0xff]
  %v150 = vld [vmem:[%s0 + $0x380] sm:$0xff]
  %v151 = vld [vmem:[%s0 + $0x388] sm:$0xff]
  %v152 = vld [vmem:[%s0 + $0x390] sm:$0xff]
  %v153 = vld [vmem:[%s0 + $0x398] sm:$0xff]
  %v154 = vld [vmem:[%s0 + $0x3a0] sm:$0xff]
  %v155 = vld [vmem:[%s0 + $0x3a8] sm:$0xff]
  %v156 = vld [vmem:[%s0 + $0x3b0] sm:$0xff]
  %v157 = vld [vmem:[%s0 + $0x3b8] sm:$0xff]
  %v158 = vld [vmem:[%s0 + $0x3c0] sm:$0xff]
  %v159 = vld [vmem:[%s0 + $0x3c8] sm:$0xff]
  %v160 = vld [vmem:[%s0 + $0x3d0] sm:$0xff]
  %v161 = vld [vmem:[%s0 + $0x3d8] sm:$0xff]
  %v162 = vld [vmem:[%s0 + $0x3e0] sm:$0xff]
  %v163 = vld [vmem:[%s0 + $0x3e8] sm:$0xff]
  %v164 = vld [vmem:[%s0 + $0x3f0] sm:$0xff]
  %v165 = vld [vmem:[%s0 + $0x3f8] sm:$0xff]
  %v166 = vld [vmem:[%s0 + $0x400] sm:$0xff]
  %v167 = vld [vmem:[%s0 + $0x408] sm:$0xff]
  %v168 = vld [vmem:[%s0 + $0x410] sm:$0xff]
  %v169 = vld [vmem:[%s0 + $0x418] sm:$0xff]
  %v170 = vld [vmem:[%s0 + $0x420] sm:$0xff]
  %v171 = vld [vmem:[%s0 + $0x428] sm:$0xff]
  %v172 = vld [vmem:[%s0 + $0x430] sm:$0xff]
  %v173 = vld [vmem:[%s0 + $0x438] sm:$0xff]
  %v174 = vld [vmem:[%s0 + $0x440] sm:$0xff]
  %v175 = vld [vmem:[%s0 + $0x448] sm:$0xff]
  %v176 = vld [vmem:[%s0 + $0x450] sm:$0xff]
  %v177 = vld [vmem:[%s0 + $0x458] sm:$0xff]
  %v178 = vld [vmem:[%s0 + $0x460] sm:$0xff]
  %v179 = vld [vmem:[%s0 + $0x468] sm:$0xff]
  %v180 = vld [vmem:[%s0 + $0x470] sm:$0xff]
  %v181 = vld [vmem:[%s0 + $0x478] sm:$0xff]
  %v182 = vld [vmem:[%s0 + $0x480] sm:$0xff]
  %v183 = vld [vmem:[%s0 + $0x488] sm:$0xff]
  %v184 = vld [vmem:[%s0 + $0x490] sm:$0xff]
  %v185 = vld [vmem:[%s0 + $0x498] sm:$0xff]
  %v186 = vld [vmem:[%s0 + $0x4a0] sm:$0xff]
  %v187 = vld [vmem:[%s0 + $0x4a8] sm:$0xff]
  %v188 = vld [vmem:[%s0 + $0x4b0] sm:$0xff]
  %v189 = vld [vmem:[%s0 + $0x4b8] sm:$0xff]
  %v190 = vld [vmem:[%s0 + $0x4c0] sm:$0xff]
  %v191 = vld [vmem:[%s0 + $0x4c8] sm:$0xff]
  %v192 = vld [vmem:[%s0 + $0x4d0] sm:$0xff]
  %v193 = vld [vmem:[%s0 + $0x4d8] sm:$0xff]
  %v194 = vld [vmem:[%s0 + $0x4e0] sm:$0xff]
  %v195 = vld [vmem:[%s0 + $0x4e8] sm:$0xff]
  %v196 = vld [vmem:[%s0 + $0x4f0] sm:$0xff]
  %v197 = vld [vmem:[%s0 + $0x4f8] sm:$0xff]
  %v198 = vld [vmem:[%s0 + $0x500] sm:$0xff]
  %v199 = vld [vmem:[%s0 + $0x508] sm:$0xff]
  %v200 = vld [vmem:[%s0 + $0x510] sm:$0xff]
  %v201 = vld [vmem:[%s0 + $0x518] sm:$0xff]
  %v202 = vld [vmem:[%s0 + $0x520] sm:$0xff]
  %v203 = vld [vmem:[%s0 + $0x528] sm:$0xff]
  %v204 = vld [vmem:[%s0 + $0x530] sm:$0xff]
  %v205 = vld [vmem:[%s0 + $0x538] sm:$0xff]
  %v206 = vld [vmem:[%s0 + $0x540] sm:$0xff]
  %v207 = vld [vmem:[%s0 + $0x548] sm:$0xff]
  %v208 = vld [vmem:[%s0 + $0x550] sm:$0xff]
  %v209 = vld [vmem:[%s0 + $0x558] sm:$0xff]
  %v210 = vld [vmem:[%s0 + $0x560] sm:$0xff]
  %v211 = vld [vmem:[%s0 + $0x568] sm:$0xff]
  %v212 = vld [vmem:[%s0 + $0x570] sm:$0xff]
  %v213 = vld [vmem:[%s0 + $0x578] sm:$0xff]
  %v214 = vld [vmem:[%s0 + $0x580] sm:$0xff]
  %v215 = vld [vmem:[%s0 + $0x588] sm:$0xff]
  %v216 = vld [vmem:[%s0 + $0x590] sm:$0xff]
  %v217 = vld [vmem:[%s0 + $0x598] sm:$0xff]
  %v218 = vld [vmem:[%s0 + $0x5a0] sm:$0xff]
  %v219 = vld [vmem:[%s0 + $0x5a8] sm:$0xff]
  %v220 = vld [vmem:[%s0 + $0x5b0] sm:$0xff]
  %v221 = vld [vmem:[%s0 + $0x5b8] sm:$0xff]
  %v222 = vld [vmem:[%s0 + $0x5c0] sm:$0xff]
  %v223 = vld [vmem:[%s0 + $0x5c8] sm:$0xff]
  %v224 = vld [vmem:[%s0 + $0x5d0] sm:$0xff]
  %v225 = vld [vmem:[%s0 + $0x5d8] sm:$0xff]
  %v226 = vld [vmem:[%s0 + $0x5e0] sm:$0xff]
  %v227 = vld [vmem:[%s0 + $0x5e8] sm:$0xff]
  %v228 = vld [vmem:[%s0 + $0x5f0] sm:$0xff]
  %v229 = vld [vmem:[%s0 + $0x5f8] sm:$0xff]
  %v230 = vld [vmem:[%s0 + $0x600] sm:$0xff]
  %v231 = vld [vmem:[%s0 + $0x608] sm:$0xff]
  %v232 = vld [vmem:[%s0 + $0x610] sm:$0xff]
  %v233 = vld [vmem:[%s0 + $0x618] sm:$0xff]
  %v234 = vld [vmem:[%s0 + $0x620] sm:$0xff]
  %v235 = vld [vmem:[%s0 + $0x628] sm:$0xff]
  %v236 = vld [vmem:[%s0 + $0x630] sm:$0xff]
  %v237 = vld [vmem:[%s0 + $0x638] sm:$0xff]
  %v238 = vld [vmem:[%s0 + $0x640] sm:$0xff]
  %v239 = vld [vmem:[%s0 + $0x648] sm:$0xff]
  %v240 = vld [vmem:[%s0 + $0x650] sm:$0xff]
  %v241 = vld [vmem:[%s0 + $0x658] sm:$0xff]
  %v242 = vld [vmem:[%s0 + $0x660] sm:$0xff]
  %v243 = vld [vmem:[%s0 + $0x668] sm:$0xff]
  %v244 = vld [vmem:[%s0 + $0x670] sm:$0xff]
  %v245 = vld [vmem:[%s0 + $0x678] sm:$0xff]
  %v246 = vld [vmem:[%s0 + $0x680] sm:$0xff]
  %v247 = vld [vmem:[%s0 + $0x688] sm:$0xff]
  %v248 = vld [vmem:[%s0 + $0x690] sm:$0xff]
  %v249 = vld [vmem:[%s0 + $0x698] sm:$0xff]
  %v250 = vld [vmem:[%s0 + $0x6a0] sm:$0xff]
  %v251 = vld [vmem:[%s0 + $0x6a8] sm:$0xff]
  %v252 = vld [vmem:[%s0 + $0x6b0] sm:$0xff]
  %v253 = vld [vmem:[%s0 + $0x6b8] sm:$0xff]
  %v254 = vld [vmem:[%s0 + $0x6c0] sm:$0xff]
  %v255 = vld [vmem:[%s0 + $0x6c8] sm:$0xff]
  %v256 = vld [vmem:[%s0 + $0x6d0] sm:$0xff]
  %v257 = vld [vmem:[%s0 + $0x6d8] sm:$0xff]
  %v258 = vld [vmem:[%s0 + $0x6e0] sm:$0xff]
  %v259 = vld [vmem:[%s0 + $0x6e8] sm:$0xff]
  %v260 = vld [vmem:[%s0 + $0x6f0] sm:$0xff]
  %v261 = vld [vmem:[%s0 + $0x6f8] sm:$0xff]
  %v262 = vld [vmem:[%s0 + $0x700] sm:$0xff]
  %v263 = vld [vmem:[%s0 + $0x708] sm:$0xff]
  %v264 = vld [vmem:[%s0 + $0x710] sm:$0xff]
  %v265 = vld [vmem:[%s0 + $0x718] sm:$0xff]
  %v266 = vld [vmem:[%s0 + $0x720] sm:$0xff]
  %v267 = vld [vmem:[%s0 + $0x728] sm:$0xff]
  %v268 = vld [vmem:[%s0 + $0x730] sm:$0xff]
  %v269 = vld [vmem:[%s0 + $0x738] sm:$0xff]
  %v270 = vld [vmem:[%s0 + $0x740] sm:$0xff]
  %v271 = vld [vmem:[%s0 + $0x748] sm:$0xff]
  %v272 = vld [vmem:[%s0 + $0x750] sm:$0xff]
  %v273 = vld [vmem:[%s0 + $0x758] sm:$0xff]
  %v274 = vld [vmem:[%s0 + $0x760] sm:$0xff]
  %v275 = vld [vmem:[%s0 + $0x768] sm:$0xff]
  %v276 = vld [vmem:[%s0 + $0x770] sm:$0xff]
  %v277 = vld [vmem:[%s0 + $0x778] sm:$0xff]
  %v278 = vld [vmem:[%s0 + $0x780] sm:$0xff]
  %v279 = vld [vmem:[%s0 + $0x788] sm:$0xff]
  %v280 = vld [vmem:[%s0 + $0x790] sm:$0xff]
  %v281 = vld [vmem:[%s0 + $0x798] sm:$0xff]
  %v282 = vld [vmem:[%s0 + $0x7a0] sm:$0xff]
  %v283 = vld [vmem:[%s0 + $0x7a8] sm:$0xff]
  %v284 = vld [vmem:[%s0 + $0x7b0] sm:$0xff]
  %v285 = vld [vmem:[%s0 + $0x7b8] sm:$0xff]
  %v286 = vld [vmem:[%s0 + $0x7c0] sm:$0xff]
  %v287 = vld [vmem:[%s0 + $0x7c8] sm:$0xff]
  %v288 = vld [vmem:[%s0 + $0x7d0] sm:$0xff]
  %v289 = vld [vmem:[%s0 + $0x7d8] sm:$0xff]
  %v290 = vld [vmem:[%s0 + $0x7e0] sm:$0xff]
  %v291 = vld [vmem:[%s0 + $0x7e8] sm:$0xff]
  %v292 = vld [vmem:[%s0 + $0x7f0] sm:$0xff]
  %v293 = vld [vmem:[%s0 + $0x7f8] sm:$0xff]
  %v294 = vld [vmem:[%s0 + $0x800] sm:$0xff]
  %v295 = vld [vmem:[%s0 + $0x808] sm:$0xff]
  %v296 = vld [vmem:[%s0 + $0x810] sm:$0xff]
  %v297 = vld [vmem:[%s0 + $0x818] sm:$0xff]
  %v298 = vld [vmem:[%s0 + $0x820] sm:$0xff]
  %v299 = vld [vmem:[%s0 + $0x828] sm:$0xff]
  %v300 = vld [vmem:[%s0 + $0x830] sm:$0xff]
  %v301 = vld [vmem:[%s0 + $0x838] sm:$0xff]
  %v302 = vld [vmem:[%s0 + $0x840] sm:$0xff]
  %v303 = vld [vmem:[%s0 + $0x848] sm:$0xff]
  %v304 = vld [vmem:[%s0 + $0x850] sm:$0xff]
  %v305 = vld [vmem:[%s0 + $0x858] sm:$0xff]
  %v306 = vld [vmem:[%s0 + $0x860] sm:$0xff]
  %v307 = vld [vmem:[%s0 + $0x868] sm:$0xff]
  %v308 = vld [vmem:[%s0 + $0x870] sm:$0xff]
  %v309 = vld [vmem:[%s0 + $0x878] sm:$0xff]
  %v310 = vld [vmem:[%s0 + $0x880] sm:$0xff]
  %v311 = vld [vmem:[%s0 + $0x888] sm:$0xff]
  %v312 = vld [vmem:[%s0 + $0x890] sm:$0xff]
  %v313 = vld [vmem:[%s0 + $0x898] sm:$0xff]
  %v314 = vld [vmem:[%s0 + $0x8a0] sm:$0xff]
  %v315 = vld [vmem:[%s0 + $0x8a8] sm:$0xff]
  %v316 = vld [vmem:[%s0 + $0x8b0] sm:$0xff]
  %v317 = vld [vmem:[%s0 + $0x8b8] sm:$0xff]
  %v318 = vld [vmem:[%s0 + $0x8c0] sm:$0xff]
  %v319 = vld [vmem:[%s0 + $0x8c8] sm:$0xff]
  %v320 = vld [vmem:[%s0 + $0x8d0] sm:$0xff]
  %v321 = vld [vmem:[%s0 + $0x8d8] sm:$0xff]
  %v322 = vld [vmem:[%s0 + $0x8e0] sm:$0xff]
  %v323 = vld [vmem:[%s0 + $0x8e8] sm:$0xff]
  %v324 = vld [vmem:[%s0 + $0x8f0] sm:$0xff]
  %v325 = vld [vmem:[%s0 + $0x8f8] sm:$0xff]
  %v326 = vld [vmem:[%s1] sm:$0xff]
  %v327 = vld [vmem:[%s1 + $0x8] sm:$0x1]
  %vm328 = vcmask 72704
  %v330 = vsel %vm328, %v38, 0
  %v333 = vsel %vm328, %v39, 0
  %v336 = vsel %vm328, %v40, 0
  %v339 = vsel %vm328, %v41, 0
  %v342 = vsel %vm328, %v42, 0
  %v345 = vsel %vm328, %v43, 0
  %v348 = vsel %vm328, %v44, 0
  %v351 = vsel %vm328, %v45, 0
  %v354 = vsel %vm328, %v46, 0
  %v357 = vsel %vm328, %v47, 0
  %v360 = vsel %vm328, %v48, 0
  %v363 = vsel %vm328, %v49, 0
  %v366 = vsel %vm328, %v50, 0
  %v369 = vsel %vm328, %v51, 0
  %v372 = vsel %vm328, %v52, 0
  %v375 = vsel %vm328, %v53, 0
  %v378 = vsel %vm328, %v54, 0
  %v381 = vsel %vm328, %v55, 0
  %v384 = vsel %vm328, %v56, 0
  %v387 = vsel %vm328, %v57, 0
  %v390 = vsel %vm328, %v58, 0
  %v393 = vsel %vm328, %v59, 0
  %v396 = vsel %vm328, %v60, 0
  %v399 = vsel %vm328, %v61, 0
  %v402 = vsel %vm328, %v62, 0
  %v405 = vsel %vm328, %v63, 0
  %v408 = vsel %vm328, %v64, 0
  %v411 = vsel %vm328, %v65, 0
  %v414 = vsel %vm328, %v66, 0
  %v417 = vsel %vm328, %v67, 0
  %v420 = vsel %vm328, %v68, 0
  %v423 = vsel %vm328, %v69, 0
  %v426 = vsel %vm328, %v70, 0
  %v429 = vsel %vm328, %v71, 0
  %v432 = vsel %vm328, %v72, 0
  %v435 = vsel %vm328, %v73, 0
  %v438 = vsel %vm328, %v74, 0
  %v441 = vsel %vm328, %v75, 0
  %v444 = vsel %vm328, %v76, 0
  %v447 = vsel %vm328, %v77, 0
  %v450 = vsel %vm328, %v78, 0
  %v453 = vsel %vm328, %v79, 0
  %v456 = vsel %vm328, %v80, 0
  %v459 = vsel %vm328, %v81, 0
  %v462 = vsel %vm328, %v82, 0
  %v465 = vsel %vm328, %v83, 0
  %v468 = vsel %vm328, %v84, 0
  %v471 = vsel %vm328, %v85, 0
  %v474 = vsel %vm328, %v86, 0
  %v477 = vsel %vm328, %v87, 0
  %v480 = vsel %vm328, %v88, 0
  %v483 = vsel %vm328, %v89, 0
  %v486 = vsel %vm328, %v90, 0
  %v489 = vsel %vm328, %v91, 0
  %v492 = vsel %vm328, %v92, 0
  %v495 = vsel %vm328, %v93, 0
  %v498 = vsel %vm328, %v94, 0
  %v501 = vsel %vm328, %v95, 0
  %v504 = vsel %vm328, %v96, 0
  %v507 = vsel %vm328, %v97, 0
  %v510 = vsel %vm328, %v98, 0
  %v513 = vsel %vm328, %v99, 0
  %v516 = vsel %vm328, %v100, 0
  %v519 = vsel %vm328, %v101, 0
  %v522 = vsel %vm328, %v102, 0
  %v525 = vsel %vm328, %v103, 0
  %v528 = vsel %vm328, %v104, 0
  %v531 = vsel %vm328, %v105, 0
  %v534 = vsel %vm328, %v106, 0
  %v537 = vsel %vm328, %v107, 0
  %v540 = vsel %vm328, %v108, 0
  %v543 = vsel %vm328, %v109, 0
  %v546 = vsel %vm328, %v110, 0
  %v549 = vsel %vm328, %v111, 0
  %v552 = vsel %vm328, %v112, 0
  %v555 = vsel %vm328, %v113, 0
  %v558 = vsel %vm328, %v114, 0
  %v561 = vsel %vm328, %v115, 0
  %v564 = vsel %vm328, %v116, 0
  %v567 = vsel %vm328, %v117, 0
  %v570 = vsel %vm328, %v118, 0
  %v573 = vsel %vm328, %v119, 0
  %v576 = vsel %vm328, %v120, 0
  %v579 = vsel %vm328, %v121, 0
  %v582 = vsel %vm328, %v122, 0
  %v585 = vsel %vm328, %v123, 0
  %v588 = vsel %vm328, %v124, 0
  %v591 = vsel %vm328, %v125, 0
  %v594 = vsel %vm328, %v126, 0
  %v597 = vsel %vm328, %v127, 0
  %v600 = vsel %vm328, %v128, 0
  %v603 = vsel %vm328, %v129, 0
  %v606 = vsel %vm328, %v130, 0
  %v609 = vsel %vm328, %v131, 0
  %v612 = vsel %vm328, %v132, 0
  %v615 = vsel %vm328, %v133, 0
  %v618 = vsel %vm328, %v134, 0
  %v621 = vsel %vm328, %v135, 0
  %v624 = vsel %vm328, %v136, 0
  %v627 = vsel %vm328, %v137, 0
  %v630 = vsel %vm328, %v138, 0
  %v633 = vsel %vm328, %v139, 0
  %v636 = vsel %vm328, %v140, 0
  %v639 = vsel %vm328, %v141, 0
  %v642 = vsel %vm328, %v142, 0
  %v645 = vsel %vm328, %v143, 0
  %v648 = vsel %vm328, %v144, 0
  %v651 = vsel %vm328, %v145, 0
  %v654 = vsel %vm328, %v146, 0
  %v657 = vsel %vm328, %v147, 0
  %v660 = vsel %vm328, %v148, 0
  %v663 = vsel %vm328, %v149, 0
  %v666 = vsel %vm328, %v150, 0
  %v669 = vsel %vm328, %v151, 0
  %v672 = vsel %vm328, %v152, 0
  %v675 = vsel %vm328, %v153, 0
  %v678 = vsel %vm328, %v154, 0
  %v681 = vsel %vm328, %v155, 0
  %v684 = vsel %vm328, %v156, 0
  %v687 = vsel %vm328, %v157, 0
  %v690 = vsel %vm328, %v158, 0
  %v693 = vsel %vm328, %v159, 0
  %v696 = vsel %vm328, %v160, 0
  %v699 = vsel %vm328, %v161, 0
  %v702 = vsel %vm328, %v162, 0
  %v705 = vsel %vm328, %v163, 0
  %v708 = vsel %vm328, %v164, 0
  %v711 = vsel %vm328, %v165, 0
  %v714 = vsel %vm328, %v166, 0
  %v717 = vsel %vm328, %v167, 0
  %v720 = vsel %vm328, %v168, 0
  %v723 = vsel %vm328, %v169, 0
  %v726 = vsel %vm328, %v170, 0
  %v729 = vsel %vm328, %v171, 0
  %v732 = vsel %vm328, %v172, 0
  %v735 = vsel %vm328, %v173, 0
  %v738 = vsel %vm328, %v174, 0
  %v741 = vsel %vm328, %v175, 0
  %v744 = vsel %vm328, %v176, 0
  %v747 = vsel %vm328, %v177, 0
  %v750 = vsel %vm328, %v178, 0
  %v753 = vsel %vm328, %v179, 0
  %v756 = vsel %vm328, %v180, 0
  %v759 = vsel %vm328, %v181, 0
  %v762 = vsel %vm328, %v182, 0
  %v765 = vsel %vm328, %v183, 0
  %v768 = vsel %vm328, %v184, 0
  %v771 = vsel %vm328, %v185, 0
  %v774 = vsel %vm328, %v186, 0
  %v777 = vsel %vm328, %v187, 0
  %v780 = vsel %vm328, %v188, 0
  %v783 = vsel %vm328, %v189, 0
  %v786 = vsel %vm328, %v190, 0
  %v789 = vsel %vm328, %v191, 0
  %v792 = vsel %vm328, %v192, 0
  %v795 = vsel %vm328, %v193, 0
  %v798 = vsel %vm328, %v194, 0
  %v801 = vsel %vm328, %v195, 0
  %v804 = vsel %vm328, %v196, 0
  %v807 = vsel %vm328, %v197, 0
  %v810 = vsel %vm328, %v198, 0
  %v813 = vsel %vm328, %v199, 0
  %v816 = vsel %vm328, %v200, 0
  %v819 = vsel %vm328, %v201, 0
  %v822 = vsel %vm328, %v202, 0
  %v825 = vsel %vm328, %v203, 0
  %v828 = vsel %vm328, %v204, 0
  %v831 = vsel %vm328, %v205, 0
  %v834 = vsel %vm328, %v206, 0
  %v837 = vsel %vm328, %v207, 0
  %v840 = vsel %vm328, %v208, 0
  %v843 = vsel %vm328, %v209, 0
  %v846 = vsel %vm328, %v210, 0
  %v849 = vsel %vm328, %v211, 0
  %v852 = vsel %vm328, %v212, 0
  %v855 = vsel %vm328, %v213, 0
  %v858 = vsel %vm328, %v214, 0
  %v861 = vsel %vm328, %v215, 0
  %v864 = vsel %vm328, %v216, 0
  %v867 = vsel %vm328, %v217, 0
  %v870 = vsel %vm328, %v218, 0
  %v873 = vsel %vm328, %v219, 0
  %v876 = vsel %vm328, %v220, 0
  %v879 = vsel %vm328, %v221, 0
  %v882 = vsel %vm328, %v222, 0
  %v885 = vsel %vm328, %v223, 0
  %v888 = vsel %vm328, %v224, 0
  %v891 = vsel %vm328, %v225, 0
  %v894 = vsel %vm328, %v226, 0
  %v897 = vsel %vm328, %v227, 0
  %v900 = vsel %vm328, %v228, 0
  %v903 = vsel %vm328, %v229, 0
  %v906 = vsel %vm328, %v230, 0
  %v909 = vsel %vm328, %v231, 0
  %v912 = vsel %vm328, %v232, 0
  %v915 = vsel %vm328, %v233, 0
  %v918 = vsel %vm328, %v234, 0
  %v921 = vsel %vm328, %v235, 0
  %v924 = vsel %vm328, %v236, 0
  %v927 = vsel %vm328, %v237, 0
  %v930 = vsel %vm328, %v238, 0
  %v933 = vsel %vm328, %v239, 0
  %v936 = vsel %vm328, %v240, 0
  %v939 = vsel %vm328, %v241, 0
  %v942 = vsel %vm328, %v242, 0
  %v945 = vsel %vm328, %v243, 0
  %v948 = vsel %vm328, %v244, 0
  %v951 = vsel %vm328, %v245, 0
  %v954 = vsel %vm328, %v246, 0
  %v957 = vsel %vm328, %v247, 0
  %v960 = vsel %vm328, %v248, 0
  %v963 = vsel %vm328, %v249, 0
  %v966 = vsel %vm328, %v250, 0
  %v969 = vsel %vm328, %v251, 0
  %v972 = vsel %vm328, %v252, 0
  %v975 = vsel %vm328, %v253, 0
  %v978 = vsel %vm328, %v254, 0
  %v981 = vsel %vm328, %v255, 0
  %v984 = vsel %vm328, %v256, 0
  %v987 = vsel %vm328, %v257, 0
  %v990 = vsel %vm328, %v258, 0
  %v993 = vsel %vm328, %v259, 0
  %v996 = vsel %vm328, %v260, 0
  %v999 = vsel %vm328, %v261, 0
  %v1002 = vsel %vm328, %v262, 0
  %v1005 = vsel %vm328, %v263, 0
  %v1008 = vsel %vm328, %v264, 0
  %v1011 = vsel %vm328, %v265, 0
  %v1014 = vsel %vm328, %v266, 0
  %v1017 = vsel %vm328, %v267, 0
  %v1020 = vsel %vm328, %v268, 0
  %v1023 = vsel %vm328, %v269, 0
  %v1026 = vsel %vm328, %v270, 0
  %v1029 = vsel %vm328, %v271, 0
  %v1032 = vsel %vm328, %v272, 0
  %v1035 = vsel %vm328, %v273, 0
  %v1038 = vsel %vm328, %v274, 0
  %v1041 = vsel %vm328, %v275, 0
  %v1044 = vsel %vm328, %v276, 0
  %v1047 = vsel %vm328, %v277, 0
  %v1050 = vsel %vm328, %v278, 0
  %v1053 = vsel %vm328, %v279, 0
  %v1056 = vsel %vm328, %v280, 0
  %v1059 = vsel %vm328, %v281, 0
  %v1062 = vsel %vm328, %v282, 0
  %v1065 = vsel %vm328, %v283, 0
  %v1068 = vsel %vm328, %v284, 0
  %v1071 = vsel %vm328, %v285, 0
  %v1074 = vsel %vm328, %v286, 0
  %v1077 = vsel %vm328, %v287, 0
  %v1080 = vsel %vm328, %v288, 0
  %v1083 = vsel %vm328, %v289, 0
  %v1086 = vsel %vm328, %v290, 0
  %v1089 = vsel %vm328, %v291, 0
  %v1092 = vsel %vm328, %v292, 0
  %v1095 = vsel %vm328, %v293, 0
  %v1098 = vsel %vm328, %v294, 0
  %v1101 = vsel %vm328, %v295, 0
  %v1104 = vsel %vm328, %v296, 0
  %v1107 = vsel %vm328, %v297, 0
  %v1110 = vsel %vm328, %v298, 0
  %v1113 = vsel %vm328, %v299, 0
  %v1116 = vsel %vm328, %v300, 0
  %v1119 = vsel %vm328, %v301, 0
  %v1122 = vsel %vm328, %v302, 0
  %v1125 = vsel %vm328, %v303, 0
  %v1128 = vsel %vm328, %v304, 0
  %v1131 = vsel %vm328, %v305, 0
  %v1134 = vsel %vm328, %v306, 0
  %v1137 = vsel %vm328, %v307, 0
  %v1140 = vsel %vm328, %v308, 0
  %v1143 = vsel %vm328, %v309, 0
  %v1146 = vsel %vm328, %v310, 0
  %v1149 = vsel %vm328, %v311, 0
  %v1152 = vsel %vm328, %v312, 0
  %v1155 = vsel %vm328, %v313, 0
  %v1158 = vsel %vm328, %v314, 0
  %v1161 = vsel %vm328, %v315, 0
  %v1164 = vsel %vm328, %v316, 0
  %v1167 = vsel %vm328, %v317, 0
  %v1170 = vsel %vm328, %v318, 0
  %v1173 = vsel %vm328, %v319, 0
  %v1176 = vsel %vm328, %v320, 0
  %v1179 = vsel %vm328, %v321, 0
  %v1182 = vsel %vm328, %v322, 0
  %v1185 = vsel %vm328, %v323, 0
  %v1188 = vsel %vm328, %v324, 0
  %v1191 = vsel %vm328, %v325, 0
  %vm1193 = vcmask 1040384
  %v1195 = vsel %vm1193, %v327, 0
  %1197 = vmatprep.subr.mxu0 0.0
  %1198 = vmatpush1.msra.mxu0 0.0
  %1199 = vmatprep.subr.mxu0 0.0
  %1200 = vmatpush1.msra.mxu0 0.0
  %1201 = vmatprep.subr.mxu0 0.0
  %1202 = vmatpush1.msra.mxu0 0.0
  %1203 = vmatprep.subr.mxu0 0.0
  %1204 = vmatpush1.msra.mxu0 0.0
  %1205 = vmatprep.subr.mxu0 0.0
  %1206 = vmatpush1.msra.mxu0 0.0
  %1207 = vmatprep.subr.mxu0 0.0
  %1208 = vmatpush1.msra.mxu0 0.0
  %1209 = vmatprep.subr.mxu0 0.0
  %1210 = vmatpush1.msra.mxu0 0.0
  %1211 = vmatprep.subr.mxu0 0.0
  %1212 = vmatpush1.msra.mxu0 0.0
  %1213 = vmatprep.subr.mxu0 0.0
  %1214 = vmatpush1.msra.mxu0 0.0
  %1215 = vmatprep.subr.mxu0 0.0
  %1216 = vmatpush1.msra.mxu0 0.0
  %1217 = vmatprep.subr.mxu0 0.0
  %1218 = vmatpush1.msra.mxu0 0.0
  %1219 = vmatprep.subr.mxu0 0.0
  %1220 = vmatpush1.msra.mxu0 0.0
  %1221 = vmatprep.subr.mxu0 0.0
  %1222 = vmatpush1.msra.mxu0 0.0
  %1223 = vmatprep.subr.mxu0 0.0
  %1224 = vmatpush1.msra.mxu0 0.0
  %1225 = vmatprep.subr.mxu0 0.0
  %1226 = vmatpush1.msra.mxu0 %v1195
  %1227 = vmatprep.subr.mxu0 0.0
  %1228 = vmatpush1.msra.mxu0 %v326
  %1229 = vmatprep.subr.mxu0 0.0
  %1230 = vmatpush2.msra.mxu0 0.0
  %1231 = vmatprep.subr.mxu0 0.0
  %1232 = vmatpush2.msra.mxu0 0.0
  %1233 = vmatprep.subr.mxu0 0.0
  %1234 = vmatpush2.msra.mxu0 0.0
  %1235 = vmatprep.subr.mxu0 0.0
  %1236 = vmatpush2.msra.mxu0 0.0
  %1237 = vmatprep.subr.mxu0 0.0
  %1238 = vmatpush2.msra.mxu0 0.0
  %1239 = vmatprep.subr.mxu0 0.0
  %1240 = vmatpush2.msra.mxu0 0.0
  %1241 = vmatprep.subr.mxu0 0.0
  %1242 = vmatpush2.msra.mxu0 0.0
  %1243 = vmatprep.subr.mxu0 0.0
  %1244 = vmatpush2.msra.mxu0 0.0
  %1245 = vmatprep.subr.mxu0 0.0
  %1246 = vmatpush2.msra.mxu0 0.0
  %1247 = vmatprep.subr.mxu0 0.0
  %1248 = vmatpush2.msra.mxu0 0.0
  %1249 = vmatprep.subr.mxu0 0.0
  %1250 = vmatpush2.msra.mxu0 0.0
  %1251 = vmatprep.subr.mxu0 0.0
  %1252 = vmatpush2.msra.mxu0 0.0
  %1253 = vmatprep.subr.mxu0 0.0
  %1254 = vmatpush2.msra.mxu0 0.0
  %1255 = vmatprep.subr.mxu0 0.0
  %1256 = vmatpush2.msra.mxu0 0.0
  %1257 = vmatprep.subr.mxu0 0.0
  %1258 = vmatpush2.msra.mxu0 0.0
  %1259 = vmatprep.subr.mxu0 0.0
  %1260 = vmatpush2.msra.mxu0 0.0
  %1261 = vmatprep.mubr.f32.mxu0 0.0
  %1262 = vmatmul.mubr.f32.gmra.mxu0 %v330
  %v1263 = vpop.f32.mrf.mxu0
  %v1264 = vadd.f32 0.0, %v1263
  %v1265 = vpop.f32.mrf.mxu0
  %1266 = vmatprep.mubr.f32.mxu0 0.0
  %1267 = vmatmul.mubr.f32.gmra.mxu0 %v333
  %v1268 = vpop.f32.mrf.mxu0
  %v1269 = vadd.f32 0.0, %v1268
  %v1270 = vpop.f32.mrf.mxu0
  %1271 = vmatprep.mubr.f32.mxu0 0.0
  %1272 = vmatmul.mubr.f32.gmra.mxu0 %v336
  %v1273 = vpop.f32.mrf.mxu0
  %v1274 = vadd.f32 0.0, %v1273
  %v1275 = vpop.f32.mrf.mxu0
  %1276 = vmatprep.mubr.f32.mxu0 0.0
  %1277 = vmatmul.mubr.f32.gmra.mxu0 %v339
  %v1278 = vpop.f32.mrf.mxu0
  %v1279 = vadd.f32 0.0, %v1278
  %v1280 = vpop.f32.mrf.mxu0
  %1281 = vmatprep.mubr.f32.mxu0 0.0
  %1282 = vmatmul.mubr.f32.gmra.mxu0 %v342
  %v1283 = vpop.f32.mrf.mxu0
  %v1284 = vadd.f32 0.0, %v1283
  %v1285 = vpop.f32.mrf.mxu0
  %1286 = vmatprep.mubr.f32.mxu0 0.0
  %1287 = vmatmul.mubr.f32.gmra.mxu0 %v345
  %v1288 = vpop.f32.mrf.mxu0
  %v1289 = vadd.f32 0.0, %v1288
  %v1290 = vpop.f32.mrf.mxu0
  %1291 = vmatprep.mubr.f32.mxu0 0.0
  %1292 = vmatmul.mubr.f32.gmra.mxu0 %v348
  %v1293 = vpop.f32.mrf.mxu0
  %v1294 = vadd.f32 0.0, %v1293
  %v1295 = vpop.f32.mrf.mxu0
  %1296 = vmatprep.mubr.f32.mxu0 0.0
  %1297 = vmatmul.mubr.f32.gmra.mxu0 %v351
  %v1298 = vpop.f32.mrf.mxu0
  %v1299 = vadd.f32 0.0, %v1298
  %v1300 = vpop.f32.mrf.mxu0
  %1301 = vmatprep.mubr.f32.mxu0 0.0
  %1302 = vmatmul.mubr.f32.gmra.mxu0 %v354
  %v1303 = vpop.f32.mrf.mxu0
  %v1304 = vadd.f32 0.0, %v1303
  %v1305 = vpop.f32.mrf.mxu0
  %1306 = vmatprep.mubr.f32.mxu0 0.0
  %1307 = vmatmul.mubr.f32.gmra.mxu0 %v357
  %v1308 = vpop.f32.mrf.mxu0
  %v1309 = vadd.f32 0.0, %v1308
  %v1310 = vpop.f32.mrf.mxu0
  %1311 = vmatprep.mubr.f32.mxu0 0.0
  %1312 = vmatmul.mubr.f32.gmra.mxu0 %v360
  %v1313 = vpop.f32.mrf.mxu0
  %v1314 = vadd.f32 0.0, %v1313
  %v1315 = vpop.f32.mrf.mxu0
  %1316 = vmatprep.mubr.f32.mxu0 0.0
  %1317 = vmatmul.mubr.f32.gmra.mxu0 %v363
  %v1318 = vpop.f32.mrf.mxu0
  %v1319 = vadd.f32 0.0, %v1318
  %v1320 = vpop.f32.mrf.mxu0
  %1321 = vmatprep.mubr.f32.mxu0 0.0
  %1322 = vmatmul.mubr.f32.gmra.mxu0 %v366
  %v1323 = vpop.f32.mrf.mxu0
  %v1324 = vadd.f32 0.0, %v1323
  %v1325 = vpop.f32.mrf.mxu0
  %1326 = vmatprep.mubr.f32.mxu0 0.0
  %1327 = vmatmul.mubr.f32.gmra.mxu0 %v369
  %v1328 = vpop.f32.mrf.mxu0
  %v1329 = vadd.f32 0.0, %v1328
  %v1330 = vpop.f32.mrf.mxu0
  %1331 = vmatprep.mubr.f32.mxu0 0.0
  %1332 = vmatmul.mubr.f32.gmra.mxu0 %v372
  %v1333 = vpop.f32.mrf.mxu0
  %v1334 = vadd.f32 0.0, %v1333
  %v1335 = vpop.f32.mrf.mxu0
  %1336 = vmatprep.mubr.f32.mxu0 0.0
  %1337 = vmatmul.mubr.f32.gmra.mxu0 %v375
  %v1338 = vpop.f32.mrf.mxu0
  %v1339 = vadd.f32 0.0, %v1338
  %v1340 = vpop.f32.mrf.mxu0
  %1341 = vmatprep.mubr.f32.mxu0 0.0
  %1342 = vmatmul.mubr.f32.gmra.mxu0 %v378
  %v1343 = vpop.f32.mrf.mxu0
  %v1344 = vadd.f32 0.0, %v1343
  %v1345 = vpop.f32.mrf.mxu0
  %1346 = vmatprep.mubr.f32.mxu0 0.0
  %1347 = vmatmul.mubr.f32.gmra.mxu0 %v381
  %v1348 = vpop.f32.mrf.mxu0
  %v1349 = vadd.f32 0.0, %v1348
  %v1350 = vpop.f32.mrf.mxu0
  %1351 = vmatprep.mubr.f32.mxu0 0.0
  %1352 = vmatmul.mubr.f32.gmra.mxu0 %v384
  %v1353 = vpop.f32.mrf.mxu0
  %v1354 = vadd.f32 0.0, %v1353
  %v1355 = vpop.f32.mrf.mxu0
  %1356 = vmatprep.mubr.f32.mxu0 0.0
  %1357 = vmatmul.mubr.f32.gmra.mxu0 %v387
  %v1358 = vpop.f32.mrf.mxu0
  %v1359 = vadd.f32 0.0, %v1358
  %v1360 = vpop.f32.mrf.mxu0
  %1361 = vmatprep.mubr.f32.mxu0 0.0
  %1362 = vmatmul.mubr.f32.gmra.mxu0 %v390
  %v1363 = vpop.f32.mrf.mxu0
  %v1364 = vadd.f32 0.0, %v1363
  %v1365 = vpop.f32.mrf.mxu0
  %1366 = vmatprep.mubr.f32.mxu0 0.0
  %1367 = vmatmul.mubr.f32.gmra.mxu0 %v393
  %v1368 = vpop.f32.mrf.mxu0
  %v1369 = vadd.f32 0.0, %v1368
  %v1370 = vpop.f32.mrf.mxu0
  %1371 = vmatprep.mubr.f32.mxu0 0.0
  %1372 = vmatmul.mubr.f32.gmra.mxu0 %v396
  %v1373 = vpop.f32.mrf.mxu0
  %v1374 = vadd.f32 0.0, %v1373
  %v1375 = vpop.f32.mrf.mxu0
  %1376 = vmatprep.mubr.f32.mxu0 0.0
  %1377 = vmatmul.mubr.f32.gmra.mxu0 %v399
  %v1378 = vpop.f32.mrf.mxu0
  %v1379 = vadd.f32 0.0, %v1378
  %v1380 = vpop.f32.mrf.mxu0
  %1381 = vmatprep.mubr.f32.mxu0 0.0
  %1382 = vmatmul.mubr.f32.gmra.mxu0 %v402
  %v1383 = vpop.f32.mrf.mxu0
  %v1384 = vadd.f32 0.0, %v1383
  %v1385 = vpop.f32.mrf.mxu0
  %1386 = vmatprep.mubr.f32.mxu0 0.0
  %1387 = vmatmul.mubr.f32.gmra.mxu0 %v405
  %v1388 = vpop.f32.mrf.mxu0
  %v1389 = vadd.f32 0.0, %v1388
  %v1390 = vpop.f32.mrf.mxu0
  %1391 = vmatprep.mubr.f32.mxu0 0.0
  %1392 = vmatmul.mubr.f32.gmra.mxu0 %v408
  %v1393 = vpop.f32.mrf.mxu0
  %v1394 = vadd.f32 0.0, %v1393
  %v1395 = vpop.f32.mrf.mxu0
  %1396 = vmatprep.mubr.f32.mxu0 0.0
  %1397 = vmatmul.mubr.f32.gmra.mxu0 %v411
  %v1398 = vpop.f32.mrf.mxu0
  %v1399 = vadd.f32 0.0, %v1398
  %v1400 = vpop.f32.mrf.mxu0
  %1401 = vmatprep.mubr.f32.mxu0 0.0
  %1402 = vmatmul.mubr.f32.gmra.mxu0 %v414
  %v1403 = vpop.f32.mrf.mxu0
  %v1404 = vadd.f32 0.0, %v1403
  %v1405 = vpop.f32.mrf.mxu0
  %1406 = vmatprep.mubr.f32.mxu0 0.0
  %1407 = vmatmul.mubr.f32.gmra.mxu0 %v417
  %v1408 = vpop.f32.mrf.mxu0
  %v1409 = vadd.f32 0.0, %v1408
  %v1410 = vpop.f32.mrf.mxu0
  %1411 = vmatprep.mubr.f32.mxu0 0.0
  %1412 = vmatmul.mubr.f32.gmra.mxu0 %v420
  %v1413 = vpop.f32.mrf.mxu0
  %v1414 = vadd.f32 0.0, %v1413
  %v1415 = vpop.f32.mrf.mxu0
  %1416 = vmatprep.mubr.f32.mxu0 0.0
  %1417 = vmatmul.mubr.f32.gmra.mxu0 %v423
  %v1418 = vpop.f32.mrf.mxu0
  %v1419 = vadd.f32 0.0, %v1418
  %v1420 = vpop.f32.mrf.mxu0
  %1421 = vmatprep.mubr.f32.mxu0 0.0
  %1422 = vmatmul.mubr.f32.gmra.mxu0 %v426
  %v1423 = vpop.f32.mrf.mxu0
  %v1424 = vadd.f32 0.0, %v1423
  %v1425 = vpop.f32.mrf.mxu0
  %1426 = vmatprep.mubr.f32.mxu0 0.0
  %1427 = vmatmul.mubr.f32.gmra.mxu0 %v429
  %v1428 = vpop.f32.mrf.mxu0
  %v1429 = vadd.f32 0.0, %v1428
  %v1430 = vpop.f32.mrf.mxu0
  %1431 = vmatprep.mubr.f32.mxu0 0.0
  %1432 = vmatmul.mubr.f32.gmra.mxu0 %v432
  %v1433 = vpop.f32.mrf.mxu0
  %v1434 = vadd.f32 0.0, %v1433
  %v1435 = vpop.f32.mrf.mxu0
  %1436 = vmatprep.mubr.f32.mxu0 0.0
  %1437 = vmatmul.mubr.f32.gmra.mxu0 %v435
  %v1438 = vpop.f32.mrf.mxu0
  %v1439 = vadd.f32 0.0, %v1438
  %v1440 = vpop.f32.mrf.mxu0
  %1441 = vmatprep.mubr.f32.mxu0 0.0
  %1442 = vmatmul.mubr.f32.gmra.mxu0 %v438
  %v1443 = vpop.f32.mrf.mxu0
  %v1444 = vadd.f32 0.0, %v1443
  %v1445 = vpop.f32.mrf.mxu0
  %1446 = vmatprep.mubr.f32.mxu0 0.0
  %1447 = vmatmul.mubr.f32.gmra.mxu0 %v441
  %v1448 = vpop.f32.mrf.mxu0
  %v1449 = vadd.f32 0.0, %v1448
  %v1450 = vpop.f32.mrf.mxu0
  %1451 = vmatprep.mubr.f32.mxu0 0.0
  %1452 = vmatmul.mubr.f32.gmra.mxu0 %v444
  %v1453 = vpop.f32.mrf.mxu0
  %v1454 = vadd.f32 0.0, %v1453
  %v1455 = vpop.f32.mrf.mxu0
  %1456 = vmatprep.mubr.f32.mxu0 0.0
  %1457 = vmatmul.mubr.f32.gmra.mxu0 %v447
  %v1458 = vpop.f32.mrf.mxu0
  %v1459 = vadd.f32 0.0, %v1458
  %v1460 = vpop.f32.mrf.mxu0
  %1461 = vmatprep.mubr.f32.mxu0 0.0
  %1462 = vmatmul.mubr.f32.gmra.mxu0 %v450
  %v1463 = vpop.f32.mrf.mxu0
  %v1464 = vadd.f32 0.0, %v1463
  %v1465 = vpop.f32.mrf.mxu0
  %1466 = vmatprep.mubr.f32.mxu0 0.0
  %1467 = vmatmul.mubr.f32.gmra.mxu0 %v453
  %v1468 = vpop.f32.mrf.mxu0
  %v1469 = vadd.f32 0.0, %v1468
  %v1470 = vpop.f32.mrf.mxu0
  %1471 = vmatprep.mubr.f32.mxu0 0.0
  %1472 = vmatmul.mubr.f32.gmra.mxu0 %v456
  %v1473 = vpop.f32.mrf.mxu0
  %v1474 = vadd.f32 0.0, %v1473
  %v1475 = vpop.f32.mrf.mxu0
  %1476 = vmatprep.mubr.f32.mxu0 0.0
  %1477 = vmatmul.mubr.f32.gmra.mxu0 %v459
  %v1478 = vpop.f32.mrf.mxu0
  %v1479 = vadd.f32 0.0, %v1478
  %v1480 = vpop.f32.mrf.mxu0
  %1481 = vmatprep.mubr.f32.mxu0 0.0
  %1482 = vmatmul.mubr.f32.gmra.mxu0 %v462
  %v1483 = vpop.f32.mrf.mxu0
  %v1484 = vadd.f32 0.0, %v1483
  %v1485 = vpop.f32.mrf.mxu0
  %1486 = vmatprep.mubr.f32.mxu0 0.0
  %1487 = vmatmul.mubr.f32.gmra.mxu0 %v465
  %v1488 = vpop.f32.mrf.mxu0
  %v1489 = vadd.f32 0.0, %v1488
  %v1490 = vpop.f32.mrf.mxu0
  %1491 = vmatprep.mubr.f32.mxu0 0.0
  %1492 = vmatmul.mubr.f32.gmra.mxu0 %v468
  %v1493 = vpop.f32.mrf.mxu0
  %v1494 = vadd.f32 0.0, %v1493
  %v1495 = vpop.f32.mrf.mxu0
  %1496 = vmatprep.mubr.f32.mxu0 0.0
  %1497 = vmatmul.mubr.f32.gmra.mxu0 %v471
  %v1498 = vpop.f32.mrf.mxu0
  %v1499 = vadd.f32 0.0, %v1498
  %v1500 = vpop.f32.mrf.mxu0
  %1501 = vmatprep.mubr.f32.mxu0 0.0
  %1502 = vmatmul.mubr.f32.gmra.mxu0 %v474
  %v1503 = vpop.f32.mrf.mxu0
  %v1504 = vadd.f32 0.0, %v1503
  %v1505 = vpop.f32.mrf.mxu0
  %1506 = vmatprep.mubr.f32.mxu0 0.0
  %1507 = vmatmul.mubr.f32.gmra.mxu0 %v477
  %v1508 = vpop.f32.mrf.mxu0
  %v1509 = vadd.f32 0.0, %v1508
  %v1510 = vpop.f32.mrf.mxu0
  %1511 = vmatprep.mubr.f32.mxu0 0.0
  %1512 = vmatmul.mubr.f32.gmra.mxu0 %v480
  %v1513 = vpop.f32.mrf.mxu0
  %v1514 = vadd.f32 0.0, %v1513
  %v1515 = vpop.f32.mrf.mxu0
  %1516 = vmatprep.mubr.f32.mxu0 0.0
  %1517 = vmatmul.mubr.f32.gmra.mxu0 %v483
  %v1518 = vpop.f32.mrf.mxu0
  %v1519 = vadd.f32 0.0, %v1518
  %v1520 = vpop.f32.mrf.mxu0
  %1521 = vmatprep.mubr.f32.mxu0 0.0
  %1522 = vmatmul.mubr.f32.gmra.mxu0 %v486
  %v1523 = vpop.f32.mrf.mxu0
  %v1524 = vadd.f32 0.0, %v1523
  %v1525 = vpop.f32.mrf.mxu0
  %1526 = vmatprep.mubr.f32.mxu0 0.0
  %1527 = vmatmul.mubr.f32.gmra.mxu0 %v489
  %v1528 = vpop.f32.mrf.mxu0
  %v1529 = vadd.f32 0.0, %v1528
  %v1530 = vpop.f32.mrf.mxu0
  %1531 = vmatprep.mubr.f32.mxu0 0.0
  %1532 = vmatmul.mubr.f32.gmra.mxu0 %v492
  %v1533 = vpop.f32.mrf.mxu0
  %v1534 = vadd.f32 0.0, %v1533
  %v1535 = vpop.f32.mrf.mxu0
  %1536 = vmatprep.mubr.f32.mxu0 0.0
  %1537 = vmatmul.mubr.f32.gmra.mxu0 %v495
  %v1538 = vpop.f32.mrf.mxu0
  %v1539 = vadd.f32 0.0, %v1538
  %v1540 = vpop.f32.mrf.mxu0
  %1541 = vmatprep.mubr.f32.mxu0 0.0
  %1542 = vmatmul.mubr.f32.gmra.mxu0 %v498
  %v1543 = vpop.f32.mrf.mxu0
  %v1544 = vadd.f32 0.0, %v1543
  %v1545 = vpop.f32.mrf.mxu0
  %1546 = vmatprep.mubr.f32.mxu0 0.0
  %1547 = vmatmul.mubr.f32.gmra.mxu0 %v501
  %v1548 = vpop.f32.mrf.mxu0
  %v1549 = vadd.f32 0.0, %v1548
  %v1550 = vpop.f32.mrf.mxu0
  %1551 = vmatprep.mubr.f32.mxu0 0.0
  %1552 = vmatmul.mubr.f32.gmra.mxu0 %v504
  %v1553 = vpop.f32.mrf.mxu0
  %v1554 = vadd.f32 0.0, %v1553
  %v1555 = vpop.f32.mrf.mxu0
  %1556 = vmatprep.mubr.f32.mxu0 0.0
  %1557 = vmatmul.mubr.f32.gmra.mxu0 %v507
  %v1558 = vpop.f32.mrf.mxu0
  %v1559 = vadd.f32 0.0, %v1558
  %v1560 = vpop.f32.mrf.mxu0
  %1561 = vmatprep.mubr.f32.mxu0 0.0
  %1562 = vmatmul.mubr.f32.gmra.mxu0 %v510
  %v1563 = vpop.f32.mrf.mxu0
  %v1564 = vadd.f32 0.0, %v1563
  %v1565 = vpop.f32.mrf.mxu0
  %1566 = vmatprep.mubr.f32.mxu0 0.0
  %1567 = vmatmul.mubr.f32.gmra.mxu0 %v513
  %v1568 = vpop.f32.mrf.mxu0
  %v1569 = vadd.f32 0.0, %v1568
  %v1570 = vpop.f32.mrf.mxu0
  %1571 = vmatprep.mubr.f32.mxu0 0.0
  %1572 = vmatmul.mubr.f32.gmra.mxu0 %v516
  %v1573 = vpop.f32.mrf.mxu0
  %v1574 = vadd.f32 0.0, %v1573
  %v1575 = vpop.f32.mrf.mxu0
  %1576 = vmatprep.mubr.f32.mxu0 0.0
  %1577 = vmatmul.mubr.f32.gmra.mxu0 %v519
  %v1578 = vpop.f32.mrf.mxu0
  %v1579 = vadd.f32 0.0, %v1578
  %v1580 = vpop.f32.mrf.mxu0
  %1581 = vmatprep.mubr.f32.mxu0 0.0
  %1582 = vmatmul.mubr.f32.gmra.mxu0 %v522
  %v1583 = vpop.f32.mrf.mxu0
  %v1584 = vadd.f32 0.0, %v1583
  %v1585 = vpop.f32.mrf.mxu0
  %1586 = vmatprep.mubr.f32.mxu0 0.0
  %1587 = vmatmul.mubr.f32.gmra.mxu0 %v525
  %v1588 = vpop.f32.mrf.mxu0
  %v1589 = vadd.f32 0.0, %v1588
  %v1590 = vpop.f32.mrf.mxu0
  %1591 = vmatprep.mubr.f32.mxu0 0.0
  %1592 = vmatmul.mubr.f32.gmra.mxu0 %v528
  %v1593 = vpop.f32.mrf.mxu0
  %v1594 = vadd.f32 0.0, %v1593
  %v1595 = vpop.f32.mrf.mxu0
  %1596 = vmatprep.mubr.f32.mxu0 0.0
  %1597 = vmatmul.mubr.f32.gmra.mxu0 %v531
  %v1598 = vpop.f32.mrf.mxu0
  %v1599 = vadd.f32 0.0, %v1598
  %v1600 = vpop.f32.mrf.mxu0
  %1601 = vmatprep.mubr.f32.mxu0 0.0
  %1602 = vmatmul.mubr.f32.gmra.mxu0 %v534
  %v1603 = vpop.f32.mrf.mxu0
  %v1604 = vadd.f32 0.0, %v1603
  %v1605 = vpop.f32.mrf.mxu0
  %1606 = vmatprep.mubr.f32.mxu0 0.0
  %1607 = vmatmul.mubr.f32.gmra.mxu0 %v537
  %v1608 = vpop.f32.mrf.mxu0
  %v1609 = vadd.f32 0.0, %v1608
  %v1610 = vpop.f32.mrf.mxu0
  %1611 = vmatprep.mubr.f32.mxu0 0.0
  %1612 = vmatmul.mubr.f32.gmra.mxu0 %v540
  %v1613 = vpop.f32.mrf.mxu0
  %v1614 = vadd.f32 0.0, %v1613
  %v1615 = vpop.f32.mrf.mxu0
  %1616 = vmatprep.mubr.f32.mxu0 0.0
  %1617 = vmatmul.mubr.f32.gmra.mxu0 %v543
  %v1618 = vpop.f32.mrf.mxu0
  %v1619 = vadd.f32 0.0, %v1618
  %v1620 = vpop.f32.mrf.mxu0
  %1621 = vmatprep.mubr.f32.mxu0 0.0
  %1622 = vmatmul.mubr.f32.gmra.mxu0 %v546
  %v1623 = vpop.f32.mrf.mxu0
  %v1624 = vadd.f32 0.0, %v1623
  %v1625 = vpop.f32.mrf.mxu0
  %1626 = vmatprep.mubr.f32.mxu0 0.0
  %1627 = vmatmul.mubr.f32.gmra.mxu0 %v549
  %v1628 = vpop.f32.mrf.mxu0
  %v1629 = vadd.f32 0.0, %v1628
  %v1630 = vpop.f32.mrf.mxu0
  %1631 = vmatprep.mubr.f32.mxu0 0.0
  %1632 = vmatmul.mubr.f32.gmra.mxu0 %v552
  %v1633 = vpop.f32.mrf.mxu0
  %v1634 = vadd.f32 0.0, %v1633
  %v1635 = vpop.f32.mrf.mxu0
  %1636 = vmatprep.mubr.f32.mxu0 0.0
  %1637 = vmatmul.mubr.f32.gmra.mxu0 %v555
  %v1638 = vpop.f32.mrf.mxu0
  %v1639 = vadd.f32 0.0, %v1638
  %v1640 = vpop.f32.mrf.mxu0
  %1641 = vmatprep.mubr.f32.mxu0 0.0
  %1642 = vmatmul.mubr.f32.gmra.mxu0 %v558
  %v1643 = vpop.f32.mrf.mxu0
  %v1644 = vadd.f32 0.0, %v1643
  %v1645 = vpop.f32.mrf.mxu0
  %1646 = vmatprep.mubr.f32.mxu0 0.0
  %1647 = vmatmul.mubr.f32.gmra.mxu0 %v561
  %v1648 = vpop.f32.mrf.mxu0
  %v1649 = vadd.f32 0.0, %v1648
  %v1650 = vpop.f32.mrf.mxu0
  %1651 = vmatprep.mubr.f32.mxu0 0.0
  %1652 = vmatmul.mubr.f32.gmra.mxu0 %v564
  %v1653 = vpop.f32.mrf.mxu0
  %v1654 = vadd.f32 0.0, %v1653
  %v1655 = vpop.f32.mrf.mxu0
  %1656 = vmatprep.mubr.f32.mxu0 0.0
  %1657 = vmatmul.mubr.f32.gmra.mxu0 %v567
  %v1658 = vpop.f32.mrf.mxu0
  %v1659 = vadd.f32 0.0, %v1658
  %v1660 = vpop.f32.mrf.mxu0
  %1661 = vmatprep.mubr.f32.mxu0 0.0
  %1662 = vmatmul.mubr.f32.gmra.mxu0 %v570
  %v1663 = vpop.f32.mrf.mxu0
  %v1664 = vadd.f32 0.0, %v1663
  %v1665 = vpop.f32.mrf.mxu0
  %1666 = vmatprep.mubr.f32.mxu0 0.0
  %1667 = vmatmul.mubr.f32.gmra.mxu0 %v573
  %v1668 = vpop.f32.mrf.mxu0
  %v1669 = vadd.f32 0.0, %v1668
  %v1670 = vpop.f32.mrf.mxu0
  %1671 = vmatprep.mubr.f32.mxu0 0.0
  %1672 = vmatmul.mubr.f32.gmra.mxu0 %v576
  %v1673 = vpop.f32.mrf.mxu0
  %v1674 = vadd.f32 0.0, %v1673
  %v1675 = vpop.f32.mrf.mxu0
  %1676 = vmatprep.mubr.f32.mxu0 0.0
  %1677 = vmatmul.mubr.f32.gmra.mxu0 %v579
  %v1678 = vpop.f32.mrf.mxu0
  %v1679 = vadd.f32 0.0, %v1678
  %v1680 = vpop.f32.mrf.mxu0
  %1681 = vmatprep.mubr.f32.mxu0 0.0
  %1682 = vmatmul.mubr.f32.gmra.mxu0 %v582
  %v1683 = vpop.f32.mrf.mxu0
  %v1684 = vadd.f32 0.0, %v1683
  %v1685 = vpop.f32.mrf.mxu0
  %1686 = vmatprep.mubr.f32.mxu0 0.0
  %1687 = vmatmul.mubr.f32.gmra.mxu0 %v585
  %v1688 = vpop.f32.mrf.mxu0
  %v1689 = vadd.f32 0.0, %v1688
  %v1690 = vpop.f32.mrf.mxu0
  %1691 = vmatprep.mubr.f32.mxu0 0.0
  %1692 = vmatmul.mubr.f32.gmra.mxu0 %v588
  %v1693 = vpop.f32.mrf.mxu0
  %v1694 = vadd.f32 0.0, %v1693
  %v1695 = vpop.f32.mrf.mxu0
  %1696 = vmatprep.mubr.f32.mxu0 0.0
  %1697 = vmatmul.mubr.f32.gmra.mxu0 %v591
  %v1698 = vpop.f32.mrf.mxu0
  %v1699 = vadd.f32 0.0, %v1698
  %v1700 = vpop.f32.mrf.mxu0
  %1701 = vmatprep.mubr.f32.mxu0 0.0
  %1702 = vmatmul.mubr.f32.gmra.mxu0 %v594
  %v1703 = vpop.f32.mrf.mxu0
  %v1704 = vadd.f32 0.0, %v1703
  %v1705 = vpop.f32.mrf.mxu0
  %1706 = vmatprep.mubr.f32.mxu0 0.0
  %1707 = vmatmul.mubr.f32.gmra.mxu0 %v597
  %v1708 = vpop.f32.mrf.mxu0
  %v1709 = vadd.f32 0.0, %v1708
  %v1710 = vpop.f32.mrf.mxu0
  %1711 = vmatprep.mubr.f32.mxu0 0.0
  %1712 = vmatmul.mubr.f32.gmra.mxu0 %v600
  %v1713 = vpop.f32.mrf.mxu0
  %v1714 = vadd.f32 0.0, %v1713
  %v1715 = vpop.f32.mrf.mxu0
  %1716 = vmatprep.mubr.f32.mxu0 0.0
  %1717 = vmatmul.mubr.f32.gmra.mxu0 %v603
  %v1718 = vpop.f32.mrf.mxu0
  %v1719 = vadd.f32 0.0, %v1718
  %v1720 = vpop.f32.mrf.mxu0
  %1721 = vmatprep.mubr.f32.mxu0 0.0
  %1722 = vmatmul.mubr.f32.gmra.mxu0 %v606
  %v1723 = vpop.f32.mrf.mxu0
  %v1724 = vadd.f32 0.0, %v1723
  %v1725 = vpop.f32.mrf.mxu0
  %1726 = vmatprep.mubr.f32.mxu0 0.0
  %1727 = vmatmul.mubr.f32.gmra.mxu0 %v609
  %v1728 = vpop.f32.mrf.mxu0
  %v1729 = vadd.f32 0.0, %v1728
  %v1730 = vpop.f32.mrf.mxu0
  %1731 = vmatprep.mubr.f32.mxu0 0.0
  %1732 = vmatmul.mubr.f32.gmra.mxu0 %v612
  %v1733 = vpop.f32.mrf.mxu0
  %v1734 = vadd.f32 0.0, %v1733
  %v1735 = vpop.f32.mrf.mxu0
  %1736 = vmatprep.mubr.f32.mxu0 0.0
  %1737 = vmatmul.mubr.f32.gmra.mxu0 %v615
  %v1738 = vpop.f32.mrf.mxu0
  %v1739 = vadd.f32 0.0, %v1738
  %v1740 = vpop.f32.mrf.mxu0
  %1741 = vmatprep.mubr.f32.mxu0 0.0
  %1742 = vmatmul.mubr.f32.gmra.mxu0 %v618
  %v1743 = vpop.f32.mrf.mxu0
  %v1744 = vadd.f32 0.0, %v1743
  %v1745 = vpop.f32.mrf.mxu0
  %1746 = vmatprep.mubr.f32.mxu0 0.0
  %1747 = vmatmul.mubr.f32.gmra.mxu0 %v621
  %v1748 = vpop.f32.mrf.mxu0
  %v1749 = vadd.f32 0.0, %v1748
  %v1750 = vpop.f32.mrf.mxu0
  %1751 = vmatprep.mubr.f32.mxu0 0.0
  %1752 = vmatmul.mubr.f32.gmra.mxu0 %v624
  %v1753 = vpop.f32.mrf.mxu0
  %v1754 = vadd.f32 0.0, %v1753
  %v1755 = vpop.f32.mrf.mxu0
  %1756 = vmatprep.mubr.f32.mxu0 0.0
  %1757 = vmatmul.mubr.f32.gmra.mxu0 %v627
  %v1758 = vpop.f32.mrf.mxu0
  %v1759 = vadd.f32 0.0, %v1758
  %v1760 = vpop.f32.mrf.mxu0
  %1761 = vmatprep.mubr.f32.mxu0 0.0
  %1762 = vmatmul.mubr.f32.gmra.mxu0 %v630
  %v1763 = vpop.f32.mrf.mxu0
  %v1764 = vadd.f32 0.0, %v1763
  %v1765 = vpop.f32.mrf.mxu0
  %1766 = vmatprep.mubr.f32.mxu0 0.0
  %1767 = vmatmul.mubr.f32.gmra.mxu0 %v633
  %v1768 = vpop.f32.mrf.mxu0
  %v1769 = vadd.f32 0.0, %v1768
  %v1770 = vpop.f32.mrf.mxu0
  %1771 = vmatprep.mubr.f32.mxu0 0.0
  %1772 = vmatmul.mubr.f32.gmra.mxu0 %v636
  %v1773 = vpop.f32.mrf.mxu0
  %v1774 = vadd.f32 0.0, %v1773
  %v1775 = vpop.f32.mrf.mxu0
  %1776 = vmatprep.mubr.f32.mxu0 0.0
  %1777 = vmatmul.mubr.f32.gmra.mxu0 %v639
  %v1778 = vpop.f32.mrf.mxu0
  %v1779 = vadd.f32 0.0, %v1778
  %v1780 = vpop.f32.mrf.mxu0
  %1781 = vmatprep.mubr.f32.mxu0 0.0
  %1782 = vmatmul.mubr.f32.gmra.mxu0 %v642
  %v1783 = vpop.f32.mrf.mxu0
  %v1784 = vadd.f32 0.0, %v1783
  %v1785 = vpop.f32.mrf.mxu0
  %1786 = vmatprep.mubr.f32.mxu0 0.0
  %1787 = vmatmul.mubr.f32.gmra.mxu0 %v645
  %v1788 = vpop.f32.mrf.mxu0
  %v1789 = vadd.f32 0.0, %v1788
  %v1790 = vpop.f32.mrf.mxu0
  %1791 = vmatprep.mubr.f32.mxu0 0.0
  %1792 = vmatmul.mubr.f32.gmra.mxu0 %v648
  %v1793 = vpop.f32.mrf.mxu0
  %v1794 = vadd.f32 0.0, %v1793
  %v1795 = vpop.f32.mrf.mxu0
  %1796 = vmatprep.mubr.f32.mxu0 0.0
  %1797 = vmatmul.mubr.f32.gmra.mxu0 %v651
  %v1798 = vpop.f32.mrf.mxu0
  %v1799 = vadd.f32 0.0, %v1798
  %v1800 = vpop.f32.mrf.mxu0
  %1801 = vmatprep.mubr.f32.mxu0 0.0
  %1802 = vmatmul.mubr.f32.gmra.mxu0 %v654
  %v1803 = vpop.f32.mrf.mxu0
  %v1804 = vadd.f32 0.0, %v1803
  %v1805 = vpop.f32.mrf.mxu0
  %1806 = vmatprep.mubr.f32.mxu0 0.0
  %1807 = vmatmul.mubr.f32.gmra.mxu0 %v657
  %v1808 = vpop.f32.mrf.mxu0
  %v1809 = vadd.f32 0.0, %v1808
  %v1810 = vpop.f32.mrf.mxu0
  %1811 = vmatprep.mubr.f32.mxu0 0.0
  %1812 = vmatmul.mubr.f32.gmra.mxu0 %v660
  %v1813 = vpop.f32.mrf.mxu0
  %v1814 = vadd.f32 0.0, %v1813
  %v1815 = vpop.f32.mrf.mxu0
  %1816 = vmatprep.mubr.f32.mxu0 0.0
  %1817 = vmatmul.mubr.f32.gmra.mxu0 %v663
  %v1818 = vpop.f32.mrf.mxu0
  %v1819 = vadd.f32 0.0, %v1818
  %v1820 = vpop.f32.mrf.mxu0
  %1821 = vmatprep.mubr.f32.mxu0 0.0
  %1822 = vmatmul.mubr.f32.gmra.mxu0 %v666
  %v1823 = vpop.f32.mrf.mxu0
  %v1824 = vadd.f32 0.0, %v1823
  %v1825 = vpop.f32.mrf.mxu0
  %1826 = vmatprep.mubr.f32.mxu0 0.0
  %1827 = vmatmul.mubr.f32.gmra.mxu0 %v669
  %v1828 = vpop.f32.mrf.mxu0
  %v1829 = vadd.f32 0.0, %v1828
  %v1830 = vpop.f32.mrf.mxu0
  %1831 = vmatprep.mubr.f32.mxu0 0.0
  %1832 = vmatmul.mubr.f32.gmra.mxu0 %v672
  %v1833 = vpop.f32.mrf.mxu0
  %v1834 = vadd.f32 0.0, %v1833
  %v1835 = vpop.f32.mrf.mxu0
  %1836 = vmatprep.mubr.f32.mxu0 0.0
  %1837 = vmatmul.mubr.f32.gmra.mxu0 %v675
  %v1838 = vpop.f32.mrf.mxu0
  %v1839 = vadd.f32 0.0, %v1838
  %v1840 = vpop.f32.mrf.mxu0
  %1841 = vmatprep.mubr.f32.mxu0 0.0
  %1842 = vmatmul.mubr.f32.gmra.mxu0 %v678
  %v1843 = vpop.f32.mrf.mxu0
  %v1844 = vadd.f32 0.0, %v1843
  %v1845 = vpop.f32.mrf.mxu0
  %1846 = vmatprep.mubr.f32.mxu0 0.0
  %1847 = vmatmul.mubr.f32.gmra.mxu0 %v681
  %v1848 = vpop.f32.mrf.mxu0
  %v1849 = vadd.f32 0.0, %v1848
  %v1850 = vpop.f32.mrf.mxu0
  %1851 = vmatprep.mubr.f32.mxu0 0.0
  %1852 = vmatmul.mubr.f32.gmra.mxu0 %v684
  %v1853 = vpop.f32.mrf.mxu0
  %v1854 = vadd.f32 0.0, %v1853
  %v1855 = vpop.f32.mrf.mxu0
  %1856 = vmatprep.mubr.f32.mxu0 0.0
  %1857 = vmatmul.mubr.f32.gmra.mxu0 %v687
  %v1858 = vpop.f32.mrf.mxu0
  %v1859 = vadd.f32 0.0, %v1858
  %v1860 = vpop.f32.mrf.mxu0
  %1861 = vmatprep.mubr.f32.mxu0 0.0
  %1862 = vmatmul.mubr.f32.gmra.mxu0 %v690
  %v1863 = vpop.f32.mrf.mxu0
  %v1864 = vadd.f32 0.0, %v1863
  %v1865 = vpop.f32.mrf.mxu0
  %1866 = vmatprep.mubr.f32.mxu0 0.0
  %1867 = vmatmul.mubr.f32.gmra.mxu0 %v693
  %v1868 = vpop.f32.mrf.mxu0
  %v1869 = vadd.f32 0.0, %v1868
  %v1870 = vpop.f32.mrf.mxu0
  %1871 = vmatprep.mubr.f32.mxu0 0.0
  %1872 = vmatmul.mubr.f32.gmra.mxu0 %v696
  %v1873 = vpop.f32.mrf.mxu0
  %v1874 = vadd.f32 0.0, %v1873
  %v1875 = vpop.f32.mrf.mxu0
  %1876 = vmatprep.mubr.f32.mxu0 0.0
  %1877 = vmatmul.mubr.f32.gmra.mxu0 %v699
  %v1878 = vpop.f32.mrf.mxu0
  %v1879 = vadd.f32 0.0, %v1878
  %v1880 = vpop.f32.mrf.mxu0
  %1881 = vmatprep.mubr.f32.mxu0 0.0
  %1882 = vmatmul.mubr.f32.gmra.mxu0 %v702
  %v1883 = vpop.f32.mrf.mxu0
  %v1884 = vadd.f32 0.0, %v1883
  %v1885 = vpop.f32.mrf.mxu0
  %1886 = vmatprep.mubr.f32.mxu0 0.0
  %1887 = vmatmul.mubr.f32.gmra.mxu0 %v705
  %v1888 = vpop.f32.mrf.mxu0
  %v1889 = vadd.f32 0.0, %v1888
  %v1890 = vpop.f32.mrf.mxu0
  %1891 = vmatprep.mubr.f32.mxu0 0.0
  %1892 = vmatmul.mubr.f32.gmra.mxu0 %v708
  %v1893 = vpop.f32.mrf.mxu0
  %v1894 = vadd.f32 0.0, %v1893
  %v1895 = vpop.f32.mrf.mxu0
  %1896 = vmatprep.mubr.f32.mxu0 0.0
  %1897 = vmatmul.mubr.f32.gmra.mxu0 %v711
  %v1898 = vpop.f32.mrf.mxu0
  %v1899 = vadd.f32 0.0, %v1898
  %v1900 = vpop.f32.mrf.mxu0
  %1901 = vmatprep.mubr.f32.mxu0 0.0
  %1902 = vmatmul.mubr.f32.gmra.mxu0 %v714
  %v1903 = vpop.f32.mrf.mxu0
  %v1904 = vadd.f32 0.0, %v1903
  %v1905 = vpop.f32.mrf.mxu0
  %1906 = vmatprep.mubr.f32.mxu0 0.0
  %1907 = vmatmul.mubr.f32.gmra.mxu0 %v717
  %v1908 = vpop.f32.mrf.mxu0
  %v1909 = vadd.f32 0.0, %v1908
  %v1910 = vpop.f32.mrf.mxu0
  %1911 = vmatprep.mubr.f32.mxu0 0.0
  %1912 = vmatmul.mubr.f32.gmra.mxu0 %v720
  %v1913 = vpop.f32.mrf.mxu0
  %v1914 = vadd.f32 0.0, %v1913
  %v1915 = vpop.f32.mrf.mxu0
  %1916 = vmatprep.mubr.f32.mxu0 0.0
  %1917 = vmatmul.mubr.f32.gmra.mxu0 %v723
  %v1918 = vpop.f32.mrf.mxu0
  %v1919 = vadd.f32 0.0, %v1918
  %v1920 = vpop.f32.mrf.mxu0
  %1921 = vmatprep.mubr.f32.mxu0 0.0
  %1922 = vmatmul.mubr.f32.gmra.mxu0 %v726
  %v1923 = vpop.f32.mrf.mxu0
  %v1924 = vadd.f32 0.0, %v1923
  %v1925 = vpop.f32.mrf.mxu0
  %1926 = vmatprep.mubr.f32.mxu0 0.0
  %1927 = vmatmul.mubr.f32.gmra.mxu0 %v729
  %v1928 = vpop.f32.mrf.mxu0
  %v1929 = vadd.f32 0.0, %v1928
  %v1930 = vpop.f32.mrf.mxu0
  %1931 = vmatprep.mubr.f32.mxu0 0.0
  %1932 = vmatmul.mubr.f32.gmra.mxu0 %v732
  %v1933 = vpop.f32.mrf.mxu0
  %v1934 = vadd.f32 0.0, %v1933
  %v1935 = vpop.f32.mrf.mxu0
  %1936 = vmatprep.mubr.f32.mxu0 0.0
  %1937 = vmatmul.mubr.f32.gmra.mxu0 %v735
  %v1938 = vpop.f32.mrf.mxu0
  %v1939 = vadd.f32 0.0, %v1938
  %v1940 = vpop.f32.mrf.mxu0
  %1941 = vmatprep.mubr.f32.mxu0 0.0
  %1942 = vmatmul.mubr.f32.gmra.mxu0 %v738
  %v1943 = vpop.f32.mrf.mxu0
  %v1944 = vadd.f32 0.0, %v1943
  %v1945 = vpop.f32.mrf.mxu0
  %1946 = vmatprep.mubr.f32.mxu0 0.0
  %1947 = vmatmul.mubr.f32.gmra.mxu0 %v741
  %v1948 = vpop.f32.mrf.mxu0
  %v1949 = vadd.f32 0.0, %v1948
  %v1950 = vpop.f32.mrf.mxu0
  %1951 = vmatprep.mubr.f32.mxu0 0.0
  %1952 = vmatmul.mubr.f32.gmra.mxu0 %v744
  %v1953 = vpop.f32.mrf.mxu0
  %v1954 = vadd.f32 0.0, %v1953
  %v1955 = vpop.f32.mrf.mxu0
  %1956 = vmatprep.mubr.f32.mxu0 0.0
  %1957 = vmatmul.mubr.f32.gmra.mxu0 %v747
  %v1958 = vpop.f32.mrf.mxu0
  %v1959 = vadd.f32 0.0, %v1958
  %v1960 = vpop.f32.mrf.mxu0
  %1961 = vmatprep.mubr.f32.mxu0 0.0
  %1962 = vmatmul.mubr.f32.gmra.mxu0 %v750
  %v1963 = vpop.f32.mrf.mxu0
  %v1964 = vadd.f32 0.0, %v1963
  %v1965 = vpop.f32.mrf.mxu0
  %1966 = vmatprep.mubr.f32.mxu0 0.0
  %1967 = vmatmul.mubr.f32.gmra.mxu0 %v753
  %v1968 = vpop.f32.mrf.mxu0
  %v1969 = vadd.f32 0.0, %v1968
  %v1970 = vpop.f32.mrf.mxu0
  %1971 = vmatprep.mubr.f32.mxu0 0.0
  %1972 = vmatmul.mubr.f32.gmra.mxu0 %v756
  %v1973 = vpop.f32.mrf.mxu0
  %v1974 = vadd.f32 0.0, %v1973
  %v1975 = vpop.f32.mrf.mxu0
  %1976 = vmatprep.mubr.f32.mxu0 0.0
  %1977 = vmatmul.mubr.f32.gmra.mxu0 %v759
  %v1978 = vpop.f32.mrf.mxu0
  %v1979 = vadd.f32 0.0, %v1978
  %v1980 = vpop.f32.mrf.mxu0
  %1981 = vmatprep.mubr.f32.mxu0 0.0
  %1982 = vmatmul.mubr.f32.gmra.mxu0 %v762
  %v1983 = vpop.f32.mrf.mxu0
  %v1984 = vadd.f32 0.0, %v1983
  %v1985 = vpop.f32.mrf.mxu0
  %1986 = vmatprep.mubr.f32.mxu0 0.0
  %1987 = vmatmul.mubr.f32.gmra.mxu0 %v765
  %v1988 = vpop.f32.mrf.mxu0
  %v1989 = vadd.f32 0.0, %v1988
  %v1990 = vpop.f32.mrf.mxu0
  %1991 = vmatprep.mubr.f32.mxu0 0.0
  %1992 = vmatmul.mubr.f32.gmra.mxu0 %v768
  %v1993 = vpop.f32.mrf.mxu0
  %v1994 = vadd.f32 0.0, %v1993
  %v1995 = vpop.f32.mrf.mxu0
  %1996 = vmatprep.mubr.f32.mxu0 0.0
  %1997 = vmatmul.mubr.f32.gmra.mxu0 %v771
  %v1998 = vpop.f32.mrf.mxu0
  %v1999 = vadd.f32 0.0, %v1998
  %v2000 = vpop.f32.mrf.mxu0
  %2001 = vmatprep.mubr.f32.mxu0 0.0
  %2002 = vmatmul.mubr.f32.gmra.mxu0 %v774
  %v2003 = vpop.f32.mrf.mxu0
  %v2004 = vadd.f32 0.0, %v2003
  %v2005 = vpop.f32.mrf.mxu0
  %2006 = vmatprep.mubr.f32.mxu0 0.0
  %2007 = vmatmul.mubr.f32.gmra.mxu0 %v777
  %v2008 = vpop.f32.mrf.mxu0
  %v2009 = vadd.f32 0.0, %v2008
  %v2010 = vpop.f32.mrf.mxu0
  %2011 = vmatprep.mubr.f32.mxu0 0.0
  %2012 = vmatmul.mubr.f32.gmra.mxu0 %v780
  %v2013 = vpop.f32.mrf.mxu0
  %v2014 = vadd.f32 0.0, %v2013
  %v2015 = vpop.f32.mrf.mxu0
  %2016 = vmatprep.mubr.f32.mxu0 0.0
  %2017 = vmatmul.mubr.f32.gmra.mxu0 %v783
  %v2018 = vpop.f32.mrf.mxu0
  %v2019 = vadd.f32 0.0, %v2018
  %v2020 = vpop.f32.mrf.mxu0
  %2021 = vmatprep.mubr.f32.mxu0 0.0
  %2022 = vmatmul.mubr.f32.gmra.mxu0 %v786
  %v2023 = vpop.f32.mrf.mxu0
  %v2024 = vadd.f32 0.0, %v2023
  %v2025 = vpop.f32.mrf.mxu0
  %2026 = vmatprep.mubr.f32.mxu0 0.0
  %2027 = vmatmul.mubr.f32.gmra.mxu0 %v789
  %v2028 = vpop.f32.mrf.mxu0
  %v2029 = vadd.f32 0.0, %v2028
  %v2030 = vpop.f32.mrf.mxu0
  %2031 = vmatprep.mubr.f32.mxu0 0.0
  %2032 = vmatmul.mubr.f32.gmra.mxu0 %v792
  %v2033 = vpop.f32.mrf.mxu0
  %v2034 = vadd.f32 0.0, %v2033
  %v2035 = vpop.f32.mrf.mxu0
  %2036 = vmatprep.mubr.f32.mxu0 0.0
  %2037 = vmatmul.mubr.f32.gmra.mxu0 %v795
  %v2038 = vpop.f32.mrf.mxu0
  %v2039 = vadd.f32 0.0, %v2038
  %v2040 = vpop.f32.mrf.mxu0
  %2041 = vmatprep.mubr.f32.mxu0 0.0
  %2042 = vmatmul.mubr.f32.gmra.mxu0 %v798
  %v2043 = vpop.f32.mrf.mxu0
  %v2044 = vadd.f32 0.0, %v2043
  %v2045 = vpop.f32.mrf.mxu0
  %2046 = vmatprep.mubr.f32.mxu0 0.0
  %2047 = vmatmul.mubr.f32.gmra.mxu0 %v801
  %v2048 = vpop.f32.mrf.mxu0
  %v2049 = vadd.f32 0.0, %v2048
  %v2050 = vpop.f32.mrf.mxu0
  %2051 = vmatprep.mubr.f32.mxu0 0.0
  %2052 = vmatmul.mubr.f32.gmra.mxu0 %v804
  %v2053 = vpop.f32.mrf.mxu0
  %v2054 = vadd.f32 0.0, %v2053
  %v2055 = vpop.f32.mrf.mxu0
  %2056 = vmatprep.mubr.f32.mxu0 0.0
  %2057 = vmatmul.mubr.f32.gmra.mxu0 %v807
  %v2058 = vpop.f32.mrf.mxu0
  %v2059 = vadd.f32 0.0, %v2058
  %v2060 = vpop.f32.mrf.mxu0
  %2061 = vmatprep.mubr.f32.mxu0 0.0
  %2062 = vmatmul.mubr.f32.gmra.mxu0 %v810
  %v2063 = vpop.f32.mrf.mxu0
  %v2064 = vadd.f32 0.0, %v2063
  %v2065 = vpop.f32.mrf.mxu0
  %2066 = vmatprep.mubr.f32.mxu0 0.0
  %2067 = vmatmul.mubr.f32.gmra.mxu0 %v813
  %v2068 = vpop.f32.mrf.mxu0
  %v2069 = vadd.f32 0.0, %v2068
  %v2070 = vpop.f32.mrf.mxu0
  %2071 = vmatprep.mubr.f32.mxu0 0.0
  %2072 = vmatmul.mubr.f32.gmra.mxu0 %v816
  %v2073 = vpop.f32.mrf.mxu0
  %v2074 = vadd.f32 0.0, %v2073
  %v2075 = vpop.f32.mrf.mxu0
  %2076 = vmatprep.mubr.f32.mxu0 0.0
  %2077 = vmatmul.mubr.f32.gmra.mxu0 %v819
  %v2078 = vpop.f32.mrf.mxu0
  %v2079 = vadd.f32 0.0, %v2078
  %v2080 = vpop.f32.mrf.mxu0
  %2081 = vmatprep.mubr.f32.mxu0 0.0
  %2082 = vmatmul.mubr.f32.gmra.mxu0 %v822
  %v2083 = vpop.f32.mrf.mxu0
  %v2084 = vadd.f32 0.0, %v2083
  %v2085 = vpop.f32.mrf.mxu0
  %2086 = vmatprep.mubr.f32.mxu0 0.0
  %2087 = vmatmul.mubr.f32.gmra.mxu0 %v825
  %v2088 = vpop.f32.mrf.mxu0
  %v2089 = vadd.f32 0.0, %v2088
  %v2090 = vpop.f32.mrf.mxu0
  %2091 = vmatprep.mubr.f32.mxu0 0.0
  %2092 = vmatmul.mubr.f32.gmra.mxu0 %v828
  %v2093 = vpop.f32.mrf.mxu0
  %v2094 = vadd.f32 0.0, %v2093
  %v2095 = vpop.f32.mrf.mxu0
  %2096 = vmatprep.mubr.f32.mxu0 0.0
  %2097 = vmatmul.mubr.f32.gmra.mxu0 %v831
  %v2098 = vpop.f32.mrf.mxu0
  %v2099 = vadd.f32 0.0, %v2098
  %v2100 = vpop.f32.mrf.mxu0
  %2101 = vmatprep.mubr.f32.mxu0 0.0
  %2102 = vmatmul.mubr.f32.gmra.mxu0 %v834
  %v2103 = vpop.f32.mrf.mxu0
  %v2104 = vadd.f32 0.0, %v2103
  %v2105 = vpop.f32.mrf.mxu0
  %2106 = vmatprep.mubr.f32.mxu0 0.0
  %2107 = vmatmul.mubr.f32.gmra.mxu0 %v837
  %v2108 = vpop.f32.mrf.mxu0
  %v2109 = vadd.f32 0.0, %v2108
  %v2110 = vpop.f32.mrf.mxu0
  %2111 = vmatprep.mubr.f32.mxu0 0.0
  %2112 = vmatmul.mubr.f32.gmra.mxu0 %v840
  %v2113 = vpop.f32.mrf.mxu0
  %v2114 = vadd.f32 0.0, %v2113
  %v2115 = vpop.f32.mrf.mxu0
  %2116 = vmatprep.mubr.f32.mxu0 0.0
  %2117 = vmatmul.mubr.f32.gmra.mxu0 %v843
  %v2118 = vpop.f32.mrf.mxu0
  %v2119 = vadd.f32 0.0, %v2118
  %v2120 = vpop.f32.mrf.mxu0
  %2121 = vmatprep.mubr.f32.mxu0 0.0
  %2122 = vmatmul.mubr.f32.gmra.mxu0 %v846
  %v2123 = vpop.f32.mrf.mxu0
  %v2124 = vadd.f32 0.0, %v2123
  %v2125 = vpop.f32.mrf.mxu0
  %2126 = vmatprep.mubr.f32.mxu0 0.0
  %2127 = vmatmul.mubr.f32.gmra.mxu0 %v849
  %v2128 = vpop.f32.mrf.mxu0
  %v2129 = vadd.f32 0.0, %v2128
  %v2130 = vpop.f32.mrf.mxu0
  %2131 = vmatprep.mubr.f32.mxu0 0.0
  %2132 = vmatmul.mubr.f32.gmra.mxu0 %v852
  %v2133 = vpop.f32.mrf.mxu0
  %v2134 = vadd.f32 0.0, %v2133
  %v2135 = vpop.f32.mrf.mxu0
  %2136 = vmatprep.mubr.f32.mxu0 0.0
  %2137 = vmatmul.mubr.f32.gmra.mxu0 %v855
  %v2138 = vpop.f32.mrf.mxu0
  %v2139 = vadd.f32 0.0, %v2138
  %v2140 = vpop.f32.mrf.mxu0
  %2141 = vmatprep.mubr.f32.mxu0 0.0
  %2142 = vmatmul.mubr.f32.gmra.mxu0 %v858
  %v2143 = vpop.f32.mrf.mxu0
  %v2144 = vadd.f32 0.0, %v2143
  %v2145 = vpop.f32.mrf.mxu0
  %2146 = vmatprep.mubr.f32.mxu0 0.0
  %2147 = vmatmul.mubr.f32.gmra.mxu0 %v861
  %v2148 = vpop.f32.mrf.mxu0
  %v2149 = vadd.f32 0.0, %v2148
  %v2150 = vpop.f32.mrf.mxu0
  %2151 = vmatprep.mubr.f32.mxu0 0.0
  %2152 = vmatmul.mubr.f32.gmra.mxu0 %v864
  %v2153 = vpop.f32.mrf.mxu0
  %v2154 = vadd.f32 0.0, %v2153
  %v2155 = vpop.f32.mrf.mxu0
  %2156 = vmatprep.mubr.f32.mxu0 0.0
  %2157 = vmatmul.mubr.f32.gmra.mxu0 %v867
  %v2158 = vpop.f32.mrf.mxu0
  %v2159 = vadd.f32 0.0, %v2158
  %v2160 = vpop.f32.mrf.mxu0
  %2161 = vmatprep.mubr.f32.mxu0 0.0
  %2162 = vmatmul.mubr.f32.gmra.mxu0 %v870
  %v2163 = vpop.f32.mrf.mxu0
  %v2164 = vadd.f32 0.0, %v2163
  %v2165 = vpop.f32.mrf.mxu0
  %2166 = vmatprep.mubr.f32.mxu0 0.0
  %2167 = vmatmul.mubr.f32.gmra.mxu0 %v873
  %v2168 = vpop.f32.mrf.mxu0
  %v2169 = vadd.f32 0.0, %v2168
  %v2170 = vpop.f32.mrf.mxu0
  %2171 = vmatprep.mubr.f32.mxu0 0.0
  %2172 = vmatmul.mubr.f32.gmra.mxu0 %v876
  %v2173 = vpop.f32.mrf.mxu0
  %v2174 = vadd.f32 0.0, %v2173
  %v2175 = vpop.f32.mrf.mxu0
  %2176 = vmatprep.mubr.f32.mxu0 0.0
  %2177 = vmatmul.mubr.f32.gmra.mxu0 %v879
  %v2178 = vpop.f32.mrf.mxu0
  %v2179 = vadd.f32 0.0, %v2178
  %v2180 = vpop.f32.mrf.mxu0
  %2181 = vmatprep.mubr.f32.mxu0 0.0
  %2182 = vmatmul.mubr.f32.gmra.mxu0 %v882
  %v2183 = vpop.f32.mrf.mxu0
  %v2184 = vadd.f32 0.0, %v2183
  %v2185 = vpop.f32.mrf.mxu0
  %2186 = vmatprep.mubr.f32.mxu0 0.0
  %2187 = vmatmul.mubr.f32.gmra.mxu0 %v885
  %v2188 = vpop.f32.mrf.mxu0
  %v2189 = vadd.f32 0.0, %v2188
  %v2190 = vpop.f32.mrf.mxu0
  %2191 = vmatprep.mubr.f32.mxu0 0.0
  %2192 = vmatmul.mubr.f32.gmra.mxu0 %v888
  %v2193 = vpop.f32.mrf.mxu0
  %v2194 = vadd.f32 0.0, %v2193
  %v2195 = vpop.f32.mrf.mxu0
  %2196 = vmatprep.mubr.f32.mxu0 0.0
  %2197 = vmatmul.mubr.f32.gmra.mxu0 %v891
  %v2198 = vpop.f32.mrf.mxu0
  %v2199 = vadd.f32 0.0, %v2198
  %v2200 = vpop.f32.mrf.mxu0
  %2201 = vmatprep.mubr.f32.mxu0 0.0
  %2202 = vmatmul.mubr.f32.gmra.mxu0 %v894
  %v2203 = vpop.f32.mrf.mxu0
  %v2204 = vadd.f32 0.0, %v2203
  %v2205 = vpop.f32.mrf.mxu0
  %2206 = vmatprep.mubr.f32.mxu0 0.0
  %2207 = vmatmul.mubr.f32.gmra.mxu0 %v897
  %v2208 = vpop.f32.mrf.mxu0
  %v2209 = vadd.f32 0.0, %v2208
  %v2210 = vpop.f32.mrf.mxu0
  %2211 = vmatprep.mubr.f32.mxu0 0.0
  %2212 = vmatmul.mubr.f32.gmra.mxu0 %v900
  %v2213 = vpop.f32.mrf.mxu0
  %v2214 = vadd.f32 0.0, %v2213
  %v2215 = vpop.f32.mrf.mxu0
  %2216 = vmatprep.mubr.f32.mxu0 0.0
  %2217 = vmatmul.mubr.f32.gmra.mxu0 %v903
  %v2218 = vpop.f32.mrf.mxu0
  %v2219 = vadd.f32 0.0, %v2218
  %v2220 = vpop.f32.mrf.mxu0
  %2221 = vmatprep.mubr.f32.mxu0 0.0
  %2222 = vmatmul.mubr.f32.gmra.mxu0 %v906
  %v2223 = vpop.f32.mrf.mxu0
  %v2224 = vadd.f32 0.0, %v2223
  %v2225 = vpop.f32.mrf.mxu0
  %2226 = vmatprep.mubr.f32.mxu0 0.0
  %2227 = vmatmul.mubr.f32.gmra.mxu0 %v909
  %v2228 = vpop.f32.mrf.mxu0
  %v2229 = vadd.f32 0.0, %v2228
  %v2230 = vpop.f32.mrf.mxu0
  %2231 = vmatprep.mubr.f32.mxu0 0.0
  %2232 = vmatmul.mubr.f32.gmra.mxu0 %v912
  %v2233 = vpop.f32.mrf.mxu0
  %v2234 = vadd.f32 0.0, %v2233
  %v2235 = vpop.f32.mrf.mxu0
  %2236 = vmatprep.mubr.f32.mxu0 0.0
  %2237 = vmatmul.mubr.f32.gmra.mxu0 %v915
  %v2238 = vpop.f32.mrf.mxu0
  %v2239 = vadd.f32 0.0, %v2238
  %v2240 = vpop.f32.mrf.mxu0
  %2241 = vmatprep.mubr.f32.mxu0 0.0
  %2242 = vmatmul.mubr.f32.gmra.mxu0 %v918
  %v2243 = vpop.f32.mrf.mxu0
  %v2244 = vadd.f32 0.0, %v2243
  %v2245 = vpop.f32.mrf.mxu0
  %2246 = vmatprep.mubr.f32.mxu0 0.0
  %2247 = vmatmul.mubr.f32.gmra.mxu0 %v921
  %v2248 = vpop.f32.mrf.mxu0
  %v2249 = vadd.f32 0.0, %v2248
  %v2250 = vpop.f32.mrf.mxu0
  %2251 = vmatprep.mubr.f32.mxu0 0.0
  %2252 = vmatmul.mubr.f32.gmra.mxu0 %v924
  %v2253 = vpop.f32.mrf.mxu0
  %v2254 = vadd.f32 0.0, %v2253
  %v2255 = vpop.f32.mrf.mxu0
  %2256 = vmatprep.mubr.f32.mxu0 0.0
  %2257 = vmatmul.mubr.f32.gmra.mxu0 %v927
  %v2258 = vpop.f32.mrf.mxu0
  %v2259 = vadd.f32 0.0, %v2258
  %v2260 = vpop.f32.mrf.mxu0
  %2261 = vmatprep.mubr.f32.mxu0 0.0
  %2262 = vmatmul.mubr.f32.gmra.mxu0 %v930
  %v2263 = vpop.f32.mrf.mxu0
  %v2264 = vadd.f32 0.0, %v2263
  %v2265 = vpop.f32.mrf.mxu0
  %2266 = vmatprep.mubr.f32.mxu0 0.0
  %2267 = vmatmul.mubr.f32.gmra.mxu0 %v933
  %v2268 = vpop.f32.mrf.mxu0
  %v2269 = vadd.f32 0.0, %v2268
  %v2270 = vpop.f32.mrf.mxu0
  %2271 = vmatprep.mubr.f32.mxu0 0.0
  %2272 = vmatmul.mubr.f32.gmra.mxu0 %v936
  %v2273 = vpop.f32.mrf.mxu0
  %v2274 = vadd.f32 0.0, %v2273
  %v2275 = vpop.f32.mrf.mxu0
  %2276 = vmatprep.mubr.f32.mxu0 0.0
  %2277 = vmatmul.mubr.f32.gmra.mxu0 %v939
  %v2278 = vpop.f32.mrf.mxu0
  %v2279 = vadd.f32 0.0, %v2278
  %v2280 = vpop.f32.mrf.mxu0
  %2281 = vmatprep.mubr.f32.mxu0 0.0
  %2282 = vmatmul.mubr.f32.gmra.mxu0 %v942
  %v2283 = vpop.f32.mrf.mxu0
  %v2284 = vadd.f32 0.0, %v2283
  %v2285 = vpop.f32.mrf.mxu0
  %2286 = vmatprep.mubr.f32.mxu0 0.0
  %2287 = vmatmul.mubr.f32.gmra.mxu0 %v945
  %v2288 = vpop.f32.mrf.mxu0
  %v2289 = vadd.f32 0.0, %v2288
  %v2290 = vpop.f32.mrf.mxu0
  %2291 = vmatprep.mubr.f32.mxu0 0.0
  %2292 = vmatmul.mubr.f32.gmra.mxu0 %v948
  %v2293 = vpop.f32.mrf.mxu0
  %v2294 = vadd.f32 0.0, %v2293
  %v2295 = vpop.f32.mrf.mxu0
  %2296 = vmatprep.mubr.f32.mxu0 0.0
  %2297 = vmatmul.mubr.f32.gmra.mxu0 %v951
  %v2298 = vpop.f32.mrf.mxu0
  %v2299 = vadd.f32 0.0, %v2298
  %v2300 = vpop.f32.mrf.mxu0
  %2301 = vmatprep.mubr.f32.mxu0 0.0
  %2302 = vmatmul.mubr.f32.gmra.mxu0 %v954
  %v2303 = vpop.f32.mrf.mxu0
  %v2304 = vadd.f32 0.0, %v2303
  %v2305 = vpop.f32.mrf.mxu0
  %2306 = vmatprep.mubr.f32.mxu0 0.0
  %2307 = vmatmul.mubr.f32.gmra.mxu0 %v957
  %v2308 = vpop.f32.mrf.mxu0
  %v2309 = vadd.f32 0.0, %v2308
  %v2310 = vpop.f32.mrf.mxu0
  %2311 = vmatprep.mubr.f32.mxu0 0.0
  %2312 = vmatmul.mubr.f32.gmra.mxu0 %v960
  %v2313 = vpop.f32.mrf.mxu0
  %v2314 = vadd.f32 0.0, %v2313
  %v2315 = vpop.f32.mrf.mxu0
  %2316 = vmatprep.mubr.f32.mxu0 0.0
  %2317 = vmatmul.mubr.f32.gmra.mxu0 %v963
  %v2318 = vpop.f32.mrf.mxu0
  %v2319 = vadd.f32 0.0, %v2318
  %v2320 = vpop.f32.mrf.mxu0
  %2321 = vmatprep.mubr.f32.mxu0 0.0
  %2322 = vmatmul.mubr.f32.gmra.mxu0 %v966
  %v2323 = vpop.f32.mrf.mxu0
  %v2324 = vadd.f32 0.0, %v2323
  %v2325 = vpop.f32.mrf.mxu0
  %2326 = vmatprep.mubr.f32.mxu0 0.0
  %2327 = vmatmul.mubr.f32.gmra.mxu0 %v969
  %v2328 = vpop.f32.mrf.mxu0
  %v2329 = vadd.f32 0.0, %v2328
  %v2330 = vpop.f32.mrf.mxu0
  %2331 = vmatprep.mubr.f32.mxu0 0.0
  %2332 = vmatmul.mubr.f32.gmra.mxu0 %v972
  %v2333 = vpop.f32.mrf.mxu0
  %v2334 = vadd.f32 0.0, %v2333
  %v2335 = vpop.f32.mrf.mxu0
  %2336 = vmatprep.mubr.f32.mxu0 0.0
  %2337 = vmatmul.mubr.f32.gmra.mxu0 %v975
  %v2338 = vpop.f32.mrf.mxu0
  %v2339 = vadd.f32 0.0, %v2338
  %v2340 = vpop.f32.mrf.mxu0
  %2341 = vmatprep.mubr.f32.mxu0 0.0
  %2342 = vmatmul.mubr.f32.gmra.mxu0 %v978
  %v2343 = vpop.f32.mrf.mxu0
  %v2344 = vadd.f32 0.0, %v2343
  %v2345 = vpop.f32.mrf.mxu0
  %2346 = vmatprep.mubr.f32.mxu0 0.0
  %2347 = vmatmul.mubr.f32.gmra.mxu0 %v981
  %v2348 = vpop.f32.mrf.mxu0
  %v2349 = vadd.f32 0.0, %v2348
  %v2350 = vpop.f32.mrf.mxu0
  %2351 = vmatprep.mubr.f32.mxu0 0.0
  %2352 = vmatmul.mubr.f32.gmra.mxu0 %v984
  %v2353 = vpop.f32.mrf.mxu0
  %v2354 = vadd.f32 0.0, %v2353
  %v2355 = vpop.f32.mrf.mxu0
  %2356 = vmatprep.mubr.f32.mxu0 0.0
  %2357 = vmatmul.mubr.f32.gmra.mxu0 %v987
  %v2358 = vpop.f32.mrf.mxu0
  %v2359 = vadd.f32 0.0, %v2358
  %v2360 = vpop.f32.mrf.mxu0
  %2361 = vmatprep.mubr.f32.mxu0 0.0
  %2362 = vmatmul.mubr.f32.gmra.mxu0 %v990
  %v2363 = vpop.f32.mrf.mxu0
  %v2364 = vadd.f32 0.0, %v2363
  %v2365 = vpop.f32.mrf.mxu0
  %2366 = vmatprep.mubr.f32.mxu0 0.0
  %2367 = vmatmul.mubr.f32.gmra.mxu0 %v993
  %v2368 = vpop.f32.mrf.mxu0
  %v2369 = vadd.f32 0.0, %v2368
  %v2370 = vpop.f32.mrf.mxu0
  %2371 = vmatprep.mubr.f32.mxu0 0.0
  %2372 = vmatmul.mubr.f32.gmra.mxu0 %v996
  %v2373 = vpop.f32.mrf.mxu0
  %v2374 = vadd.f32 0.0, %v2373
  %v2375 = vpop.f32.mrf.mxu0
  %2376 = vmatprep.mubr.f32.mxu0 0.0
  %2377 = vmatmul.mubr.f32.gmra.mxu0 %v999
  %v2378 = vpop.f32.mrf.mxu0
  %v2379 = vadd.f32 0.0, %v2378
  %v2380 = vpop.f32.mrf.mxu0
  %2381 = vmatprep.mubr.f32.mxu0 0.0
  %2382 = vmatmul.mubr.f32.gmra.mxu0 %v1002
  %v2383 = vpop.f32.mrf.mxu0
  %v2384 = vadd.f32 0.0, %v2383
  %v2385 = vpop.f32.mrf.mxu0
  %2386 = vmatprep.mubr.f32.mxu0 0.0
  %2387 = vmatmul.mubr.f32.gmra.mxu0 %v1005
  %v2388 = vpop.f32.mrf.mxu0
  %v2389 = vadd.f32 0.0, %v2388
  %v2390 = vpop.f32.mrf.mxu0
  %2391 = vmatprep.mubr.f32.mxu0 0.0
  %2392 = vmatmul.mubr.f32.gmra.mxu0 %v1008
  %v2393 = vpop.f32.mrf.mxu0
  %v2394 = vadd.f32 0.0, %v2393
  %v2395 = vpop.f32.mrf.mxu0
  %2396 = vmatprep.mubr.f32.mxu0 0.0
  %2397 = vmatmul.mubr.f32.gmra.mxu0 %v1011
  %v2398 = vpop.f32.mrf.mxu0
  %v2399 = vadd.f32 0.0, %v2398
  %v2400 = vpop.f32.mrf.mxu0
  %2401 = vmatprep.mubr.f32.mxu0 0.0
  %2402 = vmatmul.mubr.f32.gmra.mxu0 %v1014
  %v2403 = vpop.f32.mrf.mxu0
  %v2404 = vadd.f32 0.0, %v2403
  %v2405 = vpop.f32.mrf.mxu0
  %2406 = vmatprep.mubr.f32.mxu0 0.0
  %2407 = vmatmul.mubr.f32.gmra.mxu0 %v1017
  %v2408 = vpop.f32.mrf.mxu0
  %v2409 = vadd.f32 0.0, %v2408
  %v2410 = vpop.f32.mrf.mxu0
  %2411 = vmatprep.mubr.f32.mxu0 0.0
  %2412 = vmatmul.mubr.f32.gmra.mxu0 %v1020
  %v2413 = vpop.f32.mrf.mxu0
  %v2414 = vadd.f32 0.0, %v2413
  %v2415 = vpop.f32.mrf.mxu0
  %2416 = vmatprep.mubr.f32.mxu0 0.0
  %2417 = vmatmul.mubr.f32.gmra.mxu0 %v1023
  %v2418 = vpop.f32.mrf.mxu0
  %v2419 = vadd.f32 0.0, %v2418
  %v2420 = vpop.f32.mrf.mxu0
  %2421 = vmatprep.mubr.f32.mxu0 0.0
  %2422 = vmatmul.mubr.f32.gmra.mxu0 %v1026
  %v2423 = vpop.f32.mrf.mxu0
  %v2424 = vadd.f32 0.0, %v2423
  %v2425 = vpop.f32.mrf.mxu0
  %2426 = vmatprep.mubr.f32.mxu0 0.0
  %2427 = vmatmul.mubr.f32.gmra.mxu0 %v1029
  %v2428 = vpop.f32.mrf.mxu0
  %v2429 = vadd.f32 0.0, %v2428
  %v2430 = vpop.f32.mrf.mxu0
  %2431 = vmatprep.mubr.f32.mxu0 0.0
  %2432 = vmatmul.mubr.f32.gmra.mxu0 %v1032
  %v2433 = vpop.f32.mrf.mxu0
  %v2434 = vadd.f32 0.0, %v2433
  %v2435 = vpop.f32.mrf.mxu0
  %2436 = vmatprep.mubr.f32.mxu0 0.0
  %2437 = vmatmul.mubr.f32.gmra.mxu0 %v1035
  %v2438 = vpop.f32.mrf.mxu0
  %v2439 = vadd.f32 0.0, %v2438
  %v2440 = vpop.f32.mrf.mxu0
  %2441 = vmatprep.mubr.f32.mxu0 0.0
  %2442 = vmatmul.mubr.f32.gmra.mxu0 %v1038
  %v2443 = vpop.f32.mrf.mxu0
  %v2444 = vadd.f32 0.0, %v2443
  %v2445 = vpop.f32.mrf.mxu0
  %2446 = vmatprep.mubr.f32.mxu0 0.0
  %2447 = vmatmul.mubr.f32.gmra.mxu0 %v1041
  %v2448 = vpop.f32.mrf.mxu0
  %v2449 = vadd.f32 0.0, %v2448
  %v2450 = vpop.f32.mrf.mxu0
  %2451 = vmatprep.mubr.f32.mxu0 0.0
  %2452 = vmatmul.mubr.f32.gmra.mxu0 %v1044
  %v2453 = vpop.f32.mrf.mxu0
  %v2454 = vadd.f32 0.0, %v2453
  %v2455 = vpop.f32.mrf.mxu0
  %2456 = vmatprep.mubr.f32.mxu0 0.0
  %2457 = vmatmul.mubr.f32.gmra.mxu0 %v1047
  %v2458 = vpop.f32.mrf.mxu0
  %v2459 = vadd.f32 0.0, %v2458
  %v2460 = vpop.f32.mrf.mxu0
  %2461 = vmatprep.mubr.f32.mxu0 0.0
  %2462 = vmatmul.mubr.f32.gmra.mxu0 %v1050
  %v2463 = vpop.f32.mrf.mxu0
  %v2464 = vadd.f32 0.0, %v2463
  %v2465 = vpop.f32.mrf.mxu0
  %2466 = vmatprep.mubr.f32.mxu0 0.0
  %2467 = vmatmul.mubr.f32.gmra.mxu0 %v1053
  %v2468 = vpop.f32.mrf.mxu0
  %v2469 = vadd.f32 0.0, %v2468
  %v2470 = vpop.f32.mrf.mxu0
  %2471 = vmatprep.mubr.f32.mxu0 0.0
  %2472 = vmatmul.mubr.f32.gmra.mxu0 %v1056
  %v2473 = vpop.f32.mrf.mxu0
  %v2474 = vadd.f32 0.0, %v2473
  %v2475 = vpop.f32.mrf.mxu0
  %2476 = vmatprep.mubr.f32.mxu0 0.0
  %2477 = vmatmul.mubr.f32.gmra.mxu0 %v1059
  %v2478 = vpop.f32.mrf.mxu0
  %v2479 = vadd.f32 0.0, %v2478
  %v2480 = vpop.f32.mrf.mxu0
  %2481 = vmatprep.mubr.f32.mxu0 0.0
  %2482 = vmatmul.mubr.f32.gmra.mxu0 %v1062
  %v2483 = vpop.f32.mrf.mxu0
  %v2484 = vadd.f32 0.0, %v2483
  %v2485 = vpop.f32.mrf.mxu0
  %2486 = vmatprep.mubr.f32.mxu0 0.0
  %2487 = vmatmul.mubr.f32.gmra.mxu0 %v1065
  %v2488 = vpop.f32.mrf.mxu0
  %v2489 = vadd.f32 0.0, %v2488
  %v2490 = vpop.f32.mrf.mxu0
  %2491 = vmatprep.mubr.f32.mxu0 0.0
  %2492 = vmatmul.mubr.f32.gmra.mxu0 %v1068
  %v2493 = vpop.f32.mrf.mxu0
  %v2494 = vadd.f32 0.0, %v2493
  %v2495 = vpop.f32.mrf.mxu0
  %2496 = vmatprep.mubr.f32.mxu0 0.0
  %2497 = vmatmul.mubr.f32.gmra.mxu0 %v1071
  %v2498 = vpop.f32.mrf.mxu0
  %v2499 = vadd.f32 0.0, %v2498
  %v2500 = vpop.f32.mrf.mxu0
  %2501 = vmatprep.mubr.f32.mxu0 0.0
  %2502 = vmatmul.mubr.f32.gmra.mxu0 %v1074
  %v2503 = vpop.f32.mrf.mxu0
  %v2504 = vadd.f32 0.0, %v2503
  %v2505 = vpop.f32.mrf.mxu0
  %2506 = vmatprep.mubr.f32.mxu0 0.0
  %2507 = vmatmul.mubr.f32.gmra.mxu0 %v1077
  %v2508 = vpop.f32.mrf.mxu0
  %v2509 = vadd.f32 0.0, %v2508
  %v2510 = vpop.f32.mrf.mxu0
  %2511 = vmatprep.mubr.f32.mxu0 0.0
  %2512 = vmatmul.mubr.f32.gmra.mxu0 %v1080
  %v2513 = vpop.f32.mrf.mxu0
  %v2514 = vadd.f32 0.0, %v2513
  %v2515 = vpop.f32.mrf.mxu0
  %2516 = vmatprep.mubr.f32.mxu0 0.0
  %2517 = vmatmul.mubr.f32.gmra.mxu0 %v1083
  %v2518 = vpop.f32.mrf.mxu0
  %v2519 = vadd.f32 0.0, %v2518
  %v2520 = vpop.f32.mrf.mxu0
  %2521 = vmatprep.mubr.f32.mxu0 0.0
  %2522 = vmatmul.mubr.f32.gmra.mxu0 %v1086
  %v2523 = vpop.f32.mrf.mxu0
  %v2524 = vadd.f32 0.0, %v2523
  %v2525 = vpop.f32.mrf.mxu0
  %2526 = vmatprep.mubr.f32.mxu0 0.0
  %2527 = vmatmul.mubr.f32.gmra.mxu0 %v1089
  %v2528 = vpop.f32.mrf.mxu0
  %v2529 = vadd.f32 0.0, %v2528
  %v2530 = vpop.f32.mrf.mxu0
  %2531 = vmatprep.mubr.f32.mxu0 0.0
  %2532 = vmatmul.mubr.f32.gmra.mxu0 %v1092
  %v2533 = vpop.f32.mrf.mxu0
  %v2534 = vadd.f32 0.0, %v2533
  %v2535 = vpop.f32.mrf.mxu0
  %2536 = vmatprep.mubr.f32.mxu0 0.0
  %2537 = vmatmul.mubr.f32.gmra.mxu0 %v1095
  %v2538 = vpop.f32.mrf.mxu0
  %v2539 = vadd.f32 0.0, %v2538
  %v2540 = vpop.f32.mrf.mxu0
  %2541 = vmatprep.mubr.f32.mxu0 0.0
  %2542 = vmatmul.mubr.f32.gmra.mxu0 %v1098
  %v2543 = vpop.f32.mrf.mxu0
  %v2544 = vadd.f32 0.0, %v2543
  %v2545 = vpop.f32.mrf.mxu0
  %2546 = vmatprep.mubr.f32.mxu0 0.0
  %2547 = vmatmul.mubr.f32.gmra.mxu0 %v1101
  %v2548 = vpop.f32.mrf.mxu0
  %v2549 = vadd.f32 0.0, %v2548
  %v2550 = vpop.f32.mrf.mxu0
  %2551 = vmatprep.mubr.f32.mxu0 0.0
  %2552 = vmatmul.mubr.f32.gmra.mxu0 %v1104
  %v2553 = vpop.f32.mrf.mxu0
  %v2554 = vadd.f32 0.0, %v2553
  %v2555 = vpop.f32.mrf.mxu0
  %2556 = vmatprep.mubr.f32.mxu0 0.0
  %2557 = vmatmul.mubr.f32.gmra.mxu0 %v1107
  %v2558 = vpop.f32.mrf.mxu0
  %v2559 = vadd.f32 0.0, %v2558
  %v2560 = vpop.f32.mrf.mxu0
  %2561 = vmatprep.mubr.f32.mxu0 0.0
  %2562 = vmatmul.mubr.f32.gmra.mxu0 %v1110
  %v2563 = vpop.f32.mrf.mxu0
  %v2564 = vadd.f32 0.0, %v2563
  %v2565 = vpop.f32.mrf.mxu0
  %2566 = vmatprep.mubr.f32.mxu0 0.0
  %2567 = vmatmul.mubr.f32.gmra.mxu0 %v1113
  %v2568 = vpop.f32.mrf.mxu0
  %v2569 = vadd.f32 0.0, %v2568
  %v2570 = vpop.f32.mrf.mxu0
  %2571 = vmatprep.mubr.f32.mxu0 0.0
  %2572 = vmatmul.mubr.f32.gmra.mxu0 %v1116
  %v2573 = vpop.f32.mrf.mxu0
  %v2574 = vadd.f32 0.0, %v2573
  %v2575 = vpop.f32.mrf.mxu0
  %2576 = vmatprep.mubr.f32.mxu0 0.0
  %2577 = vmatmul.mubr.f32.gmra.mxu0 %v1119
  %v2578 = vpop.f32.mrf.mxu0
  %v2579 = vadd.f32 0.0, %v2578
  %v2580 = vpop.f32.mrf.mxu0
  %2581 = vmatprep.mubr.f32.mxu0 0.0
  %2582 = vmatmul.mubr.f32.gmra.mxu0 %v1122
  %v2583 = vpop.f32.mrf.mxu0
  %v2584 = vadd.f32 0.0, %v2583
  %v2585 = vpop.f32.mrf.mxu0
  %2586 = vmatprep.mubr.f32.mxu0 0.0
  %2587 = vmatmul.mubr.f32.gmra.mxu0 %v1125
  %v2588 = vpop.f32.mrf.mxu0
  %v2589 = vadd.f32 0.0, %v2588
  %v2590 = vpop.f32.mrf.mxu0
  %2591 = vmatprep.mubr.f32.mxu0 0.0
  %2592 = vmatmul.mubr.f32.gmra.mxu0 %v1128
  %v2593 = vpop.f32.mrf.mxu0
  %v2594 = vadd.f32 0.0, %v2593
  %v2595 = vpop.f32.mrf.mxu0
  %2596 = vmatprep.mubr.f32.mxu0 0.0
  %2597 = vmatmul.mubr.f32.gmra.mxu0 %v1131
  %v2598 = vpop.f32.mrf.mxu0
  %v2599 = vadd.f32 0.0, %v2598
  %v2600 = vpop.f32.mrf.mxu0
  %2601 = vmatprep.mubr.f32.mxu0 0.0
  %2602 = vmatmul.mubr.f32.gmra.mxu0 %v1134
  %v2603 = vpop.f32.mrf.mxu0
  %v2604 = vadd.f32 0.0, %v2603
  %v2605 = vpop.f32.mrf.mxu0
  %2606 = vmatprep.mubr.f32.mxu0 0.0
  %2607 = vmatmul.mubr.f32.gmra.mxu0 %v1137
  %v2608 = vpop.f32.mrf.mxu0
  %v2609 = vadd.f32 0.0, %v2608
  %v2610 = vpop.f32.mrf.mxu0
  %2611 = vmatprep.mubr.f32.mxu0 0.0
  %2612 = vmatmul.mubr.f32.gmra.mxu0 %v1140
  %v2613 = vpop.f32.mrf.mxu0
  %v2614 = vadd.f32 0.0, %v2613
  %v2615 = vpop.f32.mrf.mxu0
  %2616 = vmatprep.mubr.f32.mxu0 0.0
  %2617 = vmatmul.mubr.f32.gmra.mxu0 %v1143
  %v2618 = vpop.f32.mrf.mxu0
  %v2619 = vadd.f32 0.0, %v2618
  %v2620 = vpop.f32.mrf.mxu0
  %2621 = vmatprep.mubr.f32.mxu0 0.0
  %2622 = vmatmul.mubr.f32.gmra.mxu0 %v1146
  %v2623 = vpop.f32.mrf.mxu0
  %v2624 = vadd.f32 0.0, %v2623
  %v2625 = vpop.f32.mrf.mxu0
  %2626 = vmatprep.mubr.f32.mxu0 0.0
  %2627 = vmatmul.mubr.f32.gmra.mxu0 %v1149
  %v2628 = vpop.f32.mrf.mxu0
  %v2629 = vadd.f32 0.0, %v2628
  %v2630 = vpop.f32.mrf.mxu0
  %2631 = vmatprep.mubr.f32.mxu0 0.0
  %2632 = vmatmul.mubr.f32.gmra.mxu0 %v1152
  %v2633 = vpop.f32.mrf.mxu0
  %v2634 = vadd.f32 0.0, %v2633
  %v2635 = vpop.f32.mrf.mxu0
  %2636 = vmatprep.mubr.f32.mxu0 0.0
  %2637 = vmatmul.mubr.f32.gmra.mxu0 %v1155
  %v2638 = vpop.f32.mrf.mxu0
  %v2639 = vadd.f32 0.0, %v2638
  %v2640 = vpop.f32.mrf.mxu0
  %2641 = vmatprep.mubr.f32.mxu0 0.0
  %2642 = vmatmul.mubr.f32.gmra.mxu0 %v1158
  %v2643 = vpop.f32.mrf.mxu0
  %v2644 = vadd.f32 0.0, %v2643
  %v2645 = vpop.f32.mrf.mxu0
  %2646 = vmatprep.mubr.f32.mxu0 0.0
  %2647 = vmatmul.mubr.f32.gmra.mxu0 %v1161
  %v2648 = vpop.f32.mrf.mxu0
  %v2649 = vadd.f32 0.0, %v2648
  %v2650 = vpop.f32.mrf.mxu0
  %2651 = vmatprep.mubr.f32.mxu0 0.0
  %2652 = vmatmul.mubr.f32.gmra.mxu0 %v1164
  %v2653 = vpop.f32.mrf.mxu0
  %v2654 = vadd.f32 0.0, %v2653
  %v2655 = vpop.f32.mrf.mxu0
  %2656 = vmatprep.mubr.f32.mxu0 0.0
  %2657 = vmatmul.mubr.f32.gmra.mxu0 %v1167
  %v2658 = vpop.f32.mrf.mxu0
  %v2659 = vadd.f32 0.0, %v2658
  %v2660 = vpop.f32.mrf.mxu0
  %2661 = vmatprep.mubr.f32.mxu0 0.0
  %2662 = vmatmul.mubr.f32.gmra.mxu0 %v1170
  %v2663 = vpop.f32.mrf.mxu0
  %v2664 = vadd.f32 0.0, %v2663
  %v2665 = vpop.f32.mrf.mxu0
  %2666 = vmatprep.mubr.f32.mxu0 0.0
  %2667 = vmatmul.mubr.f32.gmra.mxu0 %v1173
  %v2668 = vpop.f32.mrf.mxu0
  %v2669 = vadd.f32 0.0, %v2668
  %v2670 = vpop.f32.mrf.mxu0
  %2671 = vmatprep.mubr.f32.mxu0 0.0
  %2672 = vmatmul.mubr.f32.gmra.mxu0 %v1176
  %v2673 = vpop.f32.mrf.mxu0
  %v2674 = vadd.f32 0.0, %v2673
  %v2675 = vpop.f32.mrf.mxu0
  %2676 = vmatprep.mubr.f32.mxu0 0.0
  %2677 = vmatmul.mubr.f32.gmra.mxu0 %v1179
  %v2678 = vpop.f32.mrf.mxu0
  %v2679 = vadd.f32 0.0, %v2678
  %v2680 = vpop.f32.mrf.mxu0
  %2681 = vmatprep.mubr.f32.mxu0 0.0
  %2682 = vmatmul.mubr.f32.gmra.mxu0 %v1182
  %v2683 = vpop.f32.mrf.mxu0
  %v2684 = vadd.f32 0.0, %v2683
  %v2685 = vpop.f32.mrf.mxu0
  %2686 = vmatprep.mubr.f32.mxu0 0.0
  %2687 = vmatmul.mubr.f32.gmra.mxu0 %v1185
  %v2688 = vpop.f32.mrf.mxu0
  %v2689 = vadd.f32 0.0, %v2688
  %v2690 = vpop.f32.mrf.mxu0
  %2691 = vmatprep.mubr.f32.mxu0 0.0
  %2692 = vmatmul.mubr.f32.gmra.mxu0 %v1188
  %v2693 = vpop.f32.mrf.mxu0
  %v2694 = vadd.f32 0.0, %v2693
  %v2695 = vpop.f32.mrf.mxu0
  %2696 = vmatprep.mubr.f32.mxu0 0.0
  %2697 = vmatmul.mubr.f32.gmra.mxu0 %v1191
  %v2698 = vpop.f32.mrf.mxu0
  %v2699 = vadd.f32 0.0, %v2698
  %v2700 = vpop.f32.mrf.mxu0
  %2701 = vdwg.mxu0
  %v2702 = vmax.f32 %v1264, %v1624
  %v2703 = vmax.f32 %v1269, %v1629
  %v2704 = vmax.f32 %v1274, %v1634
  %v2705 = vmax.f32 %v1279, %v1639
  %v2706 = vmax.f32 %v1284, %v1644
  %v2707 = vmax.f32 %v1289, %v1649
  %v2708 = vmax.f32 %v1294, %v1654
  %v2709 = vmax.f32 %v1299, %v1659
  %v2710 = vmax.f32 %v1304, %v1664
  %v2711 = vmax.f32 %v1309, %v1669
  %v2712 = vmax.f32 %v1314, %v1674
  %v2713 = vmax.f32 %v1319, %v1679
  %v2714 = vmax.f32 %v1324, %v1684
  %v2715 = vmax.f32 %v1329, %v1689
  %v2716 = vmax.f32 %v1334, %v1694
  %v2717 = vmax.f32 %v1339, %v1699
  %v2718 = vmax.f32 %v1344, %v1704
  %v2719 = vmax.f32 %v1349, %v1709
  %v2720 = vmax.f32 %v1354, %v1714
  %v2721 = vmax.f32 %v1359, %v1719
  %v2722 = vmax.f32 %v1364, %v1724
  %v2723 = vmax.f32 %v1369, %v1729
  %v2724 = vmax.f32 %v1374, %v1734
  %v2725 = vmax.f32 %v1379, %v1739
  %v2726 = vmax.f32 %v1384, %v1744
  %v2727 = vmax.f32 %v1389, %v1749
  %v2728 = vmax.f32 %v1394, %v1754
  %v2729 = vmax.f32 %v1399, %v1759
  %v2730 = vmax.f32 %v1404, %v1764
  %v2731 = vmax.f32 %v1409, %v1769
  %v2732 = vmax.f32 %v1414, %v1774
  %v2733 = vmax.f32 %v1419, %v1779
  %v2734 = vmax.f32 %v1424, %v1784
  %v2735 = vmax.f32 %v1429, %v1789
  %v2736 = vmax.f32 %v1434, %v1794
  %v2737 = vmax.f32 %v1439, %v1799
  %v2738 = vmax.f32 %v1444, %v1804
  %v2739 = vmax.f32 %v1449, %v1809
  %v2740 = vmax.f32 %v1454, %v1814
  %v2741 = vmax.f32 %v1459, %v1819
  %v2742 = vmax.f32 %v1464, %v1824
  %v2743 = vmax.f32 %v1469, %v1829
  %v2744 = vmax.f32 %v1474, %v1834
  %v2745 = vmax.f32 %v1479, %v1839
  %v2746 = vmax.f32 %v1484, %v1844
  %v2747 = vmax.f32 %v1489, %v1849
  %v2748 = vmax.f32 %v1494, %v1854
  %v2749 = vmax.f32 %v1499, %v1859
  %v2750 = vmax.f32 %v1504, %v1864
  %v2751 = vmax.f32 %v1509, %v1869
  %v2752 = vmax.f32 %v1514, %v1874
  %v2753 = vmax.f32 %v1519, %v1879
  %v2754 = vmax.f32 %v1524, %v1884
  %v2755 = vmax.f32 %v1529, %v1889
  %v2756 = vmax.f32 %v1534, %v1894
  %v2757 = vmax.f32 %v1539, %v1899
  %v2758 = vmax.f32 %v1544, %v1904
  %v2759 = vmax.f32 %v1549, %v1909
  %v2760 = vmax.f32 %v1554, %v1914
  %v2761 = vmax.f32 %v1559, %v1919
  %v2762 = vmax.f32 %v1564, %v1924
  %v2763 = vmax.f32 %v1569, %v1929
  %v2764 = vmax.f32 %v1574, %v1934
  %v2765 = vmax.f32 %v1579, %v1939
  %v2766 = vmax.f32 %v1584, %v1944
  %v2767 = vmax.f32 %v1589, %v1949
  %v2768 = vmax.f32 %v1594, %v1954
  %v2769 = vmax.f32 %v1599, %v1959
  %v2770 = vmax.f32 %v1604, %v1964
  %v2771 = vmax.f32 %v1609, %v1969
  %v2772 = vmax.f32 %v1614, %v1974
  %v2773 = vmax.f32 %v1619, %v1979
  %v2774 = vmax.f32 %v1984, %v2344
  %v2775 = vmax.f32 %v1989, %v2349
  %v2776 = vmax.f32 %v1994, %v2354
  %v2777 = vmax.f32 %v1999, %v2359
  %v2778 = vmax.f32 %v2004, %v2364
  %v2779 = vmax.f32 %v2009, %v2369
  %v2780 = vmax.f32 %v2014, %v2374
  %v2781 = vmax.f32 %v2019, %v2379
  %v2782 = vmax.f32 %v2024, %v2384
  %v2783 = vmax.f32 %v2029, %v2389
  %v2784 = vmax.f32 %v2034, %v2394
  %v2785 = vmax.f32 %v2039, %v2399
  %v2786 = vmax.f32 %v2044, %v2404
  %v2787 = vmax.f32 %v2049, %v2409
  %v2788 = vmax.f32 %v2054, %v2414
  %v2789 = vmax.f32 %v2059, %v2419
  %v2790 = vmax.f32 %v2064, %v2424
  %v2791 = vmax.f32 %v2069, %v2429
  %v2792 = vmax.f32 %v2074, %v2434
  %v2793 = vmax.f32 %v2079, %v2439
  %v2794 = vmax.f32 %v2084, %v2444
  %v2795 = vmax.f32 %v2089, %v2449
  %v2796 = vmax.f32 %v2094, %v2454
  %v2797 = vmax.f32 %v2099, %v2459
  %v2798 = vmax.f32 %v2104, %v2464
  %v2799 = vmax.f32 %v2109, %v2469
  %v2800 = vmax.f32 %v2114, %v2474
  %v2801 = vmax.f32 %v2119, %v2479
  %v2802 = vmax.f32 %v2124, %v2484
  %v2803 = vmax.f32 %v2129, %v2489
  %v2804 = vmax.f32 %v2134, %v2494
  %v2805 = vmax.f32 %v2139, %v2499
  %v2806 = vmax.f32 %v2144, %v2504
  %v2807 = vmax.f32 %v2149, %v2509
  %v2808 = vmax.f32 %v2154, %v2514
  %v2809 = vmax.f32 %v2159, %v2519
  %v2810 = vmax.f32 %v2164, %v2524
  %v2811 = vmax.f32 %v2169, %v2529
  %v2812 = vmax.f32 %v2174, %v2534
  %v2813 = vmax.f32 %v2179, %v2539
  %v2814 = vmax.f32 %v2184, %v2544
  %v2815 = vmax.f32 %v2189, %v2549
  %v2816 = vmax.f32 %v2194, %v2554
  %v2817 = vmax.f32 %v2199, %v2559
  %v2818 = vmax.f32 %v2204, %v2564
  %v2819 = vmax.f32 %v2209, %v2569
  %v2820 = vmax.f32 %v2214, %v2574
  %v2821 = vmax.f32 %v2219, %v2579
  %v2822 = vmax.f32 %v2224, %v2584
  %v2823 = vmax.f32 %v2229, %v2589
  %v2824 = vmax.f32 %v2234, %v2594
  %v2825 = vmax.f32 %v2239, %v2599
  %v2826 = vmax.f32 %v2244, %v2604
  %v2827 = vmax.f32 %v2249, %v2609
  %v2828 = vmax.f32 %v2254, %v2614
  %v2829 = vmax.f32 %v2259, %v2619
  %v2830 = vmax.f32 %v2264, %v2624
  %v2831 = vmax.f32 %v2269, %v2629
  %v2832 = vmax.f32 %v2274, %v2634
  %v2833 = vmax.f32 %v2279, %v2639
  %v2834 = vmax.f32 %v2284, %v2644
  %v2835 = vmax.f32 %v2289, %v2649
  %v2836 = vmax.f32 %v2294, %v2654
  %v2837 = vmax.f32 %v2299, %v2659
  %v2838 = vmax.f32 %v2304, %v2664
  %v2839 = vmax.f32 %v2309, %v2669
  %v2840 = vmax.f32 %v2314, %v2674
  %v2841 = vmax.f32 %v2319, %v2679
  %v2842 = vmax.f32 %v2324, %v2684
  %v2843 = vmax.f32 %v2329, %v2689
  %v2844 = vmax.f32 %v2334, %v2694
  %v2845 = vmax.f32 %v2339, %v2699
  %v2846 = vmax.f32 %v2702, %v2774
  %v2847 = vmax.f32 %v2703, %v2775
  %v2848 = vmax.f32 %v2704, %v2776
  %v2849 = vmax.f32 %v2705, %v2777
  %v2850 = vmax.f32 %v2706, %v2778
  %v2851 = vmax.f32 %v2707, %v2779
  %v2852 = vmax.f32 %v2708, %v2780
  %v2853 = vmax.f32 %v2709, %v2781
  %v2854 = vmax.f32 %v2710, %v2782
  %v2855 = vmax.f32 %v2711, %v2783
  %v2856 = vmax.f32 %v2712, %v2784
  %v2857 = vmax.f32 %v2713, %v2785
  %v2858 = vmax.f32 %v2714, %v2786
  %v2859 = vmax.f32 %v2715, %v2787
  %v2860 = vmax.f32 %v2716, %v2788
  %v2861 = vmax.f32 %v2717, %v2789
  %v2862 = vmax.f32 %v2718, %v2790
  %v2863 = vmax.f32 %v2719, %v2791
  %v2864 = vmax.f32 %v2720, %v2792
  %v2865 = vmax.f32 %v2721, %v2793
  %v2866 = vmax.f32 %v2722, %v2794
  %v2867 = vmax.f32 %v2723, %v2795
  %v2868 = vmax.f32 %v2724, %v2796
  %v2869 = vmax.f32 %v2725, %v2797
  %v2870 = vmax.f32 %v2726, %v2798
  %v2871 = vmax.f32 %v2727, %v2799
  %v2872 = vmax.f32 %v2728, %v2800
  %v2873 = vmax.f32 %v2729, %v2801
  %v2874 = vmax.f32 %v2730, %v2802
  %v2875 = vmax.f32 %v2731, %v2803
  %v2876 = vmax.f32 %v2732, %v2804
  %v2877 = vmax.f32 %v2733, %v2805
  %v2878 = vmax.f32 %v2734, %v2806
  %v2879 = vmax.f32 %v2735, %v2807
  %v2880 = vmax.f32 %v2736, %v2808
  %v2881 = vmax.f32 %v2737, %v2809
  %v2882 = vmax.f32 %v2738, %v2810
  %v2883 = vmax.f32 %v2739, %v2811
  %v2884 = vmax.f32 %v2740, %v2812
  %v2885 = vmax.f32 %v2741, %v2813
  %v2886 = vmax.f32 %v2742, %v2814
  %v2887 = vmax.f32 %v2743, %v2815
  %v2888 = vmax.f32 %v2744, %v2816
  %v2889 = vmax.f32 %v2745, %v2817
  %v2890 = vmax.f32 %v2746, %v2818
  %v2891 = vmax.f32 %v2747, %v2819
  %v2892 = vmax.f32 %v2748, %v2820
  %v2893 = vmax.f32 %v2749, %v2821
  %v2894 = vmax.f32 %v2750, %v2822
  %v2895 = vmax.f32 %v2751, %v2823
  %v2896 = vmax.f32 %v2752, %v2824
  %v2897 = vmax.f32 %v2753, %v2825
  %v2898 = vmax.f32 %v2754, %v2826
  %v2899 = vmax.f32 %v2755, %v2827
  %v2900 = vmax.f32 %v2756, %v2828
  %v2901 = vmax.f32 %v2757, %v2829
  %v2902 = vmax.f32 %v2758, %v2830
  %v2903 = vmax.f32 %v2759, %v2831
  %v2904 = vmax.f32 %v2760, %v2832
  %v2905 = vmax.f32 %v2761, %v2833
  %v2906 = vmax.f32 %v2762, %v2834
  %v2907 = vmax.f32 %v2763, %v2835
  %v2908 = vmax.f32 %v2764, %v2836
  %v2909 = vmax.f32 %v2765, %v2837
  %v2910 = vmax.f32 %v2766, %v2838
  %v2911 = vmax.f32 %v2767, %v2839
  %v2912 = vmax.f32 %v2768, %v2840
  %v2913 = vmax.f32 %v2769, %v2841
  %v2914 = vmax.f32 %v2770, %v2842
  %v2915 = vmax.f32 %v2771, %v2843
  %v2916 = vmax.f32 %v2772, %v2844
  %v2917 = vmax.f32 %v2773, %v2845
  %v2918 = vld [vmem:[%s2] sm:$0x1]
  %v2920 = vlaneseq
  %v2921 = vshrl.u32 %v2920, 7
  %v2922 = vsub.s32 0, %v2921
  %v2923 = vrot.slane %v2918, %v2922
  %v2925 = vadd.f32 %v2846, %v2923
  %v2926 = vadd.f32 %v2847, %v2923
  %v2927 = vadd.f32 %v2848, %v2923
  %v2928 = vadd.f32 %v2849, %v2923
  %v2929 = vadd.f32 %v2850, %v2923
  %v2930 = vadd.f32 %v2851, %v2923
  %v2931 = vadd.f32 %v2852, %v2923
  %v2932 = vadd.f32 %v2853, %v2923
  %v2933 = vadd.f32 %v2854, %v2923
  %v2934 = vadd.f32 %v2855, %v2923
  %v2935 = vadd.f32 %v2856, %v2923
  %v2936 = vadd.f32 %v2857, %v2923
  %v2937 = vadd.f32 %v2858, %v2923
  %v2938 = vadd.f32 %v2859, %v2923
  %v2939 = vadd.f32 %v2860, %v2923
  %v2940 = vadd.f32 %v2861, %v2923
  %v2941 = vadd.f32 %v2862, %v2923
  %v2942 = vadd.f32 %v2863, %v2923
  %v2943 = vadd.f32 %v2864, %v2923
  %v2944 = vadd.f32 %v2865, %v2923
  %v2945 = vadd.f32 %v2866, %v2923
  %v2946 = vadd.f32 %v2867, %v2923
  %v2947 = vadd.f32 %v2868, %v2923
  %v2948 = vadd.f32 %v2869, %v2923
  %v2949 = vadd.f32 %v2870, %v2923
  %v2950 = vadd.f32 %v2871, %v2923
  %v2951 = vadd.f32 %v2872, %v2923
  %v2952 = vadd.f32 %v2873, %v2923
  %v2953 = vadd.f32 %v2874, %v2923
  %v2954 = vadd.f32 %v2875, %v2923
  %v2955 = vadd.f32 %v2876, %v2923
  %v2956 = vadd.f32 %v2877, %v2923
  %v2957 = vadd.f32 %v2878, %v2923
  %v2958 = vadd.f32 %v2879, %v2923
  %v2959 = vadd.f32 %v2880, %v2923
  %v2960 = vadd.f32 %v2881, %v2923
  %v2961 = vadd.f32 %v2882, %v2923
  %v2962 = vadd.f32 %v2883, %v2923
  %v2963 = vadd.f32 %v2884, %v2923
  %v2964 = vadd.f32 %v2885, %v2923
  %v2965 = vadd.f32 %v2886, %v2923
  %v2966 = vadd.f32 %v2887, %v2923
  %v2967 = vadd.f32 %v2888, %v2923
  %v2968 = vadd.f32 %v2889, %v2923
  %v2969 = vadd.f32 %v2890, %v2923
  %v2970 = vadd.f32 %v2891, %v2923
  %v2971 = vadd.f32 %v2892, %v2923
  %v2972 = vadd.f32 %v2893, %v2923
  %v2973 = vadd.f32 %v2894, %v2923
  %v2974 = vadd.f32 %v2895, %v2923
  %v2975 = vadd.f32 %v2896, %v2923
  %v2976 = vadd.f32 %v2897, %v2923
  %v2977 = vadd.f32 %v2898, %v2923
  %v2978 = vadd.f32 %v2899, %v2923
  %v2979 = vadd.f32 %v2900, %v2923
  %v2980 = vadd.f32 %v2901, %v2923
  %v2981 = vadd.f32 %v2902, %v2923
  %v2982 = vadd.f32 %v2903, %v2923
  %v2983 = vadd.f32 %v2904, %v2923
  %v2984 = vadd.f32 %v2905, %v2923
  %v2985 = vadd.f32 %v2906, %v2923
  %v2986 = vadd.f32 %v2907, %v2923
  %v2987 = vadd.f32 %v2908, %v2923
  %v2988 = vadd.f32 %v2909, %v2923
  %v2989 = vadd.f32 %v2910, %v2923
  %v2990 = vadd.f32 %v2911, %v2923
  %v2991 = vadd.f32 %v2912, %v2923
  %v2992 = vadd.f32 %v2913, %v2923
  %v2993 = vadd.f32 %v2914, %v2923
  %v2994 = vadd.f32 %v2915, %v2923
  %v2995 = vadd.f32 %v2916, %v2923
  %v2996 = vadd.f32 %v2917, %v2923
  %v2997 = vmax.f32 %v2925, 0.0
  %v2998 = vmax.f32 %v2926, 0.0
  %v2999 = vmax.f32 %v2927, 0.0
  %v3000 = vmax.f32 %v2928, 0.0
  %v3001 = vmax.f32 %v2929, 0.0
  %v3002 = vmax.f32 %v2930, 0.0
  %v3003 = vmax.f32 %v2931, 0.0
  %v3004 = vmax.f32 %v2932, 0.0
  %v3005 = vmax.f32 %v2933, 0.0
  %v3006 = vmax.f32 %v2934, 0.0
  %v3007 = vmax.f32 %v2935, 0.0
  %v3008 = vmax.f32 %v2936, 0.0
  %v3009 = vmax.f32 %v2937, 0.0
  %v3010 = vmax.f32 %v2938, 0.0
  %v3011 = vmax.f32 %v2939, 0.0
  %v3012 = vmax.f32 %v2940, 0.0
  %v3013 = vmax.f32 %v2941, 0.0
  %v3014 = vmax.f32 %v2942, 0.0
  %v3015 = vmax.f32 %v2943, 0.0
  %v3016 = vmax.f32 %v2944, 0.0
  %v3017 = vmax.f32 %v2945, 0.0
  %v3018 = vmax.f32 %v2946, 0.0
  %v3019 = vmax.f32 %v2947, 0.0
  %v3020 = vmax.f32 %v2948, 0.0
  %v3021 = vmax.f32 %v2949, 0.0
  %v3022 = vmax.f32 %v2950, 0.0
  %v3023 = vmax.f32 %v2951, 0.0
  %v3024 = vmax.f32 %v2952, 0.0
  %v3025 = vmax.f32 %v2953, 0.0
  %v3026 = vmax.f32 %v2954, 0.0
  %v3027 = vmax.f32 %v2955, 0.0
  %v3028 = vmax.f32 %v2956, 0.0
  %v3029 = vmax.f32 %v2957, 0.0
  %v3030 = vmax.f32 %v2958, 0.0
  %v3031 = vmax.f32 %v2959, 0.0
  %v3032 = vmax.f32 %v2960, 0.0
  %v3033 = vmax.f32 %v2961, 0.0
  %v3034 = vmax.f32 %v2962, 0.0
  %v3035 = vmax.f32 %v2963, 0.0
  %v3036 = vmax.f32 %v2964, 0.0
  %v3037 = vmax.f32 %v2965, 0.0
  %v3038 = vmax.f32 %v2966, 0.0
  %v3039 = vmax.f32 %v2967, 0.0
  %v3040 = vmax.f32 %v2968, 0.0
  %v3041 = vmax.f32 %v2969, 0.0
  %v3042 = vmax.f32 %v2970, 0.0
  %v3043 = vmax.f32 %v2971, 0.0
  %v3044 = vmax.f32 %v2972, 0.0
  %v3045 = vmax.f32 %v2973, 0.0
  %v3046 = vmax.f32 %v2974, 0.0
  %v3047 = vmax.f32 %v2975, 0.0
  %v3048 = vmax.f32 %v2976, 0.0
  %v3049 = vmax.f32 %v2977, 0.0
  %v3050 = vmax.f32 %v2978, 0.0
  %v3051 = vmax.f32 %v2979, 0.0
  %v3052 = vmax.f32 %v2980, 0.0
  %v3053 = vmax.f32 %v2981, 0.0
  %v3054 = vmax.f32 %v2982, 0.0
  %v3055 = vmax.f32 %v2983, 0.0
  %v3056 = vmax.f32 %v2984, 0.0
  %v3057 = vmax.f32 %v2985, 0.0
  %v3058 = vmax.f32 %v2986, 0.0
  %v3059 = vmax.f32 %v2987, 0.0
  %v3060 = vmax.f32 %v2988, 0.0
  %v3061 = vmax.f32 %v2989, 0.0
  %v3062 = vmax.f32 %v2990, 0.0
  %v3063 = vmax.f32 %v2991, 0.0
  %v3064 = vmax.f32 %v2992, 0.0
  %v3065 = vmax.f32 %v2993, 0.0
  %v3066 = vmax.f32 %v2994, 0.0
  %v3067 = vmax.f32 %v2995, 0.0
  %v3068 = vmax.f32 %v2996, 0.0
  %v3069 = vld [vmem:[%s3] sm:$0xff]
  %v3070 = vld [vmem:[%s3 + $0x8] sm:$0xff]
  %v3071 = vld [vmem:[%s3 + $0x10] sm:$0xff]
  %v3072 = vld [vmem:[%s3 + $0x18] sm:$0xff]
  %v3073 = vld [vmem:[%s3 + $0x20] sm:$0xff]
  %v3074 = vld [vmem:[%s3 + $0x28] sm:$0xff]
  %v3075 = vld [vmem:[%s3 + $0x30] sm:$0xff]
  %v3076 = vld [vmem:[%s3 + $0x38] sm:$0xff]
  %s3077 = scalar_lea.vmem %s3, 64
  %v3078 = vld [vmem:[%s3077] sm:$0xff]
  %v3079 = vld [vmem:[%s3077 + $0x8] sm:$0xff]
  %v3080 = vld [vmem:[%s3077 + $0x10] sm:$0xff]
  %v3081 = vld [vmem:[%s3077 + $0x18] sm:$0xff]
  %v3082 = vld [vmem:[%s3077 + $0x20] sm:$0xff]
  %v3083 = vld [vmem:[%s3077 + $0x28] sm:$0xff]
  %v3084 = vld [vmem:[%s3077 + $0x30] sm:$0xff]
  %v3085 = vld [vmem:[%s3077 + $0x38] sm:$0xff]
  %vm3086 = vcmask 523264
  %v3088 = vsel %vm3086, %v2999, 0
  %v3091 = vsel %vm3086, %v3000, 0
  %v3094 = vsel %vm3086, %v3001, 0
  %v3097 = vsel %vm3086, %v3002, 0
  %v3100 = vsel %vm3086, %v3003, 0
  %v3103 = vsel %vm3086, %v3004, 0
  %v3106 = vsel %vm3086, %v3005, 0
  %v3109 = vsel %vm3086, %v3006, 0
  %v3112 = vsel %vm3086, %v3011, 0
  %v3115 = vsel %vm3086, %v3012, 0
  %v3118 = vsel %vm3086, %v3013, 0
  %v3121 = vsel %vm3086, %v3014, 0
  %v3124 = vsel %vm3086, %v3015, 0
  %v3127 = vsel %vm3086, %v3016, 0
  %v3130 = vsel %vm3086, %v3017, 0
  %v3133 = vsel %vm3086, %v3018, 0
  %v3136 = vsel %vm3086, %v3023, 0
  %v3139 = vsel %vm3086, %v3024, 0
  %v3142 = vsel %vm3086, %v3025, 0
  %v3145 = vsel %vm3086, %v3026, 0
  %v3148 = vsel %vm3086, %v3027, 0
  %v3151 = vsel %vm3086, %v3028, 0
  %v3154 = vsel %vm3086, %v3029, 0
  %v3157 = vsel %vm3086, %v3030, 0
  %v3160 = vsel %vm3086, %v3035, 0
  %v3163 = vsel %vm3086, %v3036, 0
  %v3166 = vsel %vm3086, %v3037, 0
  %v3169 = vsel %vm3086, %v3038, 0
  %v3172 = vsel %vm3086, %v3039, 0
  %v3175 = vsel %vm3086, %v3040, 0
  %v3178 = vsel %vm3086, %v3041, 0
  %v3181 = vsel %vm3086, %v3042, 0
  %3183 = vmatprep.subr.mxu0 0.0
  %3184 = vmatpush1.msra.mxu0 0.0
  %3185 = vmatprep.subr.mxu0 0.0
  %3186 = vmatpush1.msra.mxu0 0.0
  %3187 = vmatprep.subr.mxu0 0.0
  %3188 = vmatpush1.msra.mxu0 0.0
  %3189 = vmatprep.subr.mxu0 0.0
  %3190 = vmatpush1.msra.mxu0 0.0
  %3191 = vmatprep.subr.mxu0 0.0
  %3192 = vmatpush1.msra.mxu0 0.0
  %3193 = vmatprep.subr.mxu0 0.0
  %3194 = vmatpush1.msra.mxu0 0.0
  %3195 = vmatprep.subr.mxu0 0.0
  %3196 = vmatpush1.msra.mxu0 0.0
  %3197 = vmatprep.subr.mxu0 0.0
  %3198 = vmatpush1.msra.mxu0 0.0
  %3199 = vmatprep.subr.mxu0 0.0
  %3200 = vmatpush1.msra.mxu0 %v3085
  %3201 = vmatprep.subr.mxu0 0.0
  %3202 = vmatpush1.msra.mxu0 %v3084
  %3203 = vmatprep.subr.mxu0 0.0
  %3204 = vmatpush1.msra.mxu0 %v3083
  %3205 = vmatprep.subr.mxu0 0.0
  %3206 = vmatpush1.msra.mxu0 %v3082
  %3207 = vmatprep.subr.mxu0 0.0
  %3208 = vmatpush1.msra.mxu0 %v3081
  %3209 = vmatprep.subr.mxu0 0.0
  %3210 = vmatpush1.msra.mxu0 %v3080
  %3211 = vmatprep.subr.mxu0 0.0
  %3212 = vmatpush1.msra.mxu0 %v3079
  %3213 = vmatprep.subr.mxu0 0.0
  %3214 = vmatpush1.msra.mxu0 %v3078
  %3215 = vmatprep.subr.mxu0 0.0
  %3216 = vmatpush2.msra.mxu0 0.0
  %3217 = vmatprep.subr.mxu0 0.0
  %3218 = vmatpush2.msra.mxu0 0.0
  %3219 = vmatprep.subr.mxu0 0.0
  %3220 = vmatpush2.msra.mxu0 0.0
  %3221 = vmatprep.subr.mxu0 0.0
  %3222 = vmatpush2.msra.mxu0 0.0
  %3223 = vmatprep.subr.mxu0 0.0
  %3224 = vmatpush2.msra.mxu0 0.0
  %3225 = vmatprep.subr.mxu0 0.0
  %3226 = vmatpush2.msra.mxu0 0.0
  %3227 = vmatprep.subr.mxu0 0.0
  %3228 = vmatpush2.msra.mxu0 0.0
  %3229 = vmatprep.subr.mxu0 0.0
  %3230 = vmatpush2.msra.mxu0 0.0
  %3231 = vmatprep.subr.mxu0 0.0
  %3232 = vmatpush2.msra.mxu0 0.0
  %3233 = vmatprep.subr.mxu0 0.0
  %3234 = vmatpush2.msra.mxu0 0.0
  %3235 = vmatprep.subr.mxu0 0.0
  %3236 = vmatpush2.msra.mxu0 0.0
  %3237 = vmatprep.subr.mxu0 0.0
  %3238 = vmatpush2.msra.mxu0 0.0
  %3239 = vmatprep.subr.mxu0 0.0
  %3240 = vmatpush2.msra.mxu0 0.0
  %3241 = vmatprep.subr.mxu0 0.0
  %3242 = vmatpush2.msra.mxu0 0.0
  %3243 = vmatprep.subr.mxu0 0.0
  %3244 = vmatpush2.msra.mxu0 0.0
  %3245 = vmatprep.subr.mxu0 0.0
  %3246 = vmatpush2.msra.mxu0 0.0
  %3247 = vmatprep.mubr.f32.mxu0 0.0
  %3248 = vmatmul.mubr.f32.gmra.mxu0 %v3088
  %v3249 = vpop.f32.mrf.mxu0
  %v3250 = vadd.f32 0.0, %v3249
  %v3251 = vpop.f32.mrf.mxu0
  %3252 = vmatprep.mubr.f32.mxu0 0.0
  %3253 = vmatmul.mubr.f32.gmra.mxu0 %v3091
  %v3254 = vpop.f32.mrf.mxu0
  %v3255 = vadd.f32 0.0, %v3254
  %v3256 = vpop.f32.mrf.mxu0
  %3257 = vmatprep.mubr.f32.mxu0 0.0
  %3258 = vmatmul.mubr.f32.gmra.mxu0 %v3094
  %v3259 = vpop.f32.mrf.mxu0
  %v3260 = vadd.f32 0.0, %v3259
  %v3261 = vpop.f32.mrf.mxu0
  %3262 = vmatprep.mubr.f32.mxu0 0.0
  %3263 = vmatmul.mubr.f32.gmra.mxu0 %v3097
  %v3264 = vpop.f32.mrf.mxu0
  %v3265 = vadd.f32 0.0, %v3264
  %v3266 = vpop.f32.mrf.mxu0
  %3267 = vmatprep.mubr.f32.mxu0 0.0
  %3268 = vmatmul.mubr.f32.gmra.mxu0 %v3100
  %v3269 = vpop.f32.mrf.mxu0
  %v3270 = vadd.f32 0.0, %v3269
  %v3271 = vpop.f32.mrf.mxu0
  %3272 = vmatprep.mubr.f32.mxu0 0.0
  %3273 = vmatmul.mubr.f32.gmra.mxu0 %v3103
  %v3274 = vpop.f32.mrf.mxu0
  %v3275 = vadd.f32 0.0, %v3274
  %v3276 = vpop.f32.mrf.mxu0
  %3277 = vmatprep.mubr.f32.mxu0 0.0
  %3278 = vmatmul.mubr.f32.gmra.mxu0 %v3106
  %v3279 = vpop.f32.mrf.mxu0
  %v3280 = vadd.f32 0.0, %v3279
  %v3281 = vpop.f32.mrf.mxu0
  %3282 = vmatprep.mubr.f32.mxu0 0.0
  %3283 = vmatmul.mubr.f32.gmra.mxu0 %v3109
  %v3284 = vpop.f32.mrf.mxu0
  %v3285 = vadd.f32 0.0, %v3284
  %v3286 = vpop.f32.mrf.mxu0
  %3287 = vmatprep.mubr.f32.mxu0 0.0
  %3288 = vmatmul.mubr.f32.gmra.mxu0 %v3112
  %v3289 = vpop.f32.mrf.mxu0
  %v3290 = vadd.f32 0.0, %v3289
  %v3291 = vpop.f32.mrf.mxu0
  %3292 = vmatprep.mubr.f32.mxu0 0.0
  %3293 = vmatmul.mubr.f32.gmra.mxu0 %v3115
  %v3294 = vpop.f32.mrf.mxu0
  %v3295 = vadd.f32 0.0, %v3294
  %v3296 = vpop.f32.mrf.mxu0
  %3297 = vmatprep.mubr.f32.mxu0 0.0
  %3298 = vmatmul.mubr.f32.gmra.mxu0 %v3118
  %v3299 = vpop.f32.mrf.mxu0
  %v3300 = vadd.f32 0.0, %v3299
  %v3301 = vpop.f32.mrf.mxu0
  %3302 = vmatprep.mubr.f32.mxu0 0.0
  %3303 = vmatmul.mubr.f32.gmra.mxu0 %v3121
  %v3304 = vpop.f32.mrf.mxu0
  %v3305 = vadd.f32 0.0, %v3304
  %v3306 = vpop.f32.mrf.mxu0
  %3307 = vmatprep.mubr.f32.mxu0 0.0
  %3308 = vmatmul.mubr.f32.gmra.mxu0 %v3124
  %v3309 = vpop.f32.mrf.mxu0
  %v3310 = vadd.f32 0.0, %v3309
  %v3311 = vpop.f32.mrf.mxu0
  %3312 = vmatprep.mubr.f32.mxu0 0.0
  %3313 = vmatmul.mubr.f32.gmra.mxu0 %v3127
  %v3314 = vpop.f32.mrf.mxu0
  %v3315 = vadd.f32 0.0, %v3314
  %v3316 = vpop.f32.mrf.mxu0
  %3317 = vmatprep.mubr.f32.mxu0 0.0
  %3318 = vmatmul.mubr.f32.gmra.mxu0 %v3130
  %v3319 = vpop.f32.mrf.mxu0
  %v3320 = vadd.f32 0.0, %v3319
  %v3321 = vpop.f32.mrf.mxu0
  %3322 = vmatprep.mubr.f32.mxu0 0.0
  %3323 = vmatmul.mubr.f32.gmra.mxu0 %v3133
  %v3324 = vpop.f32.mrf.mxu0
  %v3325 = vadd.f32 0.0, %v3324
  %v3326 = vpop.f32.mrf.mxu0
  %3327 = vmatprep.mubr.f32.mxu0 0.0
  %3328 = vmatmul.mubr.f32.gmra.mxu0 %v3136
  %v3329 = vpop.f32.mrf.mxu0
  %v3330 = vadd.f32 0.0, %v3329
  %v3331 = vpop.f32.mrf.mxu0
  %3332 = vmatprep.mubr.f32.mxu0 0.0
  %3333 = vmatmul.mubr.f32.gmra.mxu0 %v3139
  %v3334 = vpop.f32.mrf.mxu0
  %v3335 = vadd.f32 0.0, %v3334
  %v3336 = vpop.f32.mrf.mxu0
  %3337 = vmatprep.mubr.f32.mxu0 0.0
  %3338 = vmatmul.mubr.f32.gmra.mxu0 %v3142
  %v3339 = vpop.f32.mrf.mxu0
  %v3340 = vadd.f32 0.0, %v3339
  %v3341 = vpop.f32.mrf.mxu0
  %3342 = vmatprep.mubr.f32.mxu0 0.0
  %3343 = vmatmul.mubr.f32.gmra.mxu0 %v3145
  %v3344 = vpop.f32.mrf.mxu0
  %v3345 = vadd.f32 0.0, %v3344
  %v3346 = vpop.f32.mrf.mxu0
  %3347 = vmatprep.mubr.f32.mxu0 0.0
  %3348 = vmatmul.mubr.f32.gmra.mxu0 %v3148
  %v3349 = vpop.f32.mrf.mxu0
  %v3350 = vadd.f32 0.0, %v3349
  %v3351 = vpop.f32.mrf.mxu0
  %3352 = vmatprep.mubr.f32.mxu0 0.0
  %3353 = vmatmul.mubr.f32.gmra.mxu0 %v3151
  %v3354 = vpop.f32.mrf.mxu0
  %v3355 = vadd.f32 0.0, %v3354
  %v3356 = vpop.f32.mrf.mxu0
  %3357 = vmatprep.mubr.f32.mxu0 0.0
  %3358 = vmatmul.mubr.f32.gmra.mxu0 %v3154
  %v3359 = vpop.f32.mrf.mxu0
  %v3360 = vadd.f32 0.0, %v3359
  %v3361 = vpop.f32.mrf.mxu0
  %3362 = vmatprep.mubr.f32.mxu0 0.0
  %3363 = vmatmul.mubr.f32.gmra.mxu0 %v3157
  %v3364 = vpop.f32.mrf.mxu0
  %v3365 = vadd.f32 0.0, %v3364
  %v3366 = vpop.f32.mrf.mxu0
  %3367 = vmatprep.mubr.f32.mxu0 0.0
  %3368 = vmatmul.mubr.f32.gmra.mxu0 %v3160
  %v3369 = vpop.f32.mrf.mxu0
  %v3370 = vadd.f32 0.0, %v3369
  %v3371 = vpop.f32.mrf.mxu0
  %3372 = vmatprep.mubr.f32.mxu0 0.0
  %3373 = vmatmul.mubr.f32.gmra.mxu0 %v3163
  %v3374 = vpop.f32.mrf.mxu0
  %v3375 = vadd.f32 0.0, %v3374
  %v3376 = vpop.f32.mrf.mxu0
  %3377 = vmatprep.mubr.f32.mxu0 0.0
  %3378 = vmatmul.mubr.f32.gmra.mxu0 %v3166
  %v3379 = vpop.f32.mrf.mxu0
  %v3380 = vadd.f32 0.0, %v3379
  %v3381 = vpop.f32.mrf.mxu0
  %3382 = vmatprep.mubr.f32.mxu0 0.0
  %3383 = vmatmul.mubr.f32.gmra.mxu0 %v3169
  %v3384 = vpop.f32.mrf.mxu0
  %v3385 = vadd.f32 0.0, %v3384
  %v3386 = vpop.f32.mrf.mxu0
  %3387 = vmatprep.mubr.f32.mxu0 0.0
  %3388 = vmatmul.mubr.f32.gmra.mxu0 %v3172
  %v3389 = vpop.f32.mrf.mxu0
  %v3390 = vadd.f32 0.0, %v3389
  %v3391 = vpop.f32.mrf.mxu0
  %3392 = vmatprep.mubr.f32.mxu0 0.0
  %3393 = vmatmul.mubr.f32.gmra.mxu0 %v3175
  %v3394 = vpop.f32.mrf.mxu0
  %v3395 = vadd.f32 0.0, %v3394
  %v3396 = vpop.f32.mrf.mxu0
  %3397 = vmatprep.mubr.f32.mxu0 0.0
  %3398 = vmatmul.mubr.f32.gmra.mxu0 %v3178
  %v3399 = vpop.f32.mrf.mxu0
  %v3400 = vadd.f32 0.0, %v3399
  %v3401 = vpop.f32.mrf.mxu0
  %3402 = vmatprep.mubr.f32.mxu0 0.0
  %3403 = vmatmul.mubr.f32.gmra.mxu0 %v3181
  %v3404 = vpop.f32.mrf.mxu0
  %v3405 = vadd.f32 0.0, %v3404
  %v3406 = vpop.f32.mrf.mxu0
  %3407 = vdwg.mxu0
  %v3409 = vsel %vm3086, %v2997, 0
  %v3412 = vsel %vm3086, %v2998, 0
  %v3415 = vsel %vm3086, %v3009, 0
  %v3418 = vsel %vm3086, %v3010, 0
  %v3421 = vsel %vm3086, %v3021, 0
  %v3424 = vsel %vm3086, %v3022, 0
  %v3427 = vsel %vm3086, %v3033, 0
  %v3430 = vsel %vm3086, %v3034, 0
  %3432 = vmatprep.subr.mxu0 0.0
  %3433 = vmatpush1.msra.mxu0 0.0
  %3434 = vmatprep.subr.mxu0 0.0
  %3435 = vmatpush1.msra.mxu0 0.0
  %3436 = vmatprep.subr.mxu0 0.0
  %3437 = vmatpush1.msra.mxu0 0.0
  %3438 = vmatprep.subr.mxu0 0.0
  %3439 = vmatpush1.msra.mxu0 0.0
  %3440 = vmatprep.subr.mxu0 0.0
  %3441 = vmatpush1.msra.mxu0 0.0
  %3442 = vmatprep.subr.mxu0 0.0
  %3443 = vmatpush1.msra.mxu0 0.0
  %3444 = vmatprep.subr.mxu0 0.0
  %3445 = vmatpush1.msra.mxu0 0.0
  %3446 = vmatprep.subr.mxu0 0.0
  %3447 = vmatpush1.msra.mxu0 0.0
  %3448 = vmatprep.subr.mxu0 0.0
  %3449 = vmatpush1.msra.mxu0 %v3076
  %3450 = vmatprep.subr.mxu0 0.0
  %3451 = vmatpush1.msra.mxu0 %v3075
  %3452 = vmatprep.subr.mxu0 0.0
  %3453 = vmatpush1.msra.mxu0 %v3074
  %3454 = vmatprep.subr.mxu0 0.0
  %3455 = vmatpush1.msra.mxu0 %v3073
  %3456 = vmatprep.subr.mxu0 0.0
  %3457 = vmatpush1.msra.mxu0 %v3072
  %3458 = vmatprep.subr.mxu0 0.0
  %3459 = vmatpush1.msra.mxu0 %v3071
  %3460 = vmatprep.subr.mxu0 0.0
  %3461 = vmatpush1.msra.mxu0 %v3070
  %3462 = vmatprep.subr.mxu0 0.0
  %3463 = vmatpush1.msra.mxu0 %v3069
  %3464 = vmatprep.subr.mxu0 0.0
  %3465 = vmatpush2.msra.mxu0 0.0
  %3466 = vmatprep.subr.mxu0 0.0
  %3467 = vmatpush2.msra.mxu0 0.0
  %3468 = vmatprep.subr.mxu0 0.0
  %3469 = vmatpush2.msra.mxu0 0.0
  %3470 = vmatprep.subr.mxu0 0.0
  %3471 = vmatpush2.msra.mxu0 0.0
  %3472 = vmatprep.subr.mxu0 0.0
  %3473 = vmatpush2.msra.mxu0 0.0
  %3474 = vmatprep.subr.mxu0 0.0
  %3475 = vmatpush2.msra.mxu0 0.0
  %3476 = vmatprep.subr.mxu0 0.0
  %3477 = vmatpush2.msra.mxu0 0.0
  %3478 = vmatprep.subr.mxu0 0.0
  %3479 = vmatpush2.msra.mxu0 0.0
  %3480 = vmatprep.subr.mxu0 0.0
  %3481 = vmatpush2.msra.mxu0 0.0
  %3482 = vmatprep.subr.mxu0 0.0
  %3483 = vmatpush2.msra.mxu0 0.0
  %3484 = vmatprep.subr.mxu0 0.0
  %3485 = vmatpush2.msra.mxu0 0.0
  %3486 = vmatprep.subr.mxu0 0.0
  %3487 = vmatpush2.msra.mxu0 0.0
  %3488 = vmatprep.subr.mxu0 0.0
  %3489 = vmatpush2.msra.mxu0 0.0
  %3490 = vmatprep.subr.mxu0 0.0
  %3491 = vmatpush2.msra.mxu0 0.0
  %3492 = vmatprep.subr.mxu0 0.0
  %3493 = vmatpush2.msra.mxu0 0.0
  %3494 = vmatprep.subr.mxu0 0.0
  %3495 = vmatpush2.msra.mxu0 0.0
  %3496 = vmatprep.mubr.f32.mxu0 0.0
  %3497 = vmatmul.mubr.f32.gmra.mxu0 %v3409
  %v3498 = vpop.f32.mrf.mxu0
  %v3499 = vadd.f32 %v3250, %v3498
  %v3500 = vpop.f32.mrf.mxu0
  %3501 = vmatprep.mubr.f32.mxu0 0.0
  %3502 = vmatmul.mubr.f32.gmra.mxu0 %v3412
  %v3503 = vpop.f32.mrf.mxu0
  %v3504 = vadd.f32 %v3255, %v3503
  %v3505 = vpop.f32.mrf.mxu0
  %3506 = vmatprep.mubr.f32.mxu0 0.0
  %3507 = vmatmul.mubr.f32.gmra.mxu0 %v3088
  %v3508 = vpop.f32.mrf.mxu0
  %v3509 = vadd.f32 %v3260, %v3508
  %v3510 = vpop.f32.mrf.mxu0
  %3511 = vmatprep.mubr.f32.mxu0 0.0
  %3512 = vmatmul.mubr.f32.gmra.mxu0 %v3091
  %v3513 = vpop.f32.mrf.mxu0
  %v3514 = vadd.f32 %v3265, %v3513
  %v3515 = vpop.f32.mrf.mxu0
  %3516 = vmatprep.mubr.f32.mxu0 0.0
  %3517 = vmatmul.mubr.f32.gmra.mxu0 %v3094
  %v3518 = vpop.f32.mrf.mxu0
  %v3519 = vadd.f32 %v3270, %v3518
  %v3520 = vpop.f32.mrf.mxu0
  %3521 = vmatprep.mubr.f32.mxu0 0.0
  %3522 = vmatmul.mubr.f32.gmra.mxu0 %v3097
  %v3523 = vpop.f32.mrf.mxu0
  %v3524 = vadd.f32 %v3275, %v3523
  %v3525 = vpop.f32.mrf.mxu0
  %3526 = vmatprep.mubr.f32.mxu0 0.0
  %3527 = vmatmul.mubr.f32.gmra.mxu0 %v3100
  %v3528 = vpop.f32.mrf.mxu0
  %v3529 = vadd.f32 %v3280, %v3528
  %v3530 = vpop.f32.mrf.mxu0
  %3531 = vmatprep.mubr.f32.mxu0 0.0
  %3532 = vmatmul.mubr.f32.gmra.mxu0 %v3103
  %v3533 = vpop.f32.mrf.mxu0
  %v3534 = vadd.f32 %v3285, %v3533
  %v3535 = vpop.f32.mrf.mxu0
  %3536 = vmatprep.mubr.f32.mxu0 0.0
  %3537 = vmatmul.mubr.f32.gmra.mxu0 %v3415
  %v3538 = vpop.f32.mrf.mxu0
  %v3539 = vadd.f32 %v3290, %v3538
  %v3540 = vpop.f32.mrf.mxu0
  %3541 = vmatprep.mubr.f32.mxu0 0.0
  %3542 = vmatmul.mubr.f32.gmra.mxu0 %v3418
  %v3543 = vpop.f32.mrf.mxu0
  %v3544 = vadd.f32 %v3295, %v3543
  %v3545 = vpop.f32.mrf.mxu0
  %3546 = vmatprep.mubr.f32.mxu0 0.0
  %3547 = vmatmul.mubr.f32.gmra.mxu0 %v3112
  %v3548 = vpop.f32.mrf.mxu0
  %v3549 = vadd.f32 %v3300, %v3548
  %v3550 = vpop.f32.mrf.mxu0
  %3551 = vmatprep.mubr.f32.mxu0 0.0
  %3552 = vmatmul.mubr.f32.gmra.mxu0 %v3115
  %v3553 = vpop.f32.mrf.mxu0
  %v3554 = vadd.f32 %v3305, %v3553
  %v3555 = vpop.f32.mrf.mxu0
  %3556 = vmatprep.mubr.f32.mxu0 0.0
  %3557 = vmatmul.mubr.f32.gmra.mxu0 %v3118
  %v3558 = vpop.f32.mrf.mxu0
  %v3559 = vadd.f32 %v3310, %v3558
  %v3560 = vpop.f32.mrf.mxu0
  %3561 = vmatprep.mubr.f32.mxu0 0.0
  %3562 = vmatmul.mubr.f32.gmra.mxu0 %v3121
  %v3563 = vpop.f32.mrf.mxu0
  %v3564 = vadd.f32 %v3315, %v3563
  %v3565 = vpop.f32.mrf.mxu0
  %3566 = vmatprep.mubr.f32.mxu0 0.0
  %3567 = vmatmul.mubr.f32.gmra.mxu0 %v3124
  %v3568 = vpop.f32.mrf.mxu0
  %v3569 = vadd.f32 %v3320, %v3568
  %v3570 = vpop.f32.mrf.mxu0
  %3571 = vmatprep.mubr.f32.mxu0 0.0
  %3572 = vmatmul.mubr.f32.gmra.mxu0 %v3127
  %v3573 = vpop.f32.mrf.mxu0
  %v3574 = vadd.f32 %v3325, %v3573
  %v3575 = vpop.f32.mrf.mxu0
  %3576 = vmatprep.mubr.f32.mxu0 0.0
  %3577 = vmatmul.mubr.f32.gmra.mxu0 %v3421
  %v3578 = vpop.f32.mrf.mxu0
  %v3579 = vadd.f32 %v3330, %v3578
  %v3580 = vpop.f32.mrf.mxu0
  %3581 = vmatprep.mubr.f32.mxu0 0.0
  %3582 = vmatmul.mubr.f32.gmra.mxu0 %v3424
  %v3583 = vpop.f32.mrf.mxu0
  %v3584 = vadd.f32 %v3335, %v3583
  %v3585 = vpop.f32.mrf.mxu0
  %3586 = vmatprep.mubr.f32.mxu0 0.0
  %3587 = vmatmul.mubr.f32.gmra.mxu0 %v3136
  %v3588 = vpop.f32.mrf.mxu0
  %v3589 = vadd.f32 %v3340, %v3588
  %v3590 = vpop.f32.mrf.mxu0
  %3591 = vmatprep.mubr.f32.mxu0 0.0
  %3592 = vmatmul.mubr.f32.gmra.mxu0 %v3139
  %v3593 = vpop.f32.mrf.mxu0
  %v3594 = vadd.f32 %v3345, %v3593
  %v3595 = vpop.f32.mrf.mxu0
  %3596 = vmatprep.mubr.f32.mxu0 0.0
  %3597 = vmatmul.mubr.f32.gmra.mxu0 %v3142
  %v3598 = vpop.f32.mrf.mxu0
  %v3599 = vadd.f32 %v3350, %v3598
  %v3600 = vpop.f32.mrf.mxu0
  %3601 = vmatprep.mubr.f32.mxu0 0.0
  %3602 = vmatmul.mubr.f32.gmra.mxu0 %v3145
  %v3603 = vpop.f32.mrf.mxu0
  %v3604 = vadd.f32 %v3355, %v3603
  %v3605 = vpop.f32.mrf.mxu0
  %3606 = vmatprep.mubr.f32.mxu0 0.0
  %3607 = vmatmul.mubr.f32.gmra.mxu0 %v3148
  %v3608 = vpop.f32.mrf.mxu0
  %v3609 = vadd.f32 %v3360, %v3608
  %v3610 = vpop.f32.mrf.mxu0
  %3611 = vmatprep.mubr.f32.mxu0 0.0
  %3612 = vmatmul.mubr.f32.gmra.mxu0 %v3151
  %v3613 = vpop.f32.mrf.mxu0
  %v3614 = vadd.f32 %v3365, %v3613
  %v3615 = vpop.f32.mrf.mxu0
  %3616 = vmatprep.mubr.f32.mxu0 0.0
  %3617 = vmatmul.mubr.f32.gmra.mxu0 %v3427
  %v3618 = vpop.f32.mrf.mxu0
  %v3619 = vadd.f32 %v3370, %v3618
  %v3620 = vpop.f32.mrf.mxu0
  %3621 = vmatprep.mubr.f32.mxu0 0.0
  %3622 = vmatmul.mubr.f32.gmra.mxu0 %v3430
  %v3623 = vpop.f32.mrf.mxu0
  %v3624 = vadd.f32 %v3375, %v3623
  %v3625 = vpop.f32.mrf.mxu0
  %3626 = vmatprep.mubr.f32.mxu0 0.0
  %3627 = vmatmul.mubr.f32.gmra.mxu0 %v3160
  %v3628 = vpop.f32.mrf.mxu0
  %v3629 = vadd.f32 %v3380, %v3628
  %v3630 = vpop.f32.mrf.mxu0
  %3631 = vmatprep.mubr.f32.mxu0 0.0
  %3632 = vmatmul.mubr.f32.gmra.mxu0 %v3163
  %v3633 = vpop.f32.mrf.mxu0
  %v3634 = vadd.f32 %v3385, %v3633
  %v3635 = vpop.f32.mrf.mxu0
  %3636 = vmatprep.mubr.f32.mxu0 0.0
  %3637 = vmatmul.mubr.f32.gmra.mxu0 %v3166
  %v3638 = vpop.f32.mrf.mxu0
  %v3639 = vadd.f32 %v3390, %v3638
  %v3640 = vpop.f32.mrf.mxu0
  %3641 = vmatprep.mubr.f32.mxu0 0.0
  %3642 = vmatmul.mubr.f32.gmra.mxu0 %v3169
  %v3643 = vpop.f32.mrf.mxu0
  %v3644 = vadd.f32 %v3395, %v3643
  %v3645 = vpop.f32.mrf.mxu0
  %3646 = vmatprep.mubr.f32.mxu0 0.0
  %3647 = vmatmul.mubr.f32.gmra.mxu0 %v3172
  %v3648 = vpop.f32.mrf.mxu0
  %v3649 = vadd.f32 %v3400, %v3648
  %v3650 = vpop.f32.mrf.mxu0
  %3651 = vmatprep.mubr.f32.mxu0 0.0
  %3652 = vmatmul.mubr.f32.gmra.mxu0 %v3175
  %v3653 = vpop.f32.mrf.mxu0
  %v3654 = vadd.f32 %v3405, %v3653
  %v3655 = vpop.f32.mrf.mxu0
  %3656 = vdwg.mxu0
  %s3657 = scalar_lea.vmem %s3, 128
  %v3658 = vld [vmem:[%s3657] sm:$0xff]
  %v3659 = vld [vmem:[%s3657 + $0x8] sm:$0xff]
  %v3660 = vld [vmem:[%s3657 + $0x10] sm:$0xff]
  %v3661 = vld [vmem:[%s3657 + $0x18] sm:$0xff]
  %v3662 = vld [vmem:[%s3657 + $0x20] sm:$0xff]
  %v3663 = vld [vmem:[%s3657 + $0x28] sm:$0xff]
  %v3664 = vld [vmem:[%s3657 + $0x30] sm:$0xff]
  %v3665 = vld [vmem:[%s3657 + $0x38] sm:$0xff]
  %v3667 = vsel %vm3086, %v3007, 0
  %v3670 = vsel %vm3086, %v3008, 0
  %v3673 = vsel %vm3086, %v3019, 0
  %v3676 = vsel %vm3086, %v3020, 0
  %v3679 = vsel %vm3086, %v3031, 0
  %v3682 = vsel %vm3086, %v3032, 0
  %v3685 = vsel %vm3086, %v3043, 0
  %v3688 = vsel %vm3086, %v3044, 0
  %3690 = vmatprep.subr.mxu0 0.0
  %3691 = vmatpush1.msra.mxu0 0.0
  %3692 = vmatprep.subr.mxu0 0.0
  %3693 = vmatpush1.msra.mxu0 0.0
  %3694 = vmatprep.subr.mxu0 0.0
  %3695 = vmatpush1.msra.mxu0 0.0
  %3696 = vmatprep.subr.mxu0 0.0
  %3697 = vmatpush1.msra.mxu0 0.0
  %3698 = vmatprep.subr.mxu0 0.0
  %3699 = vmatpush1.msra.mxu0 0.0
  %3700 = vmatprep.subr.mxu0 0.0
  %3701 = vmatpush1.msra.mxu0 0.0
  %3702 = vmatprep.subr.mxu0 0.0
  %3703 = vmatpush1.msra.mxu0 0.0
  %3704 = vmatprep.subr.mxu0 0.0
  %3705 = vmatpush1.msra.mxu0 0.0
  %3706 = vmatprep.subr.mxu0 0.0
  %3707 = vmatpush1.msra.mxu0 %v3665
  %3708 = vmatprep.subr.mxu0 0.0
  %3709 = vmatpush1.msra.mxu0 %v3664
  %3710 = vmatprep.subr.mxu0 0.0
  %3711 = vmatpush1.msra.mxu0 %v3663
  %3712 = vmatprep.subr.mxu0 0.0
  %3713 = vmatpush1.msra.mxu0 %v3662
  %3714 = vmatprep.subr.mxu0 0.0
  %3715 = vmatpush1.msra.mxu0 %v3661
  %3716 = vmatprep.subr.mxu0 0.0
  %3717 = vmatpush1.msra.mxu0 %v3660
  %3718 = vmatprep.subr.mxu0 0.0
  %3719 = vmatpush1.msra.mxu0 %v3659
  %3720 = vmatprep.subr.mxu0 0.0
  %3721 = vmatpush1.msra.mxu0 %v3658
  %3722 = vmatprep.subr.mxu0 0.0
  %3723 = vmatpush2.msra.mxu0 0.0
  %3724 = vmatprep.subr.mxu0 0.0
  %3725 = vmatpush2.msra.mxu0 0.0
  %3726 = vmatprep.subr.mxu0 0.0
  %3727 = vmatpush2.msra.mxu0 0.0
  %3728 = vmatprep.subr.mxu0 0.0
  %3729 = vmatpush2.msra.mxu0 0.0
  %3730 = vmatprep.subr.mxu0 0.0
  %3731 = vmatpush2.msra.mxu0 0.0
  %3732 = vmatprep.subr.mxu0 0.0
  %3733 = vmatpush2.msra.mxu0 0.0
  %3734 = vmatprep.subr.mxu0 0.0
  %3735 = vmatpush2.msra.mxu0 0.0
  %3736 = vmatprep.subr.mxu0 0.0
  %3737 = vmatpush2.msra.mxu0 0.0
  %3738 = vmatprep.subr.mxu0 0.0
  %3739 = vmatpush2.msra.mxu0 0.0
  %3740 = vmatprep.subr.mxu0 0.0
  %3741 = vmatpush2.msra.mxu0 0.0
  %3742 = vmatprep.subr.mxu0 0.0
  %3743 = vmatpush2.msra.mxu0 0.0
  %3744 = vmatprep.subr.mxu0 0.0
  %3745 = vmatpush2.msra.mxu0 0.0
  %3746 = vmatprep.subr.mxu0 0.0
  %3747 = vmatpush2.msra.mxu0 0.0
  %3748 = vmatprep.subr.mxu0 0.0
  %3749 = vmatpush2.msra.mxu0 0.0
  %3750 = vmatprep.subr.mxu0 0.0
  %3751 = vmatpush2.msra.mxu0 0.0
  %3752 = vmatprep.subr.mxu0 0.0
  %3753 = vmatpush2.msra.mxu0 0.0
  %3754 = vmatprep.mubr.f32.mxu0 0.0
  %3755 = vmatmul.mubr.f32.gmra.mxu0 %v3094
  %v3756 = vpop.f32.mrf.mxu0
  %v3757 = vadd.f32 0.0, %v3756
  %v3758 = vpop.f32.mrf.mxu0
  %3759 = vmatprep.mubr.f32.mxu0 0.0
  %3760 = vmatmul.mubr.f32.gmra.mxu0 %v3097
  %v3761 = vpop.f32.mrf.mxu0
  %v3762 = vadd.f32 0.0, %v3761
  %v3763 = vpop.f32.mrf.mxu0
  %3764 = vmatprep.mubr.f32.mxu0 0.0
  %3765 = vmatmul.mubr.f32.gmra.mxu0 %v3100
  %v3766 = vpop.f32.mrf.mxu0
  %v3767 = vadd.f32 0.0, %v3766
  %v3768 = vpop.f32.mrf.mxu0
  %3769 = vmatprep.mubr.f32.mxu0 0.0
  %3770 = vmatmul.mubr.f32.gmra.mxu0 %v3103
  %v3771 = vpop.f32.mrf.mxu0
  %v3772 = vadd.f32 0.0, %v3771
  %v3773 = vpop.f32.mrf.mxu0
  %3774 = vmatprep.mubr.f32.mxu0 0.0
  %3775 = vmatmul.mubr.f32.gmra.mxu0 %v3106
  %v3776 = vpop.f32.mrf.mxu0
  %v3777 = vadd.f32 0.0, %v3776
  %v3778 = vpop.f32.mrf.mxu0
  %3779 = vmatprep.mubr.f32.mxu0 0.0
  %3780 = vmatmul.mubr.f32.gmra.mxu0 %v3109
  %v3781 = vpop.f32.mrf.mxu0
  %v3782 = vadd.f32 0.0, %v3781
  %v3783 = vpop.f32.mrf.mxu0
  %3784 = vmatprep.mubr.f32.mxu0 0.0
  %3785 = vmatmul.mubr.f32.gmra.mxu0 %v3667
  %v3786 = vpop.f32.mrf.mxu0
  %v3787 = vadd.f32 0.0, %v3786
  %v3788 = vpop.f32.mrf.mxu0
  %3789 = vmatprep.mubr.f32.mxu0 0.0
  %3790 = vmatmul.mubr.f32.gmra.mxu0 %v3670
  %v3791 = vpop.f32.mrf.mxu0
  %v3792 = vadd.f32 0.0, %v3791
  %v3793 = vpop.f32.mrf.mxu0
  %3794 = vmatprep.mubr.f32.mxu0 0.0
  %3795 = vmatmul.mubr.f32.gmra.mxu0 %v3118
  %v3796 = vpop.f32.mrf.mxu0
  %v3797 = vadd.f32 0.0, %v3796
  %v3798 = vpop.f32.mrf.mxu0
  %3799 = vmatprep.mubr.f32.mxu0 0.0
  %3800 = vmatmul.mubr.f32.gmra.mxu0 %v3121
  %v3801 = vpop.f32.mrf.mxu0
  %v3802 = vadd.f32 0.0, %v3801
  %v3803 = vpop.f32.mrf.mxu0
  %3804 = vmatprep.mubr.f32.mxu0 0.0
  %3805 = vmatmul.mubr.f32.gmra.mxu0 %v3124
  %v3806 = vpop.f32.mrf.mxu0
  %v3807 = vadd.f32 0.0, %v3806
  %v3808 = vpop.f32.mrf.mxu0
  %3809 = vmatprep.mubr.f32.mxu0 0.0
  %3810 = vmatmul.mubr.f32.gmra.mxu0 %v3127
  %v3811 = vpop.f32.mrf.mxu0
  %v3812 = vadd.f32 0.0, %v3811
  %v3813 = vpop.f32.mrf.mxu0
  %3814 = vmatprep.mubr.f32.mxu0 0.0
  %3815 = vmatmul.mubr.f32.gmra.mxu0 %v3130
  %v3816 = vpop.f32.mrf.mxu0
  %v3817 = vadd.f32 0.0, %v3816
  %v3818 = vpop.f32.mrf.mxu0
  %3819 = vmatprep.mubr.f32.mxu0 0.0
  %3820 = vmatmul.mubr.f32.gmra.mxu0 %v3133
  %v3821 = vpop.f32.mrf.mxu0
  %v3822 = vadd.f32 0.0, %v3821
  %v3823 = vpop.f32.mrf.mxu0
  %3824 = vmatprep.mubr.f32.mxu0 0.0
  %3825 = vmatmul.mubr.f32.gmra.mxu0 %v3673
  %v3826 = vpop.f32.mrf.mxu0
  %v3827 = vadd.f32 0.0, %v3826
  %v3828 = vpop.f32.mrf.mxu0
  %3829 = vmatprep.mubr.f32.mxu0 0.0
  %3830 = vmatmul.mubr.f32.gmra.mxu0 %v3676
  %v3831 = vpop.f32.mrf.mxu0
  %v3832 = vadd.f32 0.0, %v3831
  %v3833 = vpop.f32.mrf.mxu0
  %3834 = vmatprep.mubr.f32.mxu0 0.0
  %3835 = vmatmul.mubr.f32.gmra.mxu0 %v3142
  %v3836 = vpop.f32.mrf.mxu0
  %v3837 = vadd.f32 0.0, %v3836
  %v3838 = vpop.f32.mrf.mxu0
  %3839 = vmatprep.mubr.f32.mxu0 0.0
  %3840 = vmatmul.mubr.f32.gmra.mxu0 %v3145
  %v3841 = vpop.f32.mrf.mxu0
  %v3842 = vadd.f32 0.0, %v3841
  %v3843 = vpop.f32.mrf.mxu0
  %3844 = vmatprep.mubr.f32.mxu0 0.0
  %3845 = vmatmul.mubr.f32.gmra.mxu0 %v3148
  %v3846 = vpop.f32.mrf.mxu0
  %v3847 = vadd.f32 0.0, %v3846
  %v3848 = vpop.f32.mrf.mxu0
  %3849 = vmatprep.mubr.f32.mxu0 0.0
  %3850 = vmatmul.mubr.f32.gmra.mxu0 %v3151
  %v3851 = vpop.f32.mrf.mxu0
  %v3852 = vadd.f32 0.0, %v3851
  %v3853 = vpop.f32.mrf.mxu0
  %3854 = vmatprep.mubr.f32.mxu0 0.0
  %3855 = vmatmul.mubr.f32.gmra.mxu0 %v3154
  %v3856 = vpop.f32.mrf.mxu0
  %v3857 = vadd.f32 0.0, %v3856
  %v3858 = vpop.f32.mrf.mxu0
  %3859 = vmatprep.mubr.f32.mxu0 0.0
  %3860 = vmatmul.mubr.f32.gmra.mxu0 %v3157
  %v3861 = vpop.f32.mrf.mxu0
  %v3862 = vadd.f32 0.0, %v3861
  %v3863 = vpop.f32.mrf.mxu0
  %3864 = vmatprep.mubr.f32.mxu0 0.0
  %3865 = vmatmul.mubr.f32.gmra.mxu0 %v3679
  %v3866 = vpop.f32.mrf.mxu0
  %v3867 = vadd.f32 0.0, %v3866
  %v3868 = vpop.f32.mrf.mxu0
  %3869 = vmatprep.mubr.f32.mxu0 0.0
  %3870 = vmatmul.mubr.f32.gmra.mxu0 %v3682
  %v3871 = vpop.f32.mrf.mxu0
  %v3872 = vadd.f32 0.0, %v3871
  %v3873 = vpop.f32.mrf.mxu0
  %3874 = vmatprep.mubr.f32.mxu0 0.0
  %3875 = vmatmul.mubr.f32.gmra.mxu0 %v3166
  %v3876 = vpop.f32.mrf.mxu0
  %v3877 = vadd.f32 0.0, %v3876
  %v3878 = vpop.f32.mrf.mxu0
  %3879 = vmatprep.mubr.f32.mxu0 0.0
  %3880 = vmatmul.mubr.f32.gmra.mxu0 %v3169
  %v3881 = vpop.f32.mrf.mxu0
  %v3882 = vadd.f32 0.0, %v3881
  %v3883 = vpop.f32.mrf.mxu0
  %3884 = vmatprep.mubr.f32.mxu0 0.0
  %3885 = vmatmul.mubr.f32.gmra.mxu0 %v3172
  %v3886 = vpop.f32.mrf.mxu0
  %v3887 = vadd.f32 0.0, %v3886
  %v3888 = vpop.f32.mrf.mxu0
  %3889 = vmatprep.mubr.f32.mxu0 0.0
  %3890 = vmatmul.mubr.f32.gmra.mxu0 %v3175
  %v3891 = vpop.f32.mrf.mxu0
  %v3892 = vadd.f32 0.0, %v3891
  %v3893 = vpop.f32.mrf.mxu0
  %3894 = vmatprep.mubr.f32.mxu0 0.0
  %3895 = vmatmul.mubr.f32.gmra.mxu0 %v3178
  %v3896 = vpop.f32.mrf.mxu0
  %v3897 = vadd.f32 0.0, %v3896
  %v3898 = vpop.f32.mrf.mxu0
  %3899 = vmatprep.mubr.f32.mxu0 0.0
  %3900 = vmatmul.mubr.f32.gmra.mxu0 %v3181
  %v3901 = vpop.f32.mrf.mxu0
  %v3902 = vadd.f32 0.0, %v3901
  %v3903 = vpop.f32.mrf.mxu0
  %3904 = vmatprep.mubr.f32.mxu0 0.0
  %3905 = vmatmul.mubr.f32.gmra.mxu0 %v3685
  %v3906 = vpop.f32.mrf.mxu0
  %v3907 = vadd.f32 0.0, %v3906
  %v3908 = vpop.f32.mrf.mxu0
  %3909 = vmatprep.mubr.f32.mxu0 0.0
  %3910 = vmatmul.mubr.f32.gmra.mxu0 %v3688
  %v3911 = vpop.f32.mrf.mxu0
  %v3912 = vadd.f32 0.0, %v3911
  %v3913 = vpop.f32.mrf.mxu0
  %3914 = vdwg.mxu0
  %v3915 = vadd.f32 %v3499, %v3757
  %v3916 = vadd.f32 %v3504, %v3762
  %v3917 = vadd.f32 %v3509, %v3767
  %v3918 = vadd.f32 %v3514, %v3772
  %v3919 = vadd.f32 %v3519, %v3777
  %v3920 = vadd.f32 %v3524, %v3782
  %v3921 = vadd.f32 %v3529, %v3787
  %v3922 = vadd.f32 %v3534, %v3792
  %v3923 = vadd.f32 %v3539, %v3797
  %v3924 = vadd.f32 %v3544, %v3802
  %v3925 = vadd.f32 %v3549, %v3807
  %v3926 = vadd.f32 %v3554, %v3812
  %v3927 = vadd.f32 %v3559, %v3817
  %v3928 = vadd.f32 %v3564, %v3822
  %v3929 = vadd.f32 %v3569, %v3827
  %v3930 = vadd.f32 %v3574, %v3832
  %v3931 = vadd.f32 %v3579, %v3837
  %v3932 = vadd.f32 %v3584, %v3842
  %v3933 = vadd.f32 %v3589, %v3847
  %v3934 = vadd.f32 %v3594, %v3852
  %v3935 = vadd.f32 %v3599, %v3857
  %v3936 = vadd.f32 %v3604, %v3862
  %v3937 = vadd.f32 %v3609, %v3867
  %v3938 = vadd.f32 %v3614, %v3872
  %v3939 = vadd.f32 %v3619, %v3877
  %v3940 = vadd.f32 %v3624, %v3882
  %v3941 = vadd.f32 %v3629, %v3887
  %v3942 = vadd.f32 %v3634, %v3892
  %v3943 = vadd.f32 %v3639, %v3897
  %v3944 = vadd.f32 %v3644, %v3902
  %v3945 = vadd.f32 %v3649, %v3907
  %v3946 = vadd.f32 %v3654, %v3912
  %s3947 = scalar_lea.vmem %s3, 192
  %v3948 = vld [vmem:[%s3947] sm:$0xff]
  %v3949 = vld [vmem:[%s3947 + $0x8] sm:$0xff]
  %v3950 = vld [vmem:[%s3947 + $0x10] sm:$0xff]
  %v3951 = vld [vmem:[%s3947 + $0x18] sm:$0xff]
  %v3952 = vld [vmem:[%s3947 + $0x20] sm:$0xff]
  %v3953 = vld [vmem:[%s3947 + $0x28] sm:$0xff]
  %v3954 = vld [vmem:[%s3947 + $0x30] sm:$0xff]
  %v3955 = vld [vmem:[%s3947 + $0x38] sm:$0xff]
  %v3957 = vsel %vm3086, %v3045, 0
  %v3960 = vsel %vm3086, %v3046, 0
  %v3963 = vsel %vm3086, %v3047, 0
  %v3966 = vsel %vm3086, %v3048, 0
  %v3969 = vsel %vm3086, %v3049, 0
  %v3972 = vsel %vm3086, %v3050, 0
  %v3975 = vsel %vm3086, %v3051, 0
  %v3978 = vsel %vm3086, %v3052, 0
  %3980 = vmatprep.subr.mxu0 0.0
  %3981 = vmatpush1.msra.mxu0 0.0
  %3982 = vmatprep.subr.mxu0 0.0
  %3983 = vmatpush1.msra.mxu0 0.0
  %3984 = vmatprep.subr.mxu0 0.0
  %3985 = vmatpush1.msra.mxu0 0.0
  %3986 = vmatprep.subr.mxu0 0.0
  %3987 = vmatpush1.msra.mxu0 0.0
  %3988 = vmatprep.subr.mxu0 0.0
  %3989 = vmatpush1.msra.mxu0 0.0
  %3990 = vmatprep.subr.mxu0 0.0
  %3991 = vmatpush1.msra.mxu0 0.0
  %3992 = vmatprep.subr.mxu0 0.0
  %3993 = vmatpush1.msra.mxu0 0.0
  %3994 = vmatprep.subr.mxu0 0.0
  %3995 = vmatpush1.msra.mxu0 0.0
  %3996 = vmatprep.subr.mxu0 0.0
  %3997 = vmatpush1.msra.mxu0 %v3955
  %3998 = vmatprep.subr.mxu0 0.0
  %3999 = vmatpush1.msra.mxu0 %v3954
  %4000 = vmatprep.subr.mxu0 0.0
  %4001 = vmatpush1.msra.mxu0 %v3953
  %4002 = vmatprep.subr.mxu0 0.0
  %4003 = vmatpush1.msra.mxu0 %v3952
  %4004 = vmatprep.subr.mxu0 0.0
  %4005 = vmatpush1.msra.mxu0 %v3951
  %4006 = vmatprep.subr.mxu0 0.0
  %4007 = vmatpush1.msra.mxu0 %v3950
  %4008 = vmatprep.subr.mxu0 0.0
  %4009 = vmatpush1.msra.mxu0 %v3949
  %4010 = vmatprep.subr.mxu0 0.0
  %4011 = vmatpush1.msra.mxu0 %v3948
  %4012 = vmatprep.subr.mxu0 0.0
  %4013 = vmatpush2.msra.mxu0 0.0
  %4014 = vmatprep.subr.mxu0 0.0
  %4015 = vmatpush2.msra.mxu0 0.0
  %4016 = vmatprep.subr.mxu0 0.0
  %4017 = vmatpush2.msra.mxu0 0.0
  %4018 = vmatprep.subr.mxu0 0.0
  %4019 = vmatpush2.msra.mxu0 0.0
  %4020 = vmatprep.subr.mxu0 0.0
  %4021 = vmatpush2.msra.mxu0 0.0
  %4022 = vmatprep.subr.mxu0 0.0
  %4023 = vmatpush2.msra.mxu0 0.0
  %4024 = vmatprep.subr.mxu0 0.0
  %4025 = vmatpush2.msra.mxu0 0.0
  %4026 = vmatprep.subr.mxu0 0.0
  %4027 = vmatpush2.msra.mxu0 0.0
  %4028 = vmatprep.subr.mxu0 0.0
  %4029 = vmatpush2.msra.mxu0 0.0
  %4030 = vmatprep.subr.mxu0 0.0
  %4031 = vmatpush2.msra.mxu0 0.0
  %4032 = vmatprep.subr.mxu0 0.0
  %4033 = vmatpush2.msra.mxu0 0.0
  %4034 = vmatprep.subr.mxu0 0.0
  %4035 = vmatpush2.msra.mxu0 0.0
  %4036 = vmatprep.subr.mxu0 0.0
  %4037 = vmatpush2.msra.mxu0 0.0
  %4038 = vmatprep.subr.mxu0 0.0
  %4039 = vmatpush2.msra.mxu0 0.0
  %4040 = vmatprep.subr.mxu0 0.0
  %4041 = vmatpush2.msra.mxu0 0.0
  %4042 = vmatprep.subr.mxu0 0.0
  %4043 = vmatpush2.msra.mxu0 0.0
  %4044 = vmatprep.mubr.f32.mxu0 0.0
  %4045 = vmatmul.mubr.f32.gmra.mxu0 %v3415
  %v4046 = vpop.f32.mrf.mxu0
  %v4047 = vadd.f32 0.0, %v4046
  %v4048 = vpop.f32.mrf.mxu0
  %4049 = vmatprep.mubr.f32.mxu0 0.0
  %4050 = vmatmul.mubr.f32.gmra.mxu0 %v3418
  %v4051 = vpop.f32.mrf.mxu0
  %v4052 = vadd.f32 0.0, %v4051
  %v4053 = vpop.f32.mrf.mxu0
  %4054 = vmatprep.mubr.f32.mxu0 0.0
  %4055 = vmatmul.mubr.f32.gmra.mxu0 %v3112
  %v4056 = vpop.f32.mrf.mxu0
  %v4057 = vadd.f32 0.0, %v4056
  %v4058 = vpop.f32.mrf.mxu0
  %4059 = vmatprep.mubr.f32.mxu0 0.0
  %4060 = vmatmul.mubr.f32.gmra.mxu0 %v3115
  %v4061 = vpop.f32.mrf.mxu0
  %v4062 = vadd.f32 0.0, %v4061
  %v4063 = vpop.f32.mrf.mxu0
  %4064 = vmatprep.mubr.f32.mxu0 0.0
  %4065 = vmatmul.mubr.f32.gmra.mxu0 %v3118
  %v4066 = vpop.f32.mrf.mxu0
  %v4067 = vadd.f32 0.0, %v4066
  %v4068 = vpop.f32.mrf.mxu0
  %4069 = vmatprep.mubr.f32.mxu0 0.0
  %4070 = vmatmul.mubr.f32.gmra.mxu0 %v3121
  %v4071 = vpop.f32.mrf.mxu0
  %v4072 = vadd.f32 0.0, %v4071
  %v4073 = vpop.f32.mrf.mxu0
  %4074 = vmatprep.mubr.f32.mxu0 0.0
  %4075 = vmatmul.mubr.f32.gmra.mxu0 %v3124
  %v4076 = vpop.f32.mrf.mxu0
  %v4077 = vadd.f32 0.0, %v4076
  %v4078 = vpop.f32.mrf.mxu0
  %4079 = vmatprep.mubr.f32.mxu0 0.0
  %4080 = vmatmul.mubr.f32.gmra.mxu0 %v3127
  %v4081 = vpop.f32.mrf.mxu0
  %v4082 = vadd.f32 0.0, %v4081
  %v4083 = vpop.f32.mrf.mxu0
  %4084 = vmatprep.mubr.f32.mxu0 0.0
  %4085 = vmatmul.mubr.f32.gmra.mxu0 %v3421
  %v4086 = vpop.f32.mrf.mxu0
  %v4087 = vadd.f32 0.0, %v4086
  %v4088 = vpop.f32.mrf.mxu0
  %4089 = vmatprep.mubr.f32.mxu0 0.0
  %4090 = vmatmul.mubr.f32.gmra.mxu0 %v3424
  %v4091 = vpop.f32.mrf.mxu0
  %v4092 = vadd.f32 0.0, %v4091
  %v4093 = vpop.f32.mrf.mxu0
  %4094 = vmatprep.mubr.f32.mxu0 0.0
  %4095 = vmatmul.mubr.f32.gmra.mxu0 %v3136
  %v4096 = vpop.f32.mrf.mxu0
  %v4097 = vadd.f32 0.0, %v4096
  %v4098 = vpop.f32.mrf.mxu0
  %4099 = vmatprep.mubr.f32.mxu0 0.0
  %4100 = vmatmul.mubr.f32.gmra.mxu0 %v3139
  %v4101 = vpop.f32.mrf.mxu0
  %v4102 = vadd.f32 0.0, %v4101
  %v4103 = vpop.f32.mrf.mxu0
  %4104 = vmatprep.mubr.f32.mxu0 0.0
  %4105 = vmatmul.mubr.f32.gmra.mxu0 %v3142
  %v4106 = vpop.f32.mrf.mxu0
  %v4107 = vadd.f32 0.0, %v4106
  %v4108 = vpop.f32.mrf.mxu0
  %4109 = vmatprep.mubr.f32.mxu0 0.0
  %4110 = vmatmul.mubr.f32.gmra.mxu0 %v3145
  %v4111 = vpop.f32.mrf.mxu0
  %v4112 = vadd.f32 0.0, %v4111
  %v4113 = vpop.f32.mrf.mxu0
  %4114 = vmatprep.mubr.f32.mxu0 0.0
  %4115 = vmatmul.mubr.f32.gmra.mxu0 %v3148
  %v4116 = vpop.f32.mrf.mxu0
  %v4117 = vadd.f32 0.0, %v4116
  %v4118 = vpop.f32.mrf.mxu0
  %4119 = vmatprep.mubr.f32.mxu0 0.0
  %4120 = vmatmul.mubr.f32.gmra.mxu0 %v3151
  %v4121 = vpop.f32.mrf.mxu0
  %v4122 = vadd.f32 0.0, %v4121
  %v4123 = vpop.f32.mrf.mxu0
  %4124 = vmatprep.mubr.f32.mxu0 0.0
  %4125 = vmatmul.mubr.f32.gmra.mxu0 %v3427
  %v4126 = vpop.f32.mrf.mxu0
  %v4127 = vadd.f32 0.0, %v4126
  %v4128 = vpop.f32.mrf.mxu0
  %4129 = vmatprep.mubr.f32.mxu0 0.0
  %4130 = vmatmul.mubr.f32.gmra.mxu0 %v3430
  %v4131 = vpop.f32.mrf.mxu0
  %v4132 = vadd.f32 0.0, %v4131
  %v4133 = vpop.f32.mrf.mxu0
  %4134 = vmatprep.mubr.f32.mxu0 0.0
  %4135 = vmatmul.mubr.f32.gmra.mxu0 %v3160
  %v4136 = vpop.f32.mrf.mxu0
  %v4137 = vadd.f32 0.0, %v4136
  %v4138 = vpop.f32.mrf.mxu0
  %4139 = vmatprep.mubr.f32.mxu0 0.0
  %4140 = vmatmul.mubr.f32.gmra.mxu0 %v3163
  %v4141 = vpop.f32.mrf.mxu0
  %v4142 = vadd.f32 0.0, %v4141
  %v4143 = vpop.f32.mrf.mxu0
  %4144 = vmatprep.mubr.f32.mxu0 0.0
  %4145 = vmatmul.mubr.f32.gmra.mxu0 %v3166
  %v4146 = vpop.f32.mrf.mxu0
  %v4147 = vadd.f32 0.0, %v4146
  %v4148 = vpop.f32.mrf.mxu0
  %4149 = vmatprep.mubr.f32.mxu0 0.0
  %4150 = vmatmul.mubr.f32.gmra.mxu0 %v3169
  %v4151 = vpop.f32.mrf.mxu0
  %v4152 = vadd.f32 0.0, %v4151
  %v4153 = vpop.f32.mrf.mxu0
  %4154 = vmatprep.mubr.f32.mxu0 0.0
  %4155 = vmatmul.mubr.f32.gmra.mxu0 %v3172
  %v4156 = vpop.f32.mrf.mxu0
  %v4157 = vadd.f32 0.0, %v4156
  %v4158 = vpop.f32.mrf.mxu0
  %4159 = vmatprep.mubr.f32.mxu0 0.0
  %4160 = vmatmul.mubr.f32.gmra.mxu0 %v3175
  %v4161 = vpop.f32.mrf.mxu0
  %v4162 = vadd.f32 0.0, %v4161
  %v4163 = vpop.f32.mrf.mxu0
  %4164 = vmatprep.mubr.f32.mxu0 0.0
  %4165 = vmatmul.mubr.f32.gmra.mxu0 %v3957
  %v4166 = vpop.f32.mrf.mxu0
  %v4167 = vadd.f32 0.0, %v4166
  %v4168 = vpop.f32.mrf.mxu0
  %4169 = vmatprep.mubr.f32.mxu0 0.0
  %4170 = vmatmul.mubr.f32.gmra.mxu0 %v3960
  %v4171 = vpop.f32.mrf.mxu0
  %v4172 = vadd.f32 0.0, %v4171
  %v4173 = vpop.f32.mrf.mxu0
  %4174 = vmatprep.mubr.f32.mxu0 0.0
  %4175 = vmatmul.mubr.f32.gmra.mxu0 %v3963
  %v4176 = vpop.f32.mrf.mxu0
  %v4177 = vadd.f32 0.0, %v4176
  %v4178 = vpop.f32.mrf.mxu0
  %4179 = vmatprep.mubr.f32.mxu0 0.0
  %4180 = vmatmul.mubr.f32.gmra.mxu0 %v3966
  %v4181 = vpop.f32.mrf.mxu0
  %v4182 = vadd.f32 0.0, %v4181
  %v4183 = vpop.f32.mrf.mxu0
  %4184 = vmatprep.mubr.f32.mxu0 0.0
  %4185 = vmatmul.mubr.f32.gmra.mxu0 %v3969
  %v4186 = vpop.f32.mrf.mxu0
  %v4187 = vadd.f32 0.0, %v4186
  %v4188 = vpop.f32.mrf.mxu0
  %4189 = vmatprep.mubr.f32.mxu0 0.0
  %4190 = vmatmul.mubr.f32.gmra.mxu0 %v3972
  %v4191 = vpop.f32.mrf.mxu0
  %v4192 = vadd.f32 0.0, %v4191
  %v4193 = vpop.f32.mrf.mxu0
  %4194 = vmatprep.mubr.f32.mxu0 0.0
  %4195 = vmatmul.mubr.f32.gmra.mxu0 %v3975
  %v4196 = vpop.f32.mrf.mxu0
  %v4197 = vadd.f32 0.0, %v4196
  %v4198 = vpop.f32.mrf.mxu0
  %4199 = vmatprep.mubr.f32.mxu0 0.0
  %4200 = vmatmul.mubr.f32.gmra.mxu0 %v3978
  %v4201 = vpop.f32.mrf.mxu0
  %v4202 = vadd.f32 0.0, %v4201
  %v4203 = vpop.f32.mrf.mxu0
  %4204 = vdwg.mxu0
  %v4205 = vadd.f32 %v3915, %v4047
  %v4206 = vadd.f32 %v3916, %v4052
  %v4207 = vadd.f32 %v3917, %v4057
  %v4208 = vadd.f32 %v3918, %v4062
  %v4209 = vadd.f32 %v3919, %v4067
  %v4210 = vadd.f32 %v3920, %v4072
  %v4211 = vadd.f32 %v3921, %v4077
  %v4212 = vadd.f32 %v3922, %v4082
  %v4213 = vadd.f32 %v3923, %v4087
  %v4214 = vadd.f32 %v3924, %v4092
  %v4215 = vadd.f32 %v3925, %v4097
  %v4216 = vadd.f32 %v3926, %v4102
  %v4217 = vadd.f32 %v3927, %v4107
  %v4218 = vadd.f32 %v3928, %v4112
  %v4219 = vadd.f32 %v3929, %v4117
  %v4220 = vadd.f32 %v3930, %v4122
  %v4221 = vadd.f32 %v3931, %v4127
  %v4222 = vadd.f32 %v3932, %v4132
  %v4223 = vadd.f32 %v3933, %v4137
  %v4224 = vadd.f32 %v3934, %v4142
  %v4225 = vadd.f32 %v3935, %v4147
  %v4226 = vadd.f32 %v3936, %v4152
  %v4227 = vadd.f32 %v3937, %v4157
  %v4228 = vadd.f32 %v3938, %v4162
  %v4229 = vadd.f32 %v3939, %v4167
  %v4230 = vadd.f32 %v3940, %v4172
  %v4231 = vadd.f32 %v3941, %v4177
  %v4232 = vadd.f32 %v3942, %v4182
  %v4233 = vadd.f32 %v3943, %v4187
  %v4234 = vadd.f32 %v3944, %v4192
  %v4235 = vadd.f32 %v3945, %v4197
  %v4236 = vadd.f32 %v3946, %v4202
  %s4237 = scalar_lea.vmem %s3, 256
  %v4238 = vld [vmem:[%s4237] sm:$0xff]
  %v4239 = vld [vmem:[%s4237 + $0x8] sm:$0xff]
  %v4240 = vld [vmem:[%s4237 + $0x10] sm:$0xff]
  %v4241 = vld [vmem:[%s4237 + $0x18] sm:$0xff]
  %v4242 = vld [vmem:[%s4237 + $0x20] sm:$0xff]
  %v4243 = vld [vmem:[%s4237 + $0x28] sm:$0xff]
  %v4244 = vld [vmem:[%s4237 + $0x30] sm:$0xff]
  %v4245 = vld [vmem:[%s4237 + $0x38] sm:$0xff]
  %v4247 = vsel %vm3086, %v3053, 0
  %v4250 = vsel %vm3086, %v3054, 0
  %4252 = vmatprep.subr.mxu0 0.0
  %4253 = vmatpush1.msra.mxu0 0.0
  %4254 = vmatprep.subr.mxu0 0.0
  %4255 = vmatpush1.msra.mxu0 0.0
  %4256 = vmatprep.subr.mxu0 0.0
  %4257 = vmatpush1.msra.mxu0 0.0
  %4258 = vmatprep.subr.mxu0 0.0
  %4259 = vmatpush1.msra.mxu0 0.0
  %4260 = vmatprep.subr.mxu0 0.0
  %4261 = vmatpush1.msra.mxu0 0.0
  %4262 = vmatprep.subr.mxu0 0.0
  %4263 = vmatpush1.msra.mxu0 0.0
  %4264 = vmatprep.subr.mxu0 0.0
  %4265 = vmatpush1.msra.mxu0 0.0
  %4266 = vmatprep.subr.mxu0 0.0
  %4267 = vmatpush1.msra.mxu0 0.0
  %4268 = vmatprep.subr.mxu0 0.0
  %4269 = vmatpush1.msra.mxu0 %v4245
  %4270 = vmatprep.subr.mxu0 0.0
  %4271 = vmatpush1.msra.mxu0 %v4244
  %4272 = vmatprep.subr.mxu0 0.0
  %4273 = vmatpush1.msra.mxu0 %v4243
  %4274 = vmatprep.subr.mxu0 0.0
  %4275 = vmatpush1.msra.mxu0 %v4242
  %4276 = vmatprep.subr.mxu0 0.0
  %4277 = vmatpush1.msra.mxu0 %v4241
  %4278 = vmatprep.subr.mxu0 0.0
  %4279 = vmatpush1.msra.mxu0 %v4240
  %4280 = vmatprep.subr.mxu0 0.0
  %4281 = vmatpush1.msra.mxu0 %v4239
  %4282 = vmatprep.subr.mxu0 0.0
  %4283 = vmatpush1.msra.mxu0 %v4238
  %4284 = vmatprep.subr.mxu0 0.0
  %4285 = vmatpush2.msra.mxu0 0.0
  %4286 = vmatprep.subr.mxu0 0.0
  %4287 = vmatpush2.msra.mxu0 0.0
  %4288 = vmatprep.subr.mxu0 0.0
  %4289 = vmatpush2.msra.mxu0 0.0
  %4290 = vmatprep.subr.mxu0 0.0
  %4291 = vmatpush2.msra.mxu0 0.0
  %4292 = vmatprep.subr.mxu0 0.0
  %4293 = vmatpush2.msra.mxu0 0.0
  %4294 = vmatprep.subr.mxu0 0.0
  %4295 = vmatpush2.msra.mxu0 0.0
  %4296 = vmatprep.subr.mxu0 0.0
  %4297 = vmatpush2.msra.mxu0 0.0
  %4298 = vmatprep.subr.mxu0 0.0
  %4299 = vmatpush2.msra.mxu0 0.0
  %4300 = vmatprep.subr.mxu0 0.0
  %4301 = vmatpush2.msra.mxu0 0.0
  %4302 = vmatprep.subr.mxu0 0.0
  %4303 = vmatpush2.msra.mxu0 0.0
  %4304 = vmatprep.subr.mxu0 0.0
  %4305 = vmatpush2.msra.mxu0 0.0
  %4306 = vmatprep.subr.mxu0 0.0
  %4307 = vmatpush2.msra.mxu0 0.0
  %4308 = vmatprep.subr.mxu0 0.0
  %4309 = vmatpush2.msra.mxu0 0.0
  %4310 = vmatprep.subr.mxu0 0.0
  %4311 = vmatpush2.msra.mxu0 0.0
  %4312 = vmatprep.subr.mxu0 0.0
  %4313 = vmatpush2.msra.mxu0 0.0
  %4314 = vmatprep.subr.mxu0 0.0
  %4315 = vmatpush2.msra.mxu0 0.0
  %4316 = vmatprep.mubr.f32.mxu0 0.0
  %4317 = vmatmul.mubr.f32.gmra.mxu0 %v3112
  %v4318 = vpop.f32.mrf.mxu0
  %v4319 = vadd.f32 0.0, %v4318
  %v4320 = vpop.f32.mrf.mxu0
  %4321 = vmatprep.mubr.f32.mxu0 0.0
  %4322 = vmatmul.mubr.f32.gmra.mxu0 %v3115
  %v4323 = vpop.f32.mrf.mxu0
  %v4324 = vadd.f32 0.0, %v4323
  %v4325 = vpop.f32.mrf.mxu0
  %4326 = vmatprep.mubr.f32.mxu0 0.0
  %4327 = vmatmul.mubr.f32.gmra.mxu0 %v3118
  %v4328 = vpop.f32.mrf.mxu0
  %v4329 = vadd.f32 0.0, %v4328
  %v4330 = vpop.f32.mrf.mxu0
  %4331 = vmatprep.mubr.f32.mxu0 0.0
  %4332 = vmatmul.mubr.f32.gmra.mxu0 %v3121
  %v4333 = vpop.f32.mrf.mxu0
  %v4334 = vadd.f32 0.0, %v4333
  %v4335 = vpop.f32.mrf.mxu0
  %4336 = vmatprep.mubr.f32.mxu0 0.0
  %4337 = vmatmul.mubr.f32.gmra.mxu0 %v3124
  %v4338 = vpop.f32.mrf.mxu0
  %v4339 = vadd.f32 0.0, %v4338
  %v4340 = vpop.f32.mrf.mxu0
  %4341 = vmatprep.mubr.f32.mxu0 0.0
  %4342 = vmatmul.mubr.f32.gmra.mxu0 %v3127
  %v4343 = vpop.f32.mrf.mxu0
  %v4344 = vadd.f32 0.0, %v4343
  %v4345 = vpop.f32.mrf.mxu0
  %4346 = vmatprep.mubr.f32.mxu0 0.0
  %4347 = vmatmul.mubr.f32.gmra.mxu0 %v3130
  %v4348 = vpop.f32.mrf.mxu0
  %v4349 = vadd.f32 0.0, %v4348
  %v4350 = vpop.f32.mrf.mxu0
  %4351 = vmatprep.mubr.f32.mxu0 0.0
  %4352 = vmatmul.mubr.f32.gmra.mxu0 %v3133
  %v4353 = vpop.f32.mrf.mxu0
  %v4354 = vadd.f32 0.0, %v4353
  %v4355 = vpop.f32.mrf.mxu0
  %4356 = vmatprep.mubr.f32.mxu0 0.0
  %4357 = vmatmul.mubr.f32.gmra.mxu0 %v3136
  %v4358 = vpop.f32.mrf.mxu0
  %v4359 = vadd.f32 0.0, %v4358
  %v4360 = vpop.f32.mrf.mxu0
  %4361 = vmatprep.mubr.f32.mxu0 0.0
  %4362 = vmatmul.mubr.f32.gmra.mxu0 %v3139
  %v4363 = vpop.f32.mrf.mxu0
  %v4364 = vadd.f32 0.0, %v4363
  %v4365 = vpop.f32.mrf.mxu0
  %4366 = vmatprep.mubr.f32.mxu0 0.0
  %4367 = vmatmul.mubr.f32.gmra.mxu0 %v3142
  %v4368 = vpop.f32.mrf.mxu0
  %v4369 = vadd.f32 0.0, %v4368
  %v4370 = vpop.f32.mrf.mxu0
  %4371 = vmatprep.mubr.f32.mxu0 0.0
  %4372 = vmatmul.mubr.f32.gmra.mxu0 %v3145
  %v4373 = vpop.f32.mrf.mxu0
  %v4374 = vadd.f32 0.0, %v4373
  %v4375 = vpop.f32.mrf.mxu0
  %4376 = vmatprep.mubr.f32.mxu0 0.0
  %4377 = vmatmul.mubr.f32.gmra.mxu0 %v3148
  %v4378 = vpop.f32.mrf.mxu0
  %v4379 = vadd.f32 0.0, %v4378
  %v4380 = vpop.f32.mrf.mxu0
  %4381 = vmatprep.mubr.f32.mxu0 0.0
  %4382 = vmatmul.mubr.f32.gmra.mxu0 %v3151
  %v4383 = vpop.f32.mrf.mxu0
  %v4384 = vadd.f32 0.0, %v4383
  %v4385 = vpop.f32.mrf.mxu0
  %4386 = vmatprep.mubr.f32.mxu0 0.0
  %4387 = vmatmul.mubr.f32.gmra.mxu0 %v3154
  %v4388 = vpop.f32.mrf.mxu0
  %v4389 = vadd.f32 0.0, %v4388
  %v4390 = vpop.f32.mrf.mxu0
  %4391 = vmatprep.mubr.f32.mxu0 0.0
  %4392 = vmatmul.mubr.f32.gmra.mxu0 %v3157
  %v4393 = vpop.f32.mrf.mxu0
  %v4394 = vadd.f32 0.0, %v4393
  %v4395 = vpop.f32.mrf.mxu0
  %4396 = vmatprep.mubr.f32.mxu0 0.0
  %4397 = vmatmul.mubr.f32.gmra.mxu0 %v3160
  %v4398 = vpop.f32.mrf.mxu0
  %v4399 = vadd.f32 0.0, %v4398
  %v4400 = vpop.f32.mrf.mxu0
  %4401 = vmatprep.mubr.f32.mxu0 0.0
  %4402 = vmatmul.mubr.f32.gmra.mxu0 %v3163
  %v4403 = vpop.f32.mrf.mxu0
  %v4404 = vadd.f32 0.0, %v4403
  %v4405 = vpop.f32.mrf.mxu0
  %4406 = vmatprep.mubr.f32.mxu0 0.0
  %4407 = vmatmul.mubr.f32.gmra.mxu0 %v3166
  %v4408 = vpop.f32.mrf.mxu0
  %v4409 = vadd.f32 0.0, %v4408
  %v4410 = vpop.f32.mrf.mxu0
  %4411 = vmatprep.mubr.f32.mxu0 0.0
  %4412 = vmatmul.mubr.f32.gmra.mxu0 %v3169
  %v4413 = vpop.f32.mrf.mxu0
  %v4414 = vadd.f32 0.0, %v4413
  %v4415 = vpop.f32.mrf.mxu0
  %4416 = vmatprep.mubr.f32.mxu0 0.0
  %4417 = vmatmul.mubr.f32.gmra.mxu0 %v3172
  %v4418 = vpop.f32.mrf.mxu0
  %v4419 = vadd.f32 0.0, %v4418
  %v4420 = vpop.f32.mrf.mxu0
  %4421 = vmatprep.mubr.f32.mxu0 0.0
  %4422 = vmatmul.mubr.f32.gmra.mxu0 %v3175
  %v4423 = vpop.f32.mrf.mxu0
  %v4424 = vadd.f32 0.0, %v4423
  %v4425 = vpop.f32.mrf.mxu0
  %4426 = vmatprep.mubr.f32.mxu0 0.0
  %4427 = vmatmul.mubr.f32.gmra.mxu0 %v3178
  %v4428 = vpop.f32.mrf.mxu0
  %v4429 = vadd.f32 0.0, %v4428
  %v4430 = vpop.f32.mrf.mxu0
  %4431 = vmatprep.mubr.f32.mxu0 0.0
  %4432 = vmatmul.mubr.f32.gmra.mxu0 %v3181
  %v4433 = vpop.f32.mrf.mxu0
  %v4434 = vadd.f32 0.0, %v4433
  %v4435 = vpop.f32.mrf.mxu0
  %4436 = vmatprep.mubr.f32.mxu0 0.0
  %4437 = vmatmul.mubr.f32.gmra.mxu0 %v3963
  %v4438 = vpop.f32.mrf.mxu0
  %v4439 = vadd.f32 0.0, %v4438
  %v4440 = vpop.f32.mrf.mxu0
  %4441 = vmatprep.mubr.f32.mxu0 0.0
  %4442 = vmatmul.mubr.f32.gmra.mxu0 %v3966
  %v4443 = vpop.f32.mrf.mxu0
  %v4444 = vadd.f32 0.0, %v4443
  %v4445 = vpop.f32.mrf.mxu0
  %4446 = vmatprep.mubr.f32.mxu0 0.0
  %4447 = vmatmul.mubr.f32.gmra.mxu0 %v3969
  %v4448 = vpop.f32.mrf.mxu0
  %v4449 = vadd.f32 0.0, %v4448
  %v4450 = vpop.f32.mrf.mxu0
  %4451 = vmatprep.mubr.f32.mxu0 0.0
  %4452 = vmatmul.mubr.f32.gmra.mxu0 %v3972
  %v4453 = vpop.f32.mrf.mxu0
  %v4454 = vadd.f32 0.0, %v4453
  %v4455 = vpop.f32.mrf.mxu0
  %4456 = vmatprep.mubr.f32.mxu0 0.0
  %4457 = vmatmul.mubr.f32.gmra.mxu0 %v3975
  %v4458 = vpop.f32.mrf.mxu0
  %v4459 = vadd.f32 0.0, %v4458
  %v4460 = vpop.f32.mrf.mxu0
  %4461 = vmatprep.mubr.f32.mxu0 0.0
  %4462 = vmatmul.mubr.f32.gmra.mxu0 %v3978
  %v4463 = vpop.f32.mrf.mxu0
  %v4464 = vadd.f32 0.0, %v4463
  %v4465 = vpop.f32.mrf.mxu0
  %4466 = vmatprep.mubr.f32.mxu0 0.0
  %4467 = vmatmul.mubr.f32.gmra.mxu0 %v4247
  %v4468 = vpop.f32.mrf.mxu0
  %v4469 = vadd.f32 0.0, %v4468
  %v4470 = vpop.f32.mrf.mxu0
  %4471 = vmatprep.mubr.f32.mxu0 0.0
  %4472 = vmatmul.mubr.f32.gmra.mxu0 %v4250
  %v4473 = vpop.f32.mrf.mxu0
  %v4474 = vadd.f32 0.0, %v4473
  %v4475 = vpop.f32.mrf.mxu0
  %4476 = vdwg.mxu0
  %v4477 = vadd.f32 %v4205, %v4319
  %v4478 = vadd.f32 %v4206, %v4324
  %v4479 = vadd.f32 %v4207, %v4329
  %v4480 = vadd.f32 %v4208, %v4334
  %v4481 = vadd.f32 %v4209, %v4339
  %v4482 = vadd.f32 %v4210, %v4344
  %v4483 = vadd.f32 %v4211, %v4349
  %v4484 = vadd.f32 %v4212, %v4354
  %v4485 = vadd.f32 %v4213, %v4359
  %v4486 = vadd.f32 %v4214, %v4364
  %v4487 = vadd.f32 %v4215, %v4369
  %v4488 = vadd.f32 %v4216, %v4374
  %v4489 = vadd.f32 %v4217, %v4379
  %v4490 = vadd.f32 %v4218, %v4384
  %v4491 = vadd.f32 %v4219, %v4389
  %v4492 = vadd.f32 %v4220, %v4394
  %v4493 = vadd.f32 %v4221, %v4399
  %v4494 = vadd.f32 %v4222, %v4404
  %v4495 = vadd.f32 %v4223, %v4409
  %v4496 = vadd.f32 %v4224, %v4414
  %v4497 = vadd.f32 %v4225, %v4419
  %v4498 = vadd.f32 %v4226, %v4424
  %v4499 = vadd.f32 %v4227, %v4429
  %v4500 = vadd.f32 %v4228, %v4434
  %v4501 = vadd.f32 %v4229, %v4439
  %v4502 = vadd.f32 %v4230, %v4444
  %v4503 = vadd.f32 %v4231, %v4449
  %v4504 = vadd.f32 %v4232, %v4454
  %v4505 = vadd.f32 %v4233, %v4459
  %v4506 = vadd.f32 %v4234, %v4464
  %v4507 = vadd.f32 %v4235, %v4469
  %v4508 = vadd.f32 %v4236, %v4474
  %s4509 = scalar_lea.vmem %s3, 320
  %v4510 = vld [vmem:[%s4509] sm:$0xff]
  %v4511 = vld [vmem:[%s4509 + $0x8] sm:$0xff]
  %v4512 = vld [vmem:[%s4509 + $0x10] sm:$0xff]
  %v4513 = vld [vmem:[%s4509 + $0x18] sm:$0xff]
  %v4514 = vld [vmem:[%s4509 + $0x20] sm:$0xff]
  %v4515 = vld [vmem:[%s4509 + $0x28] sm:$0xff]
  %v4516 = vld [vmem:[%s4509 + $0x30] sm:$0xff]
  %v4517 = vld [vmem:[%s4509 + $0x38] sm:$0xff]
  %v4519 = vsel %vm3086, %v3055, 0
  %v4522 = vsel %vm3086, %v3056, 0
  %4524 = vmatprep.subr.mxu0 0.0
  %4525 = vmatpush1.msra.mxu0 0.0
  %4526 = vmatprep.subr.mxu0 0.0
  %4527 = vmatpush1.msra.mxu0 0.0
  %4528 = vmatprep.subr.mxu0 0.0
  %4529 = vmatpush1.msra.mxu0 0.0
  %4530 = vmatprep.subr.mxu0 0.0
  %4531 = vmatpush1.msra.mxu0 0.0
  %4532 = vmatprep.subr.mxu0 0.0
  %4533 = vmatpush1.msra.mxu0 0.0
  %4534 = vmatprep.subr.mxu0 0.0
  %4535 = vmatpush1.msra.mxu0 0.0
  %4536 = vmatprep.subr.mxu0 0.0
  %4537 = vmatpush1.msra.mxu0 0.0
  %4538 = vmatprep.subr.mxu0 0.0
  %4539 = vmatpush1.msra.mxu0 0.0
  %4540 = vmatprep.subr.mxu0 0.0
  %4541 = vmatpush1.msra.mxu0 %v4517
  %4542 = vmatprep.subr.mxu0 0.0
  %4543 = vmatpush1.msra.mxu0 %v4516
  %4544 = vmatprep.subr.mxu0 0.0
  %4545 = vmatpush1.msra.mxu0 %v4515
  %4546 = vmatprep.subr.mxu0 0.0
  %4547 = vmatpush1.msra.mxu0 %v4514
  %4548 = vmatprep.subr.mxu0 0.0
  %4549 = vmatpush1.msra.mxu0 %v4513
  %4550 = vmatprep.subr.mxu0 0.0
  %4551 = vmatpush1.msra.mxu0 %v4512
  %4552 = vmatprep.subr.mxu0 0.0
  %4553 = vmatpush1.msra.mxu0 %v4511
  %4554 = vmatprep.subr.mxu0 0.0
  %4555 = vmatpush1.msra.mxu0 %v4510
  %4556 = vmatprep.subr.mxu0 0.0
  %4557 = vmatpush2.msra.mxu0 0.0
  %4558 = vmatprep.subr.mxu0 0.0
  %4559 = vmatpush2.msra.mxu0 0.0
  %4560 = vmatprep.subr.mxu0 0.0
  %4561 = vmatpush2.msra.mxu0 0.0
  %4562 = vmatprep.subr.mxu0 0.0
  %4563 = vmatpush2.msra.mxu0 0.0
  %4564 = vmatprep.subr.mxu0 0.0
  %4565 = vmatpush2.msra.mxu0 0.0
  %4566 = vmatprep.subr.mxu0 0.0
  %4567 = vmatpush2.msra.mxu0 0.0
  %4568 = vmatprep.subr.mxu0 0.0
  %4569 = vmatpush2.msra.mxu0 0.0
  %4570 = vmatprep.subr.mxu0 0.0
  %4571 = vmatpush2.msra.mxu0 0.0
  %4572 = vmatprep.subr.mxu0 0.0
  %4573 = vmatpush2.msra.mxu0 0.0
  %4574 = vmatprep.subr.mxu0 0.0
  %4575 = vmatpush2.msra.mxu0 0.0
  %4576 = vmatprep.subr.mxu0 0.0
  %4577 = vmatpush2.msra.mxu0 0.0
  %4578 = vmatprep.subr.mxu0 0.0
  %4579 = vmatpush2.msra.mxu0 0.0
  %4580 = vmatprep.subr.mxu0 0.0
  %4581 = vmatpush2.msra.mxu0 0.0
  %4582 = vmatprep.subr.mxu0 0.0
  %4583 = vmatpush2.msra.mxu0 0.0
  %4584 = vmatprep.subr.mxu0 0.0
  %4585 = vmatpush2.msra.mxu0 0.0
  %4586 = vmatprep.subr.mxu0 0.0
  %4587 = vmatpush2.msra.mxu0 0.0
  %4588 = vmatprep.mubr.f32.mxu0 0.0
  %4589 = vmatmul.mubr.f32.gmra.mxu0 %v3118
  %v4590 = vpop.f32.mrf.mxu0
  %v4591 = vadd.f32 0.0, %v4590
  %v4592 = vpop.f32.mrf.mxu0
  %4593 = vmatprep.mubr.f32.mxu0 0.0
  %4594 = vmatmul.mubr.f32.gmra.mxu0 %v3121
  %v4595 = vpop.f32.mrf.mxu0
  %v4596 = vadd.f32 0.0, %v4595
  %v4597 = vpop.f32.mrf.mxu0
  %4598 = vmatprep.mubr.f32.mxu0 0.0
  %4599 = vmatmul.mubr.f32.gmra.mxu0 %v3124
  %v4600 = vpop.f32.mrf.mxu0
  %v4601 = vadd.f32 0.0, %v4600
  %v4602 = vpop.f32.mrf.mxu0
  %4603 = vmatprep.mubr.f32.mxu0 0.0
  %4604 = vmatmul.mubr.f32.gmra.mxu0 %v3127
  %v4605 = vpop.f32.mrf.mxu0
  %v4606 = vadd.f32 0.0, %v4605
  %v4607 = vpop.f32.mrf.mxu0
  %4608 = vmatprep.mubr.f32.mxu0 0.0
  %4609 = vmatmul.mubr.f32.gmra.mxu0 %v3130
  %v4610 = vpop.f32.mrf.mxu0
  %v4611 = vadd.f32 0.0, %v4610
  %v4612 = vpop.f32.mrf.mxu0
  %4613 = vmatprep.mubr.f32.mxu0 0.0
  %4614 = vmatmul.mubr.f32.gmra.mxu0 %v3133
  %v4615 = vpop.f32.mrf.mxu0
  %v4616 = vadd.f32 0.0, %v4615
  %v4617 = vpop.f32.mrf.mxu0
  %4618 = vmatprep.mubr.f32.mxu0 0.0
  %4619 = vmatmul.mubr.f32.gmra.mxu0 %v3673
  %v4620 = vpop.f32.mrf.mxu0
  %v4621 = vadd.f32 0.0, %v4620
  %v4622 = vpop.f32.mrf.mxu0
  %4623 = vmatprep.mubr.f32.mxu0 0.0
  %4624 = vmatmul.mubr.f32.gmra.mxu0 %v3676
  %v4625 = vpop.f32.mrf.mxu0
  %v4626 = vadd.f32 0.0, %v4625
  %v4627 = vpop.f32.mrf.mxu0
  %4628 = vmatprep.mubr.f32.mxu0 0.0
  %4629 = vmatmul.mubr.f32.gmra.mxu0 %v3142
  %v4630 = vpop.f32.mrf.mxu0
  %v4631 = vadd.f32 0.0, %v4630
  %v4632 = vpop.f32.mrf.mxu0
  %4633 = vmatprep.mubr.f32.mxu0 0.0
  %4634 = vmatmul.mubr.f32.gmra.mxu0 %v3145
  %v4635 = vpop.f32.mrf.mxu0
  %v4636 = vadd.f32 0.0, %v4635
  %v4637 = vpop.f32.mrf.mxu0
  %4638 = vmatprep.mubr.f32.mxu0 0.0
  %4639 = vmatmul.mubr.f32.gmra.mxu0 %v3148
  %v4640 = vpop.f32.mrf.mxu0
  %v4641 = vadd.f32 0.0, %v4640
  %v4642 = vpop.f32.mrf.mxu0
  %4643 = vmatprep.mubr.f32.mxu0 0.0
  %4644 = vmatmul.mubr.f32.gmra.mxu0 %v3151
  %v4645 = vpop.f32.mrf.mxu0
  %v4646 = vadd.f32 0.0, %v4645
  %v4647 = vpop.f32.mrf.mxu0
  %4648 = vmatprep.mubr.f32.mxu0 0.0
  %4649 = vmatmul.mubr.f32.gmra.mxu0 %v3154
  %v4650 = vpop.f32.mrf.mxu0
  %v4651 = vadd.f32 0.0, %v4650
  %v4652 = vpop.f32.mrf.mxu0
  %4653 = vmatprep.mubr.f32.mxu0 0.0
  %4654 = vmatmul.mubr.f32.gmra.mxu0 %v3157
  %v4655 = vpop.f32.mrf.mxu0
  %v4656 = vadd.f32 0.0, %v4655
  %v4657 = vpop.f32.mrf.mxu0
  %4658 = vmatprep.mubr.f32.mxu0 0.0
  %4659 = vmatmul.mubr.f32.gmra.mxu0 %v3679
  %v4660 = vpop.f32.mrf.mxu0
  %v4661 = vadd.f32 0.0, %v4660
  %v4662 = vpop.f32.mrf.mxu0
  %4663 = vmatprep.mubr.f32.mxu0 0.0
  %4664 = vmatmul.mubr.f32.gmra.mxu0 %v3682
  %v4665 = vpop.f32.mrf.mxu0
  %v4666 = vadd.f32 0.0, %v4665
  %v4667 = vpop.f32.mrf.mxu0
  %4668 = vmatprep.mubr.f32.mxu0 0.0
  %4669 = vmatmul.mubr.f32.gmra.mxu0 %v3166
  %v4670 = vpop.f32.mrf.mxu0
  %v4671 = vadd.f32 0.0, %v4670
  %v4672 = vpop.f32.mrf.mxu0
  %4673 = vmatprep.mubr.f32.mxu0 0.0
  %4674 = vmatmul.mubr.f32.gmra.mxu0 %v3169
  %v4675 = vpop.f32.mrf.mxu0
  %v4676 = vadd.f32 0.0, %v4675
  %v4677 = vpop.f32.mrf.mxu0
  %4678 = vmatprep.mubr.f32.mxu0 0.0
  %4679 = vmatmul.mubr.f32.gmra.mxu0 %v3172
  %v4680 = vpop.f32.mrf.mxu0
  %v4681 = vadd.f32 0.0, %v4680
  %v4682 = vpop.f32.mrf.mxu0
  %4683 = vmatprep.mubr.f32.mxu0 0.0
  %4684 = vmatmul.mubr.f32.gmra.mxu0 %v3175
  %v4685 = vpop.f32.mrf.mxu0
  %v4686 = vadd.f32 0.0, %v4685
  %v4687 = vpop.f32.mrf.mxu0
  %4688 = vmatprep.mubr.f32.mxu0 0.0
  %4689 = vmatmul.mubr.f32.gmra.mxu0 %v3178
  %v4690 = vpop.f32.mrf.mxu0
  %v4691 = vadd.f32 0.0, %v4690
  %v4692 = vpop.f32.mrf.mxu0
  %4693 = vmatprep.mubr.f32.mxu0 0.0
  %4694 = vmatmul.mubr.f32.gmra.mxu0 %v3181
  %v4695 = vpop.f32.mrf.mxu0
  %v4696 = vadd.f32 0.0, %v4695
  %v4697 = vpop.f32.mrf.mxu0
  %4698 = vmatprep.mubr.f32.mxu0 0.0
  %4699 = vmatmul.mubr.f32.gmra.mxu0 %v3685
  %v4700 = vpop.f32.mrf.mxu0
  %v4701 = vadd.f32 0.0, %v4700
  %v4702 = vpop.f32.mrf.mxu0
  %4703 = vmatprep.mubr.f32.mxu0 0.0
  %4704 = vmatmul.mubr.f32.gmra.mxu0 %v3688
  %v4705 = vpop.f32.mrf.mxu0
  %v4706 = vadd.f32 0.0, %v4705
  %v4707 = vpop.f32.mrf.mxu0
  %4708 = vmatprep.mubr.f32.mxu0 0.0
  %4709 = vmatmul.mubr.f32.gmra.mxu0 %v3969
  %v4710 = vpop.f32.mrf.mxu0
  %v4711 = vadd.f32 0.0, %v4710
  %v4712 = vpop.f32.mrf.mxu0
  %4713 = vmatprep.mubr.f32.mxu0 0.0
  %4714 = vmatmul.mubr.f32.gmra.mxu0 %v3972
  %v4715 = vpop.f32.mrf.mxu0
  %v4716 = vadd.f32 0.0, %v4715
  %v4717 = vpop.f32.mrf.mxu0
  %4718 = vmatprep.mubr.f32.mxu0 0.0
  %4719 = vmatmul.mubr.f32.gmra.mxu0 %v3975
  %v4720 = vpop.f32.mrf.mxu0
  %v4721 = vadd.f32 0.0, %v4720
  %v4722 = vpop.f32.mrf.mxu0
  %4723 = vmatprep.mubr.f32.mxu0 0.0
  %4724 = vmatmul.mubr.f32.gmra.mxu0 %v3978
  %v4725 = vpop.f32.mrf.mxu0
  %v4726 = vadd.f32 0.0, %v4725
  %v4727 = vpop.f32.mrf.mxu0
  %4728 = vmatprep.mubr.f32.mxu0 0.0
  %4729 = vmatmul.mubr.f32.gmra.mxu0 %v4247
  %v4730 = vpop.f32.mrf.mxu0
  %v4731 = vadd.f32 0.0, %v4730
  %v4732 = vpop.f32.mrf.mxu0
  %4733 = vmatprep.mubr.f32.mxu0 0.0
  %4734 = vmatmul.mubr.f32.gmra.mxu0 %v4250
  %v4735 = vpop.f32.mrf.mxu0
  %v4736 = vadd.f32 0.0, %v4735
  %v4737 = vpop.f32.mrf.mxu0
  %4738 = vmatprep.mubr.f32.mxu0 0.0
  %4739 = vmatmul.mubr.f32.gmra.mxu0 %v4519
  %v4740 = vpop.f32.mrf.mxu0
  %v4741 = vadd.f32 0.0, %v4740
  %v4742 = vpop.f32.mrf.mxu0
  %4743 = vmatprep.mubr.f32.mxu0 0.0
  %4744 = vmatmul.mubr.f32.gmra.mxu0 %v4522
  %v4745 = vpop.f32.mrf.mxu0
  %v4746 = vadd.f32 0.0, %v4745
  %v4747 = vpop.f32.mrf.mxu0
  %4748 = vdwg.mxu0
  %v4749 = vadd.f32 %v4477, %v4591
  %v4750 = vadd.f32 %v4478, %v4596
  %v4751 = vadd.f32 %v4479, %v4601
  %v4752 = vadd.f32 %v4480, %v4606
  %v4753 = vadd.f32 %v4481, %v4611
  %v4754 = vadd.f32 %v4482, %v4616
  %v4755 = vadd.f32 %v4483, %v4621
  %v4756 = vadd.f32 %v4484, %v4626
  %v4757 = vadd.f32 %v4485, %v4631
  %v4758 = vadd.f32 %v4486, %v4636
  %v4759 = vadd.f32 %v4487, %v4641
  %v4760 = vadd.f32 %v4488, %v4646
  %v4761 = vadd.f32 %v4489, %v4651
  %v4762 = vadd.f32 %v4490, %v4656
  %v4763 = vadd.f32 %v4491, %v4661
  %v4764 = vadd.f32 %v4492, %v4666
  %v4765 = vadd.f32 %v4493, %v4671
  %v4766 = vadd.f32 %v4494, %v4676
  %v4767 = vadd.f32 %v4495, %v4681
  %v4768 = vadd.f32 %v4496, %v4686
  %v4769 = vadd.f32 %v4497, %v4691
  %v4770 = vadd.f32 %v4498, %v4696
  %v4771 = vadd.f32 %v4499, %v4701
  %v4772 = vadd.f32 %v4500, %v4706
  %v4773 = vadd.f32 %v4501, %v4711
  %v4774 = vadd.f32 %v4502, %v4716
  %v4775 = vadd.f32 %v4503, %v4721
  %v4776 = vadd.f32 %v4504, %v4726
  %v4777 = vadd.f32 %v4505, %v4731
  %v4778 = vadd.f32 %v4506, %v4736
  %v4779 = vadd.f32 %v4507, %v4741
  %v4780 = vadd.f32 %v4508, %v4746
  %s4781 = scalar_lea.vmem %s3, 384
  %v4782 = vld [vmem:[%s4781] sm:$0xff]
  %v4783 = vld [vmem:[%s4781 + $0x8] sm:$0xff]
  %v4784 = vld [vmem:[%s4781 + $0x10] sm:$0xff]
  %v4785 = vld [vmem:[%s4781 + $0x18] sm:$0xff]
  %v4786 = vld [vmem:[%s4781 + $0x20] sm:$0xff]
  %v4787 = vld [vmem:[%s4781 + $0x28] sm:$0xff]
  %v4788 = vld [vmem:[%s4781 + $0x30] sm:$0xff]
  %v4789 = vld [vmem:[%s4781 + $0x38] sm:$0xff]
  %v4791 = vsel %vm3086, %v3057, 0
  %v4794 = vsel %vm3086, %v3058, 0
  %v4797 = vsel %vm3086, %v3059, 0
  %v4800 = vsel %vm3086, %v3060, 0
  %v4803 = vsel %vm3086, %v3061, 0
  %v4806 = vsel %vm3086, %v3062, 0
  %v4809 = vsel %vm3086, %v3063, 0
  %v4812 = vsel %vm3086, %v3064, 0
  %4814 = vmatprep.subr.mxu0 0.0
  %4815 = vmatpush1.msra.mxu0 0.0
  %4816 = vmatprep.subr.mxu0 0.0
  %4817 = vmatpush1.msra.mxu0 0.0
  %4818 = vmatprep.subr.mxu0 0.0
  %4819 = vmatpush1.msra.mxu0 0.0
  %4820 = vmatprep.subr.mxu0 0.0
  %4821 = vmatpush1.msra.mxu0 0.0
  %4822 = vmatprep.subr.mxu0 0.0
  %4823 = vmatpush1.msra.mxu0 0.0
  %4824 = vmatprep.subr.mxu0 0.0
  %4825 = vmatpush1.msra.mxu0 0.0
  %4826 = vmatprep.subr.mxu0 0.0
  %4827 = vmatpush1.msra.mxu0 0.0
  %4828 = vmatprep.subr.mxu0 0.0
  %4829 = vmatpush1.msra.mxu0 0.0
  %4830 = vmatprep.subr.mxu0 0.0
  %4831 = vmatpush1.msra.mxu0 %v4789
  %4832 = vmatprep.subr.mxu0 0.0
  %4833 = vmatpush1.msra.mxu0 %v4788
  %4834 = vmatprep.subr.mxu0 0.0
  %4835 = vmatpush1.msra.mxu0 %v4787
  %4836 = vmatprep.subr.mxu0 0.0
  %4837 = vmatpush1.msra.mxu0 %v4786
  %4838 = vmatprep.subr.mxu0 0.0
  %4839 = vmatpush1.msra.mxu0 %v4785
  %4840 = vmatprep.subr.mxu0 0.0
  %4841 = vmatpush1.msra.mxu0 %v4784
  %4842 = vmatprep.subr.mxu0 0.0
  %4843 = vmatpush1.msra.mxu0 %v4783
  %4844 = vmatprep.subr.mxu0 0.0
  %4845 = vmatpush1.msra.mxu0 %v4782
  %4846 = vmatprep.subr.mxu0 0.0
  %4847 = vmatpush2.msra.mxu0 0.0
  %4848 = vmatprep.subr.mxu0 0.0
  %4849 = vmatpush2.msra.mxu0 0.0
  %4850 = vmatprep.subr.mxu0 0.0
  %4851 = vmatpush2.msra.mxu0 0.0
  %4852 = vmatprep.subr.mxu0 0.0
  %4853 = vmatpush2.msra.mxu0 0.0
  %4854 = vmatprep.subr.mxu0 0.0
  %4855 = vmatpush2.msra.mxu0 0.0
  %4856 = vmatprep.subr.mxu0 0.0
  %4857 = vmatpush2.msra.mxu0 0.0
  %4858 = vmatprep.subr.mxu0 0.0
  %4859 = vmatpush2.msra.mxu0 0.0
  %4860 = vmatprep.subr.mxu0 0.0
  %4861 = vmatpush2.msra.mxu0 0.0
  %4862 = vmatprep.subr.mxu0 0.0
  %4863 = vmatpush2.msra.mxu0 0.0
  %4864 = vmatprep.subr.mxu0 0.0
  %4865 = vmatpush2.msra.mxu0 0.0
  %4866 = vmatprep.subr.mxu0 0.0
  %4867 = vmatpush2.msra.mxu0 0.0
  %4868 = vmatprep.subr.mxu0 0.0
  %4869 = vmatpush2.msra.mxu0 0.0
  %4870 = vmatprep.subr.mxu0 0.0
  %4871 = vmatpush2.msra.mxu0 0.0
  %4872 = vmatprep.subr.mxu0 0.0
  %4873 = vmatpush2.msra.mxu0 0.0
  %4874 = vmatprep.subr.mxu0 0.0
  %4875 = vmatpush2.msra.mxu0 0.0
  %4876 = vmatprep.subr.mxu0 0.0
  %4877 = vmatpush2.msra.mxu0 0.0
  %4878 = vmatprep.mubr.f32.mxu0 0.0
  %4879 = vmatmul.mubr.f32.gmra.mxu0 %v3421
  %v4880 = vpop.f32.mrf.mxu0
  %v4881 = vadd.f32 0.0, %v4880
  %v4882 = vpop.f32.mrf.mxu0
  %4883 = vmatprep.mubr.f32.mxu0 0.0
  %4884 = vmatmul.mubr.f32.gmra.mxu0 %v3424
  %v4885 = vpop.f32.mrf.mxu0
  %v4886 = vadd.f32 0.0, %v4885
  %v4887 = vpop.f32.mrf.mxu0
  %4888 = vmatprep.mubr.f32.mxu0 0.0
  %4889 = vmatmul.mubr.f32.gmra.mxu0 %v3136
  %v4890 = vpop.f32.mrf.mxu0
  %v4891 = vadd.f32 0.0, %v4890
  %v4892 = vpop.f32.mrf.mxu0
  %4893 = vmatprep.mubr.f32.mxu0 0.0
  %4894 = vmatmul.mubr.f32.gmra.mxu0 %v3139
  %v4895 = vpop.f32.mrf.mxu0
  %v4896 = vadd.f32 0.0, %v4895
  %v4897 = vpop.f32.mrf.mxu0
  %4898 = vmatprep.mubr.f32.mxu0 0.0
  %4899 = vmatmul.mubr.f32.gmra.mxu0 %v3142
  %v4900 = vpop.f32.mrf.mxu0
  %v4901 = vadd.f32 0.0, %v4900
  %v4902 = vpop.f32.mrf.mxu0
  %4903 = vmatprep.mubr.f32.mxu0 0.0
  %4904 = vmatmul.mubr.f32.gmra.mxu0 %v3145
  %v4905 = vpop.f32.mrf.mxu0
  %v4906 = vadd.f32 0.0, %v4905
  %v4907 = vpop.f32.mrf.mxu0
  %4908 = vmatprep.mubr.f32.mxu0 0.0
  %4909 = vmatmul.mubr.f32.gmra.mxu0 %v3148
  %v4910 = vpop.f32.mrf.mxu0
  %v4911 = vadd.f32 0.0, %v4910
  %v4912 = vpop.f32.mrf.mxu0
  %4913 = vmatprep.mubr.f32.mxu0 0.0
  %4914 = vmatmul.mubr.f32.gmra.mxu0 %v3151
  %v4915 = vpop.f32.mrf.mxu0
  %v4916 = vadd.f32 0.0, %v4915
  %v4917 = vpop.f32.mrf.mxu0
  %4918 = vmatprep.mubr.f32.mxu0 0.0
  %4919 = vmatmul.mubr.f32.gmra.mxu0 %v3427
  %v4920 = vpop.f32.mrf.mxu0
  %v4921 = vadd.f32 0.0, %v4920
  %v4922 = vpop.f32.mrf.mxu0
  %4923 = vmatprep.mubr.f32.mxu0 0.0
  %4924 = vmatmul.mubr.f32.gmra.mxu0 %v3430
  %v4925 = vpop.f32.mrf.mxu0
  %v4926 = vadd.f32 0.0, %v4925
  %v4927 = vpop.f32.mrf.mxu0
  %4928 = vmatprep.mubr.f32.mxu0 0.0
  %4929 = vmatmul.mubr.f32.gmra.mxu0 %v3160
  %v4930 = vpop.f32.mrf.mxu0
  %v4931 = vadd.f32 0.0, %v4930
  %v4932 = vpop.f32.mrf.mxu0
  %4933 = vmatprep.mubr.f32.mxu0 0.0
  %4934 = vmatmul.mubr.f32.gmra.mxu0 %v3163
  %v4935 = vpop.f32.mrf.mxu0
  %v4936 = vadd.f32 0.0, %v4935
  %v4937 = vpop.f32.mrf.mxu0
  %4938 = vmatprep.mubr.f32.mxu0 0.0
  %4939 = vmatmul.mubr.f32.gmra.mxu0 %v3166
  %v4940 = vpop.f32.mrf.mxu0
  %v4941 = vadd.f32 0.0, %v4940
  %v4942 = vpop.f32.mrf.mxu0
  %4943 = vmatprep.mubr.f32.mxu0 0.0
  %4944 = vmatmul.mubr.f32.gmra.mxu0 %v3169
  %v4945 = vpop.f32.mrf.mxu0
  %v4946 = vadd.f32 0.0, %v4945
  %v4947 = vpop.f32.mrf.mxu0
  %4948 = vmatprep.mubr.f32.mxu0 0.0
  %4949 = vmatmul.mubr.f32.gmra.mxu0 %v3172
  %v4950 = vpop.f32.mrf.mxu0
  %v4951 = vadd.f32 0.0, %v4950
  %v4952 = vpop.f32.mrf.mxu0
  %4953 = vmatprep.mubr.f32.mxu0 0.0
  %4954 = vmatmul.mubr.f32.gmra.mxu0 %v3175
  %v4955 = vpop.f32.mrf.mxu0
  %v4956 = vadd.f32 0.0, %v4955
  %v4957 = vpop.f32.mrf.mxu0
  %4958 = vmatprep.mubr.f32.mxu0 0.0
  %4959 = vmatmul.mubr.f32.gmra.mxu0 %v3957
  %v4960 = vpop.f32.mrf.mxu0
  %v4961 = vadd.f32 0.0, %v4960
  %v4962 = vpop.f32.mrf.mxu0
  %4963 = vmatprep.mubr.f32.mxu0 0.0
  %4964 = vmatmul.mubr.f32.gmra.mxu0 %v3960
  %v4965 = vpop.f32.mrf.mxu0
  %v4966 = vadd.f32 0.0, %v4965
  %v4967 = vpop.f32.mrf.mxu0
  %4968 = vmatprep.mubr.f32.mxu0 0.0
  %4969 = vmatmul.mubr.f32.gmra.mxu0 %v3963
  %v4970 = vpop.f32.mrf.mxu0
  %v4971 = vadd.f32 0.0, %v4970
  %v4972 = vpop.f32.mrf.mxu0
  %4973 = vmatprep.mubr.f32.mxu0 0.0
  %4974 = vmatmul.mubr.f32.gmra.mxu0 %v3966
  %v4975 = vpop.f32.mrf.mxu0
  %v4976 = vadd.f32 0.0, %v4975
  %v4977 = vpop.f32.mrf.mxu0
  %4978 = vmatprep.mubr.f32.mxu0 0.0
  %4979 = vmatmul.mubr.f32.gmra.mxu0 %v3969
  %v4980 = vpop.f32.mrf.mxu0
  %v4981 = vadd.f32 0.0, %v4980
  %v4982 = vpop.f32.mrf.mxu0
  %4983 = vmatprep.mubr.f32.mxu0 0.0
  %4984 = vmatmul.mubr.f32.gmra.mxu0 %v3972
  %v4985 = vpop.f32.mrf.mxu0
  %v4986 = vadd.f32 0.0, %v4985
  %v4987 = vpop.f32.mrf.mxu0
  %4988 = vmatprep.mubr.f32.mxu0 0.0
  %4989 = vmatmul.mubr.f32.gmra.mxu0 %v3975
  %v4990 = vpop.f32.mrf.mxu0
  %v4991 = vadd.f32 0.0, %v4990
  %v4992 = vpop.f32.mrf.mxu0
  %4993 = vmatprep.mubr.f32.mxu0 0.0
  %4994 = vmatmul.mubr.f32.gmra.mxu0 %v3978
  %v4995 = vpop.f32.mrf.mxu0
  %v4996 = vadd.f32 0.0, %v4995
  %v4997 = vpop.f32.mrf.mxu0
  %4998 = vmatprep.mubr.f32.mxu0 0.0
  %4999 = vmatmul.mubr.f32.gmra.mxu0 %v4791
  %v5000 = vpop.f32.mrf.mxu0
  %v5001 = vadd.f32 0.0, %v5000
  %v5002 = vpop.f32.mrf.mxu0
  %5003 = vmatprep.mubr.f32.mxu0 0.0
  %5004 = vmatmul.mubr.f32.gmra.mxu0 %v4794
  %v5005 = vpop.f32.mrf.mxu0
  %v5006 = vadd.f32 0.0, %v5005
  %v5007 = vpop.f32.mrf.mxu0
  %5008 = vmatprep.mubr.f32.mxu0 0.0
  %5009 = vmatmul.mubr.f32.gmra.mxu0 %v4797
  %v5010 = vpop.f32.mrf.mxu0
  %v5011 = vadd.f32 0.0, %v5010
  %v5012 = vpop.f32.mrf.mxu0
  %5013 = vmatprep.mubr.f32.mxu0 0.0
  %5014 = vmatmul.mubr.f32.gmra.mxu0 %v4800
  %v5015 = vpop.f32.mrf.mxu0
  %v5016 = vadd.f32 0.0, %v5015
  %v5017 = vpop.f32.mrf.mxu0
  %5018 = vmatprep.mubr.f32.mxu0 0.0
  %5019 = vmatmul.mubr.f32.gmra.mxu0 %v4803
  %v5020 = vpop.f32.mrf.mxu0
  %v5021 = vadd.f32 0.0, %v5020
  %v5022 = vpop.f32.mrf.mxu0
  %5023 = vmatprep.mubr.f32.mxu0 0.0
  %5024 = vmatmul.mubr.f32.gmra.mxu0 %v4806
  %v5025 = vpop.f32.mrf.mxu0
  %v5026 = vadd.f32 0.0, %v5025
  %v5027 = vpop.f32.mrf.mxu0
  %5028 = vmatprep.mubr.f32.mxu0 0.0
  %5029 = vmatmul.mubr.f32.gmra.mxu0 %v4809
  %v5030 = vpop.f32.mrf.mxu0
  %v5031 = vadd.f32 0.0, %v5030
  %v5032 = vpop.f32.mrf.mxu0
  %5033 = vmatprep.mubr.f32.mxu0 0.0
  %5034 = vmatmul.mubr.f32.gmra.mxu0 %v4812
  %v5035 = vpop.f32.mrf.mxu0
  %v5036 = vadd.f32 0.0, %v5035
  %v5037 = vpop.f32.mrf.mxu0
  %5038 = vdwg.mxu0
  %v5039 = vadd.f32 %v4749, %v4881
  %v5040 = vadd.f32 %v4750, %v4886
  %v5041 = vadd.f32 %v4751, %v4891
  %v5042 = vadd.f32 %v4752, %v4896
  %v5043 = vadd.f32 %v4753, %v4901
  %v5044 = vadd.f32 %v4754, %v4906
  %v5045 = vadd.f32 %v4755, %v4911
  %v5046 = vadd.f32 %v4756, %v4916
  %v5047 = vadd.f32 %v4757, %v4921
  %v5048 = vadd.f32 %v4758, %v4926
  %v5049 = vadd.f32 %v4759, %v4931
  %v5050 = vadd.f32 %v4760, %v4936
  %v5051 = vadd.f32 %v4761, %v4941
  %v5052 = vadd.f32 %v4762, %v4946
  %v5053 = vadd.f32 %v4763, %v4951
  %v5054 = vadd.f32 %v4764, %v4956
  %v5055 = vadd.f32 %v4765, %v4961
  %v5056 = vadd.f32 %v4766, %v4966
  %v5057 = vadd.f32 %v4767, %v4971
  %v5058 = vadd.f32 %v4768, %v4976
  %v5059 = vadd.f32 %v4769, %v4981
  %v5060 = vadd.f32 %v4770, %v4986
  %v5061 = vadd.f32 %v4771, %v4991
  %v5062 = vadd.f32 %v4772, %v4996
  %v5063 = vadd.f32 %v4773, %v5001
  %v5064 = vadd.f32 %v4774, %v5006
  %v5065 = vadd.f32 %v4775, %v5011
  %v5066 = vadd.f32 %v4776, %v5016
  %v5067 = vadd.f32 %v4777, %v5021
  %v5068 = vadd.f32 %v4778, %v5026
  %v5069 = vadd.f32 %v4779, %v5031
  %v5070 = vadd.f32 %v4780, %v5036
  %s5071 = scalar_lea.vmem %s3, 448
  %v5072 = vld [vmem:[%s5071] sm:$0xff]
  %v5073 = vld [vmem:[%s5071 + $0x8] sm:$0xff]
  %v5074 = vld [vmem:[%s5071 + $0x10] sm:$0xff]
  %v5075 = vld [vmem:[%s5071 + $0x18] sm:$0xff]
  %v5076 = vld [vmem:[%s5071 + $0x20] sm:$0xff]
  %v5077 = vld [vmem:[%s5071 + $0x28] sm:$0xff]
  %v5078 = vld [vmem:[%s5071 + $0x30] sm:$0xff]
  %v5079 = vld [vmem:[%s5071 + $0x38] sm:$0xff]
  %v5081 = vsel %vm3086, %v3065, 0
  %v5084 = vsel %vm3086, %v3066, 0
  %5086 = vmatprep.subr.mxu0 0.0
  %5087 = vmatpush1.msra.mxu0 0.0
  %5088 = vmatprep.subr.mxu0 0.0
  %5089 = vmatpush1.msra.mxu0 0.0
  %5090 = vmatprep.subr.mxu0 0.0
  %5091 = vmatpush1.msra.mxu0 0.0
  %5092 = vmatprep.subr.mxu0 0.0
  %5093 = vmatpush1.msra.mxu0 0.0
  %5094 = vmatprep.subr.mxu0 0.0
  %5095 = vmatpush1.msra.mxu0 0.0
  %5096 = vmatprep.subr.mxu0 0.0
  %5097 = vmatpush1.msra.mxu0 0.0
  %5098 = vmatprep.subr.mxu0 0.0
  %5099 = vmatpush1.msra.mxu0 0.0
  %5100 = vmatprep.subr.mxu0 0.0
  %5101 = vmatpush1.msra.mxu0 0.0
  %5102 = vmatprep.subr.mxu0 0.0
  %5103 = vmatpush1.msra.mxu0 %v5079
  %5104 = vmatprep.subr.mxu0 0.0
  %5105 = vmatpush1.msra.mxu0 %v5078
  %5106 = vmatprep.subr.mxu0 0.0
  %5107 = vmatpush1.msra.mxu0 %v5077
  %5108 = vmatprep.subr.mxu0 0.0
  %5109 = vmatpush1.msra.mxu0 %v5076
  %5110 = vmatprep.subr.mxu0 0.0
  %5111 = vmatpush1.msra.mxu0 %v5075
  %5112 = vmatprep.subr.mxu0 0.0
  %5113 = vmatpush1.msra.mxu0 %v5074
  %5114 = vmatprep.subr.mxu0 0.0
  %5115 = vmatpush1.msra.mxu0 %v5073
  %5116 = vmatprep.subr.mxu0 0.0
  %5117 = vmatpush1.msra.mxu0 %v5072
  %5118 = vmatprep.subr.mxu0 0.0
  %5119 = vmatpush2.msra.mxu0 0.0
  %5120 = vmatprep.subr.mxu0 0.0
  %5121 = vmatpush2.msra.mxu0 0.0
  %5122 = vmatprep.subr.mxu0 0.0
  %5123 = vmatpush2.msra.mxu0 0.0
  %5124 = vmatprep.subr.mxu0 0.0
  %5125 = vmatpush2.msra.mxu0 0.0
  %5126 = vmatprep.subr.mxu0 0.0
  %5127 = vmatpush2.msra.mxu0 0.0
  %5128 = vmatprep.subr.mxu0 0.0
  %5129 = vmatpush2.msra.mxu0 0.0
  %5130 = vmatprep.subr.mxu0 0.0
  %5131 = vmatpush2.msra.mxu0 0.0
  %5132 = vmatprep.subr.mxu0 0.0
  %5133 = vmatpush2.msra.mxu0 0.0
  %5134 = vmatprep.subr.mxu0 0.0
  %5135 = vmatpush2.msra.mxu0 0.0
  %5136 = vmatprep.subr.mxu0 0.0
  %5137 = vmatpush2.msra.mxu0 0.0
  %5138 = vmatprep.subr.mxu0 0.0
  %5139 = vmatpush2.msra.mxu0 0.0
  %5140 = vmatprep.subr.mxu0 0.0
  %5141 = vmatpush2.msra.mxu0 0.0
  %5142 = vmatprep.subr.mxu0 0.0
  %5143 = vmatpush2.msra.mxu0 0.0
  %5144 = vmatprep.subr.mxu0 0.0
  %5145 = vmatpush2.msra.mxu0 0.0
  %5146 = vmatprep.subr.mxu0 0.0
  %5147 = vmatpush2.msra.mxu0 0.0
  %5148 = vmatprep.subr.mxu0 0.0
  %5149 = vmatpush2.msra.mxu0 0.0
  %5150 = vmatprep.mubr.f32.mxu0 0.0
  %5151 = vmatmul.mubr.f32.gmra.mxu0 %v3136
  %v5152 = vpop.f32.mrf.mxu0
  %v5153 = vadd.f32 0.0, %v5152
  %v5154 = vpop.f32.mrf.mxu0
  %5155 = vmatprep.mubr.f32.mxu0 0.0
  %5156 = vmatmul.mubr.f32.gmra.mxu0 %v3139
  %v5157 = vpop.f32.mrf.mxu0
  %v5158 = vadd.f32 0.0, %v5157
  %v5159 = vpop.f32.mrf.mxu0
  %5160 = vmatprep.mubr.f32.mxu0 0.0
  %5161 = vmatmul.mubr.f32.gmra.mxu0 %v3142
  %v5162 = vpop.f32.mrf.mxu0
  %v5163 = vadd.f32 0.0, %v5162
  %v5164 = vpop.f32.mrf.mxu0
  %5165 = vmatprep.mubr.f32.mxu0 0.0
  %5166 = vmatmul.mubr.f32.gmra.mxu0 %v3145
  %v5167 = vpop.f32.mrf.mxu0
  %v5168 = vadd.f32 0.0, %v5167
  %v5169 = vpop.f32.mrf.mxu0
  %5170 = vmatprep.mubr.f32.mxu0 0.0
  %5171 = vmatmul.mubr.f32.gmra.mxu0 %v3148
  %v5172 = vpop.f32.mrf.mxu0
  %v5173 = vadd.f32 0.0, %v5172
  %v5174 = vpop.f32.mrf.mxu0
  %5175 = vmatprep.mubr.f32.mxu0 0.0
  %5176 = vmatmul.mubr.f32.gmra.mxu0 %v3151
  %v5177 = vpop.f32.mrf.mxu0
  %v5178 = vadd.f32 0.0, %v5177
  %v5179 = vpop.f32.mrf.mxu0
  %5180 = vmatprep.mubr.f32.mxu0 0.0
  %5181 = vmatmul.mubr.f32.gmra.mxu0 %v3154
  %v5182 = vpop.f32.mrf.mxu0
  %v5183 = vadd.f32 0.0, %v5182
  %v5184 = vpop.f32.mrf.mxu0
  %5185 = vmatprep.mubr.f32.mxu0 0.0
  %5186 = vmatmul.mubr.f32.gmra.mxu0 %v3157
  %v5187 = vpop.f32.mrf.mxu0
  %v5188 = vadd.f32 0.0, %v5187
  %v5189 = vpop.f32.mrf.mxu0
  %5190 = vmatprep.mubr.f32.mxu0 0.0
  %5191 = vmatmul.mubr.f32.gmra.mxu0 %v3160
  %v5192 = vpop.f32.mrf.mxu0
  %v5193 = vadd.f32 0.0, %v5192
  %v5194 = vpop.f32.mrf.mxu0
  %5195 = vmatprep.mubr.f32.mxu0 0.0
  %5196 = vmatmul.mubr.f32.gmra.mxu0 %v3163
  %v5197 = vpop.f32.mrf.mxu0
  %v5198 = vadd.f32 0.0, %v5197
  %v5199 = vpop.f32.mrf.mxu0
  %5200 = vmatprep.mubr.f32.mxu0 0.0
  %5201 = vmatmul.mubr.f32.gmra.mxu0 %v3166
  %v5202 = vpop.f32.mrf.mxu0
  %v5203 = vadd.f32 0.0, %v5202
  %v5204 = vpop.f32.mrf.mxu0
  %5205 = vmatprep.mubr.f32.mxu0 0.0
  %5206 = vmatmul.mubr.f32.gmra.mxu0 %v3169
  %v5207 = vpop.f32.mrf.mxu0
  %v5208 = vadd.f32 0.0, %v5207
  %v5209 = vpop.f32.mrf.mxu0
  %5210 = vmatprep.mubr.f32.mxu0 0.0
  %5211 = vmatmul.mubr.f32.gmra.mxu0 %v3172
  %v5212 = vpop.f32.mrf.mxu0
  %v5213 = vadd.f32 0.0, %v5212
  %v5214 = vpop.f32.mrf.mxu0
  %5215 = vmatprep.mubr.f32.mxu0 0.0
  %5216 = vmatmul.mubr.f32.gmra.mxu0 %v3175
  %v5217 = vpop.f32.mrf.mxu0
  %v5218 = vadd.f32 0.0, %v5217
  %v5219 = vpop.f32.mrf.mxu0
  %5220 = vmatprep.mubr.f32.mxu0 0.0
  %5221 = vmatmul.mubr.f32.gmra.mxu0 %v3178
  %v5222 = vpop.f32.mrf.mxu0
  %v5223 = vadd.f32 0.0, %v5222
  %v5224 = vpop.f32.mrf.mxu0
  %5225 = vmatprep.mubr.f32.mxu0 0.0
  %5226 = vmatmul.mubr.f32.gmra.mxu0 %v3181
  %v5227 = vpop.f32.mrf.mxu0
  %v5228 = vadd.f32 0.0, %v5227
  %v5229 = vpop.f32.mrf.mxu0
  %5230 = vmatprep.mubr.f32.mxu0 0.0
  %5231 = vmatmul.mubr.f32.gmra.mxu0 %v3963
  %v5232 = vpop.f32.mrf.mxu0
  %v5233 = vadd.f32 0.0, %v5232
  %v5234 = vpop.f32.mrf.mxu0
  %5235 = vmatprep.mubr.f32.mxu0 0.0
  %5236 = vmatmul.mubr.f32.gmra.mxu0 %v3966
  %v5237 = vpop.f32.mrf.mxu0
  %v5238 = vadd.f32 0.0, %v5237
  %v5239 = vpop.f32.mrf.mxu0
  %5240 = vmatprep.mubr.f32.mxu0 0.0
  %5241 = vmatmul.mubr.f32.gmra.mxu0 %v3969
  %v5242 = vpop.f32.mrf.mxu0
  %v5243 = vadd.f32 0.0, %v5242
  %v5244 = vpop.f32.mrf.mxu0
  %5245 = vmatprep.mubr.f32.mxu0 0.0
  %5246 = vmatmul.mubr.f32.gmra.mxu0 %v3972
  %v5247 = vpop.f32.mrf.mxu0
  %v5248 = vadd.f32 0.0, %v5247
  %v5249 = vpop.f32.mrf.mxu0
  %5250 = vmatprep.mubr.f32.mxu0 0.0
  %5251 = vmatmul.mubr.f32.gmra.mxu0 %v3975
  %v5252 = vpop.f32.mrf.mxu0
  %v5253 = vadd.f32 0.0, %v5252
  %v5254 = vpop.f32.mrf.mxu0
  %5255 = vmatprep.mubr.f32.mxu0 0.0
  %5256 = vmatmul.mubr.f32.gmra.mxu0 %v3978
  %v5257 = vpop.f32.mrf.mxu0
  %v5258 = vadd.f32 0.0, %v5257
  %v5259 = vpop.f32.mrf.mxu0
  %5260 = vmatprep.mubr.f32.mxu0 0.0
  %5261 = vmatmul.mubr.f32.gmra.mxu0 %v4247
  %v5262 = vpop.f32.mrf.mxu0
  %v5263 = vadd.f32 0.0, %v5262
  %v5264 = vpop.f32.mrf.mxu0
  %5265 = vmatprep.mubr.f32.mxu0 0.0
  %5266 = vmatmul.mubr.f32.gmra.mxu0 %v4250
  %v5267 = vpop.f32.mrf.mxu0
  %v5268 = vadd.f32 0.0, %v5267
  %v5269 = vpop.f32.mrf.mxu0
  %5270 = vmatprep.mubr.f32.mxu0 0.0
  %5271 = vmatmul.mubr.f32.gmra.mxu0 %v4797
  %v5272 = vpop.f32.mrf.mxu0
  %v5273 = vadd.f32 0.0, %v5272
  %v5274 = vpop.f32.mrf.mxu0
  %5275 = vmatprep.mubr.f32.mxu0 0.0
  %5276 = vmatmul.mubr.f32.gmra.mxu0 %v4800
  %v5277 = vpop.f32.mrf.mxu0
  %v5278 = vadd.f32 0.0, %v5277
  %v5279 = vpop.f32.mrf.mxu0
  %5280 = vmatprep.mubr.f32.mxu0 0.0
  %5281 = vmatmul.mubr.f32.gmra.mxu0 %v4803
  %v5282 = vpop.f32.mrf.mxu0
  %v5283 = vadd.f32 0.0, %v5282
  %v5284 = vpop.f32.mrf.mxu0
  %5285 = vmatprep.mubr.f32.mxu0 0.0
  %5286 = vmatmul.mubr.f32.gmra.mxu0 %v4806
  %v5287 = vpop.f32.mrf.mxu0
  %v5288 = vadd.f32 0.0, %v5287
  %v5289 = vpop.f32.mrf.mxu0
  %5290 = vmatprep.mubr.f32.mxu0 0.0
  %5291 = vmatmul.mubr.f32.gmra.mxu0 %v4809
  %v5292 = vpop.f32.mrf.mxu0
  %v5293 = vadd.f32 0.0, %v5292
  %v5294 = vpop.f32.mrf.mxu0
  %5295 = vmatprep.mubr.f32.mxu0 0.0
  %5296 = vmatmul.mubr.f32.gmra.mxu0 %v4812
  %v5297 = vpop.f32.mrf.mxu0
  %v5298 = vadd.f32 0.0, %v5297
  %v5299 = vpop.f32.mrf.mxu0
  %5300 = vmatprep.mubr.f32.mxu0 0.0
  %5301 = vmatmul.mubr.f32.gmra.mxu0 %v5081
  %v5302 = vpop.f32.mrf.mxu0
  %v5303 = vadd.f32 0.0, %v5302
  %v5304 = vpop.f32.mrf.mxu0
  %5305 = vmatprep.mubr.f32.mxu0 0.0
  %5306 = vmatmul.mubr.f32.gmra.mxu0 %v5084
  %v5307 = vpop.f32.mrf.mxu0
  %v5308 = vadd.f32 0.0, %v5307
  %v5309 = vpop.f32.mrf.mxu0
  %5310 = vdwg.mxu0
  %v5311 = vadd.f32 %v5039, %v5153
  %v5312 = vadd.f32 %v5040, %v5158
  %v5313 = vadd.f32 %v5041, %v5163
  %v5314 = vadd.f32 %v5042, %v5168
  %v5315 = vadd.f32 %v5043, %v5173
  %v5316 = vadd.f32 %v5044, %v5178
  %v5317 = vadd.f32 %v5045, %v5183
  %v5318 = vadd.f32 %v5046, %v5188
  %v5319 = vadd.f32 %v5047, %v5193
  %v5320 = vadd.f32 %v5048, %v5198
  %v5321 = vadd.f32 %v5049, %v5203
  %v5322 = vadd.f32 %v5050, %v5208
  %v5323 = vadd.f32 %v5051, %v5213
  %v5324 = vadd.f32 %v5052, %v5218
  %v5325 = vadd.f32 %v5053, %v5223
  %v5326 = vadd.f32 %v5054, %v5228
  %v5327 = vadd.f32 %v5055, %v5233
  %v5328 = vadd.f32 %v5056, %v5238
  %v5329 = vadd.f32 %v5057, %v5243
  %v5330 = vadd.f32 %v5058, %v5248
  %v5331 = vadd.f32 %v5059, %v5253
  %v5332 = vadd.f32 %v5060, %v5258
  %v5333 = vadd.f32 %v5061, %v5263
  %v5334 = vadd.f32 %v5062, %v5268
  %v5335 = vadd.f32 %v5063, %v5273
  %v5336 = vadd.f32 %v5064, %v5278
  %v5337 = vadd.f32 %v5065, %v5283
  %v5338 = vadd.f32 %v5066, %v5288
  %v5339 = vadd.f32 %v5067, %v5293
  %v5340 = vadd.f32 %v5068, %v5298
  %v5341 = vadd.f32 %v5069, %v5303
  %v5342 = vadd.f32 %v5070, %v5308
  %s5343 = scalar_lea.vmem %s3, 512
  %v5344 = vld [vmem:[%s5343] sm:$0xff]
  %v5345 = vld [vmem:[%s5343 + $0x8] sm:$0xff]
  %v5346 = vld [vmem:[%s5343 + $0x10] sm:$0xff]
  %v5347 = vld [vmem:[%s5343 + $0x18] sm:$0xff]
  %v5348 = vld [vmem:[%s5343 + $0x20] sm:$0xff]
  %v5349 = vld [vmem:[%s5343 + $0x28] sm:$0xff]
  %v5350 = vld [vmem:[%s5343 + $0x30] sm:$0xff]
  %v5351 = vld [vmem:[%s5343 + $0x38] sm:$0xff]
  %v5353 = vsel %vm3086, %v3067, 0
  %v5356 = vsel %vm3086, %v3068, 0
  %5358 = vmatprep.subr.mxu0 0.0
  %5359 = vmatpush1.msra.mxu0 0.0
  %5360 = vmatprep.subr.mxu0 0.0
  %5361 = vmatpush1.msra.mxu0 0.0
  %5362 = vmatprep.subr.mxu0 0.0
  %5363 = vmatpush1.msra.mxu0 0.0
  %5364 = vmatprep.subr.mxu0 0.0
  %5365 = vmatpush1.msra.mxu0 0.0
  %5366 = vmatprep.subr.mxu0 0.0
  %5367 = vmatpush1.msra.mxu0 0.0
  %5368 = vmatprep.subr.mxu0 0.0
  %5369 = vmatpush1.msra.mxu0 0.0
  %5370 = vmatprep.subr.mxu0 0.0
  %5371 = vmatpush1.msra.mxu0 0.0
  %5372 = vmatprep.subr.mxu0 0.0
  %5373 = vmatpush1.msra.mxu0 0.0
  %5374 = vmatprep.subr.mxu0 0.0
  %5375 = vmatpush1.msra.mxu0 %v5351
  %5376 = vmatprep.subr.mxu0 0.0
  %5377 = vmatpush1.msra.mxu0 %v5350
  %5378 = vmatprep.subr.mxu0 0.0
  %5379 = vmatpush1.msra.mxu0 %v5349
  %5380 = vmatprep.subr.mxu0 0.0
  %5381 = vmatpush1.msra.mxu0 %v5348
  %5382 = vmatprep.subr.mxu0 0.0
  %5383 = vmatpush1.msra.mxu0 %v5347
  %5384 = vmatprep.subr.mxu0 0.0
  %5385 = vmatpush1.msra.mxu0 %v5346
  %5386 = vmatprep.subr.mxu0 0.0
  %5387 = vmatpush1.msra.mxu0 %v5345
  %5388 = vmatprep.subr.mxu0 0.0
  %5389 = vmatpush1.msra.mxu0 %v5344
  %5390 = vmatprep.subr.mxu0 0.0
  %5391 = vmatpush2.msra.mxu0 0.0
  %5392 = vmatprep.subr.mxu0 0.0
  %5393 = vmatpush2.msra.mxu0 0.0
  %5394 = vmatprep.subr.mxu0 0.0
  %5395 = vmatpush2.msra.mxu0 0.0
  %5396 = vmatprep.subr.mxu0 0.0
  %5397 = vmatpush2.msra.mxu0 0.0
  %5398 = vmatprep.subr.mxu0 0.0
  %5399 = vmatpush2.msra.mxu0 0.0
  %5400 = vmatprep.subr.mxu0 0.0
  %5401 = vmatpush2.msra.mxu0 0.0
  %5402 = vmatprep.subr.mxu0 0.0
  %5403 = vmatpush2.msra.mxu0 0.0
  %5404 = vmatprep.subr.mxu0 0.0
  %5405 = vmatpush2.msra.mxu0 0.0
  %5406 = vmatprep.subr.mxu0 0.0
  %5407 = vmatpush2.msra.mxu0 0.0
  %5408 = vmatprep.subr.mxu0 0.0
  %5409 = vmatpush2.msra.mxu0 0.0
  %5410 = vmatprep.subr.mxu0 0.0
  %5411 = vmatpush2.msra.mxu0 0.0
  %5412 = vmatprep.subr.mxu0 0.0
  %5413 = vmatpush2.msra.mxu0 0.0
  %5414 = vmatprep.subr.mxu0 0.0
  %5415 = vmatpush2.msra.mxu0 0.0
  %5416 = vmatprep.subr.mxu0 0.0
  %5417 = vmatpush2.msra.mxu0 0.0
  %5418 = vmatprep.subr.mxu0 0.0
  %5419 = vmatpush2.msra.mxu0 0.0
  %5420 = vmatprep.subr.mxu0 0.0
  %5421 = vmatpush2.msra.mxu0 0.0
  %5422 = vmatprep.mubr.f32.mxu0 0.0
  %5423 = vmatmul.mubr.f32.gmra.mxu0 %v3142
  %v5424 = vpop.f32.mrf.mxu0
  %v5425 = vadd.f32 0.0, %v5424
  %v5426 = vpop.f32.mrf.mxu0
  %5427 = vmatprep.mubr.f32.mxu0 0.0
  %5428 = vmatmul.mubr.f32.gmra.mxu0 %v3145
  %v5429 = vpop.f32.mrf.mxu0
  %v5430 = vadd.f32 0.0, %v5429
  %v5431 = vpop.f32.mrf.mxu0
  %5432 = vmatprep.mubr.f32.mxu0 0.0
  %5433 = vmatmul.mubr.f32.gmra.mxu0 %v3148
  %v5434 = vpop.f32.mrf.mxu0
  %v5435 = vadd.f32 0.0, %v5434
  %v5436 = vpop.f32.mrf.mxu0
  %5437 = vmatprep.mubr.f32.mxu0 0.0
  %5438 = vmatmul.mubr.f32.gmra.mxu0 %v3151
  %v5439 = vpop.f32.mrf.mxu0
  %v5440 = vadd.f32 0.0, %v5439
  %v5441 = vpop.f32.mrf.mxu0
  %5442 = vmatprep.mubr.f32.mxu0 0.0
  %5443 = vmatmul.mubr.f32.gmra.mxu0 %v3154
  %v5444 = vpop.f32.mrf.mxu0
  %v5445 = vadd.f32 0.0, %v5444
  %v5446 = vpop.f32.mrf.mxu0
  %5447 = vmatprep.mubr.f32.mxu0 0.0
  %5448 = vmatmul.mubr.f32.gmra.mxu0 %v3157
  %v5449 = vpop.f32.mrf.mxu0
  %v5450 = vadd.f32 0.0, %v5449
  %v5451 = vpop.f32.mrf.mxu0
  %5452 = vmatprep.mubr.f32.mxu0 0.0
  %5453 = vmatmul.mubr.f32.gmra.mxu0 %v3679
  %v5454 = vpop.f32.mrf.mxu0
  %v5455 = vadd.f32 0.0, %v5454
  %v5456 = vpop.f32.mrf.mxu0
  %5457 = vmatprep.mubr.f32.mxu0 0.0
  %5458 = vmatmul.mubr.f32.gmra.mxu0 %v3682
  %v5459 = vpop.f32.mrf.mxu0
  %v5460 = vadd.f32 0.0, %v5459
  %v5461 = vpop.f32.mrf.mxu0
  %5462 = vmatprep.mubr.f32.mxu0 0.0
  %5463 = vmatmul.mubr.f32.gmra.mxu0 %v3166
  %v5464 = vpop.f32.mrf.mxu0
  %v5465 = vadd.f32 0.0, %v5464
  %v5466 = vpop.f32.mrf.mxu0
  %5467 = vmatprep.mubr.f32.mxu0 0.0
  %5468 = vmatmul.mubr.f32.gmra.mxu0 %v3169
  %v5469 = vpop.f32.mrf.mxu0
  %v5470 = vadd.f32 0.0, %v5469
  %v5471 = vpop.f32.mrf.mxu0
  %5472 = vmatprep.mubr.f32.mxu0 0.0
  %5473 = vmatmul.mubr.f32.gmra.mxu0 %v3172
  %v5474 = vpop.f32.mrf.mxu0
  %v5475 = vadd.f32 0.0, %v5474
  %v5476 = vpop.f32.mrf.mxu0
  %5477 = vmatprep.mubr.f32.mxu0 0.0
  %5478 = vmatmul.mubr.f32.gmra.mxu0 %v3175
  %v5479 = vpop.f32.mrf.mxu0
  %v5480 = vadd.f32 0.0, %v5479
  %v5481 = vpop.f32.mrf.mxu0
  %5482 = vmatprep.mubr.f32.mxu0 0.0
  %5483 = vmatmul.mubr.f32.gmra.mxu0 %v3178
  %v5484 = vpop.f32.mrf.mxu0
  %v5485 = vadd.f32 0.0, %v5484
  %v5486 = vpop.f32.mrf.mxu0
  %5487 = vmatprep.mubr.f32.mxu0 0.0
  %5488 = vmatmul.mubr.f32.gmra.mxu0 %v3181
  %v5489 = vpop.f32.mrf.mxu0
  %v5490 = vadd.f32 0.0, %v5489
  %v5491 = vpop.f32.mrf.mxu0
  %5492 = vmatprep.mubr.f32.mxu0 0.0
  %5493 = vmatmul.mubr.f32.gmra.mxu0 %v3685
  %v5494 = vpop.f32.mrf.mxu0
  %v5495 = vadd.f32 0.0, %v5494
  %v5496 = vpop.f32.mrf.mxu0
  %5497 = vmatprep.mubr.f32.mxu0 0.0
  %5498 = vmatmul.mubr.f32.gmra.mxu0 %v3688
  %v5499 = vpop.f32.mrf.mxu0
  %v5500 = vadd.f32 0.0, %v5499
  %v5501 = vpop.f32.mrf.mxu0
  %5502 = vmatprep.mubr.f32.mxu0 0.0
  %5503 = vmatmul.mubr.f32.gmra.mxu0 %v3969
  %v5504 = vpop.f32.mrf.mxu0
  %v5505 = vadd.f32 0.0, %v5504
  %v5506 = vpop.f32.mrf.mxu0
  %5507 = vmatprep.mubr.f32.mxu0 0.0
  %5508 = vmatmul.mubr.f32.gmra.mxu0 %v3972
  %v5509 = vpop.f32.mrf.mxu0
  %v5510 = vadd.f32 0.0, %v5509
  %v5511 = vpop.f32.mrf.mxu0
  %5512 = vmatprep.mubr.f32.mxu0 0.0
  %5513 = vmatmul.mubr.f32.gmra.mxu0 %v3975
  %v5514 = vpop.f32.mrf.mxu0
  %v5515 = vadd.f32 0.0, %v5514
  %v5516 = vpop.f32.mrf.mxu0
  %5517 = vmatprep.mubr.f32.mxu0 0.0
  %5518 = vmatmul.mubr.f32.gmra.mxu0 %v3978
  %v5519 = vpop.f32.mrf.mxu0
  %v5520 = vadd.f32 0.0, %v5519
  %v5521 = vpop.f32.mrf.mxu0
  %5522 = vmatprep.mubr.f32.mxu0 0.0
  %5523 = vmatmul.mubr.f32.gmra.mxu0 %v4247
  %v5524 = vpop.f32.mrf.mxu0
  %v5525 = vadd.f32 0.0, %v5524
  %v5526 = vpop.f32.mrf.mxu0
  %5527 = vmatprep.mubr.f32.mxu0 0.0
  %5528 = vmatmul.mubr.f32.gmra.mxu0 %v4250
  %v5529 = vpop.f32.mrf.mxu0
  %v5530 = vadd.f32 0.0, %v5529
  %v5531 = vpop.f32.mrf.mxu0
  %5532 = vmatprep.mubr.f32.mxu0 0.0
  %5533 = vmatmul.mubr.f32.gmra.mxu0 %v4519
  %v5534 = vpop.f32.mrf.mxu0
  %v5535 = vadd.f32 0.0, %v5534
  %v5536 = vpop.f32.mrf.mxu0
  %5537 = vmatprep.mubr.f32.mxu0 0.0
  %5538 = vmatmul.mubr.f32.gmra.mxu0 %v4522
  %v5539 = vpop.f32.mrf.mxu0
  %v5540 = vadd.f32 0.0, %v5539
  %v5541 = vpop.f32.mrf.mxu0
  %5542 = vmatprep.mubr.f32.mxu0 0.0
  %5543 = vmatmul.mubr.f32.gmra.mxu0 %v4803
  %v5544 = vpop.f32.mrf.mxu0
  %v5545 = vadd.f32 0.0, %v5544
  %v5546 = vpop.f32.mrf.mxu0
  %5547 = vmatprep.mubr.f32.mxu0 0.0
  %5548 = vmatmul.mubr.f32.gmra.mxu0 %v4806
  %v5549 = vpop.f32.mrf.mxu0
  %v5550 = vadd.f32 0.0, %v5549
  %v5551 = vpop.f32.mrf.mxu0
  %5552 = vmatprep.mubr.f32.mxu0 0.0
  %5553 = vmatmul.mubr.f32.gmra.mxu0 %v4809
  %v5554 = vpop.f32.mrf.mxu0
  %v5555 = vadd.f32 0.0, %v5554
  %v5556 = vpop.f32.mrf.mxu0
  %5557 = vmatprep.mubr.f32.mxu0 0.0
  %5558 = vmatmul.mubr.f32.gmra.mxu0 %v4812
  %v5559 = vpop.f32.mrf.mxu0
  %v5560 = vadd.f32 0.0, %v5559
  %v5561 = vpop.f32.mrf.mxu0
  %5562 = vmatprep.mubr.f32.mxu0 0.0
  %5563 = vmatmul.mubr.f32.gmra.mxu0 %v5081
  %v5564 = vpop.f32.mrf.mxu0
  %v5565 = vadd.f32 0.0, %v5564
  %v5566 = vpop.f32.mrf.mxu0
  %5567 = vmatprep.mubr.f32.mxu0 0.0
  %5568 = vmatmul.mubr.f32.gmra.mxu0 %v5084
  %v5569 = vpop.f32.mrf.mxu0
  %v5570 = vadd.f32 0.0, %v5569
  %v5571 = vpop.f32.mrf.mxu0
  %5572 = vmatprep.mubr.f32.mxu0 0.0
  %5573 = vmatmul.mubr.f32.gmra.mxu0 %v5353
  %v5574 = vpop.f32.mrf.mxu0
  %v5575 = vadd.f32 0.0, %v5574
  %v5576 = vpop.f32.mrf.mxu0
  %5577 = vmatprep.mubr.f32.mxu0 0.0
  %5578 = vmatmul.mubr.f32.gmra.mxu0 %v5356
  %v5579 = vpop.f32.mrf.mxu0
  %v5580 = vadd.f32 0.0, %v5579
  %v5581 = vpop.f32.mrf.mxu0
  %5582 = vdwg.mxu0
  %v5583 = vadd.f32 %v5311, %v5425
  %v5584 = vadd.f32 %v5312, %v5430
  %v5585 = vadd.f32 %v5313, %v5435
  %v5586 = vadd.f32 %v5314, %v5440
  %v5587 = vadd.f32 %v5315, %v5445
  %v5588 = vadd.f32 %v5316, %v5450
  %v5589 = vadd.f32 %v5317, %v5455
  %v5590 = vadd.f32 %v5318, %v5460
  %v5591 = vadd.f32 %v5319, %v5465
  %v5592 = vadd.f32 %v5320, %v5470
  %v5593 = vadd.f32 %v5321, %v5475
  %v5594 = vadd.f32 %v5322, %v5480
  %v5595 = vadd.f32 %v5323, %v5485
  %v5596 = vadd.f32 %v5324, %v5490
  %v5597 = vadd.f32 %v5325, %v5495
  %v5598 = vadd.f32 %v5326, %v5500
  %v5599 = vadd.f32 %v5327, %v5505
  %v5600 = vadd.f32 %v5328, %v5510
  %v5601 = vadd.f32 %v5329, %v5515
  %v5602 = vadd.f32 %v5330, %v5520
  %v5603 = vadd.f32 %v5331, %v5525
  %v5604 = vadd.f32 %v5332, %v5530
  %v5605 = vadd.f32 %v5333, %v5535
  %v5606 = vadd.f32 %v5334, %v5540
  %v5607 = vadd.f32 %v5335, %v5545
  %v5608 = vadd.f32 %v5336, %v5550
  %v5609 = vadd.f32 %v5337, %v5555
  %v5610 = vadd.f32 %v5338, %v5560
  %v5611 = vadd.f32 %v5339, %v5565
  %v5612 = vadd.f32 %v5340, %v5570
  %v5613 = vadd.f32 %v5341, %v5575
  %v5614 = vadd.f32 %v5342, %v5580
  %v5615 = vmax.f32 %v5583, %v5585
  %v5616 = vmax.f32 %v5584, %v5586
  %v5617 = vmax.f32 %v5615, %v5591
  %v5618 = vmax.f32 %v5616, %v5592
  %v5619 = vmax.f32 %v5617, %v5593
  %v5620 = vmax.f32 %v5618, %v5594
  %v5621 = vld [vmem:[%s4] sm:$0x1]
  %v5623 = vlaneseq
  %v5624 = vshrl.u32 %v5623, 7
  %v5625 = vsub.s32 0, %v5624
  %v5626 = vrot.slane %v5621, %v5625
  %v5628 = vadd.f32 %v5619, %v5626
  %v5629 = vadd.f32 %v5620, %v5626
  %v5630 = vmax.f32 %v5628, 0.0
  %v5631 = vmax.f32 %v5629, 0.0
  %v5632 = vmax.f32 %v5587, %v5589
  %v5633 = vmax.f32 %v5588, %v5590
  %v5634 = vmax.f32 %v5632, %v5595
  %v5635 = vmax.f32 %v5633, %v5596
  %v5636 = vmax.f32 %v5634, %v5597
  %v5637 = vmax.f32 %v5635, %v5598
  %v5638 = vadd.f32 %v5636, %v5626
  %v5639 = vadd.f32 %v5637, %v5626
  %v5640 = vmax.f32 %v5638, 0.0
  %v5641 = vmax.f32 %v5639, 0.0
  %v5642 = vmax.f32 %v5599, %v5601
  %v5643 = vmax.f32 %v5600, %v5602
  %v5644 = vmax.f32 %v5642, %v5607
  %v5645 = vmax.f32 %v5643, %v5608
  %v5646 = vmax.f32 %v5644, %v5609
  %v5647 = vmax.f32 %v5645, %v5610
  %v5648 = vadd.f32 %v5646, %v5626
  %v5649 = vadd.f32 %v5647, %v5626
  %v5650 = vmax.f32 %v5648, 0.0
  %v5651 = vmax.f32 %v5649, 0.0
  %v5652 = vmax.f32 %v5603, %v5605
  %v5653 = vmax.f32 %v5604, %v5606
  %v5654 = vmax.f32 %v5652, %v5611
  %v5655 = vmax.f32 %v5653, %v5612
  %v5656 = vmax.f32 %v5654, %v5613
  %v5657 = vmax.f32 %v5655, %v5614
  %v5658 = vadd.f32 %v5656, %v5626
  %v5659 = vadd.f32 %v5657, %v5626
  %v5660 = vmax.f32 %v5658, 0.0
  %v5661 = vmax.f32 %v5659, 0.0
  %v5662 = vld [vmem:[%s5] sm:$0xff]
  %v5663 = vld [vmem:[%s5 + $0x8] sm:$0xff]
  %v5664 = vld [vmem:[%s5 + $0x10] sm:$0xff]
  %v5665 = vld [vmem:[%s5 + $0x18] sm:$0xff]
  %v5666 = vld [vmem:[%s5 + $0x20] sm:$0xff]
  %v5667 = vld [vmem:[%s5 + $0x28] sm:$0xff]
  %v5668 = vld [vmem:[%s5 + $0x30] sm:$0xff]
  %v5669 = vld [vmem:[%s5 + $0x38] sm:$0xff]
  %v5670 = vld [vmem:[%s5 + $0x40] sm:$0xff]
  %v5671 = vld [vmem:[%s5 + $0x48] sm:$0xff]
  %v5672 = vld [vmem:[%s5 + $0x50] sm:$0xff]
  %v5673 = vld [vmem:[%s5 + $0x58] sm:$0xff]
  %v5674 = vld [vmem:[%s5 + $0x60] sm:$0xff]
  %v5675 = vld [vmem:[%s5 + $0x68] sm:$0xff]
  %v5676 = vld [vmem:[%s5 + $0x70] sm:$0xff]
  %v5677 = vld [vmem:[%s5 + $0x78] sm:$0xff]
  %v5678 = vld [vmem:[%s5 + $0x80] sm:$0xff]
  %v5679 = vld [vmem:[%s5 + $0x88] sm:$0xff]
  %v5680 = vld [vmem:[%s5 + $0x90] sm:$0xff]
  %v5681 = vld [vmem:[%s5 + $0x98] sm:$0xff]
  %v5682 = vld [vmem:[%s5 + $0xa0] sm:$0xff]
  %v5683 = vld [vmem:[%s5 + $0xa8] sm:$0xff]
  %v5684 = vld [vmem:[%s5 + $0xb0] sm:$0xff]
  %v5685 = vld [vmem:[%s5 + $0xb8] sm:$0xff]
  %v5686 = vld [vmem:[%s5 + $0xc0] sm:$0xff]
  %v5687 = vld [vmem:[%s5 + $0xc8] sm:$0xff]
  %v5688 = vld [vmem:[%s5 + $0xd0] sm:$0xff]
  %v5689 = vld [vmem:[%s5 + $0xd8] sm:$0xff]
  %v5690 = vld [vmem:[%s5 + $0xe0] sm:$0xff]
  %v5691 = vld [vmem:[%s5 + $0xe8] sm:$0xff]
  %v5692 = vld [vmem:[%s5 + $0xf0] sm:$0xff]
  %v5693 = vld [vmem:[%s5 + $0xf8] sm:$0xff]
  %v5694 = vld [vmem:[%s5 + $0x100] sm:$0xff]
  %v5695 = vld [vmem:[%s5 + $0x108] sm:$0xff]
  %v5696 = vld [vmem:[%s5 + $0x110] sm:$0xff]
  %v5697 = vld [vmem:[%s5 + $0x118] sm:$0xff]
  %v5698 = vld [vmem:[%s5 + $0x120] sm:$0xff]
  %v5699 = vld [vmem:[%s5 + $0x128] sm:$0xff]
  %v5700 = vld [vmem:[%s5 + $0x130] sm:$0xff]
  %v5701 = vld [vmem:[%s5 + $0x138] sm:$0xff]
  %v5702 = vld [vmem:[%s5 + $0x140] sm:$0xff]
  %v5703 = vld [vmem:[%s5 + $0x148] sm:$0xff]
  %v5704 = vld [vmem:[%s5 + $0x150] sm:$0xff]
  %v5705 = vld [vmem:[%s5 + $0x158] sm:$0xff]
  %v5706 = vld [vmem:[%s5 + $0x160] sm:$0xff]
  %v5707 = vld [vmem:[%s5 + $0x168] sm:$0xff]
  %v5708 = vld [vmem:[%s5 + $0x170] sm:$0xff]
  %v5709 = vld [vmem:[%s5 + $0x178] sm:$0xff]
  %v5710 = vld [vmem:[%s5 + $0x180] sm:$0xff]
  %v5711 = vld [vmem:[%s5 + $0x188] sm:$0xff]
  %v5712 = vld [vmem:[%s5 + $0x190] sm:$0xff]
  %v5713 = vld [vmem:[%s5 + $0x198] sm:$0xff]
  %v5714 = vld [vmem:[%s5 + $0x1a0] sm:$0xff]
  %v5715 = vld [vmem:[%s5 + $0x1a8] sm:$0xff]
  %v5716 = vld [vmem:[%s5 + $0x1b0] sm:$0xff]
  %v5717 = vld [vmem:[%s5 + $0x1b8] sm:$0xff]
  %v5718 = vld [vmem:[%s5 + $0x1c0] sm:$0xff]
  %v5719 = vld [vmem:[%s5 + $0x1c8] sm:$0xff]
  %v5720 = vld [vmem:[%s5 + $0x1d0] sm:$0xff]
  %v5721 = vld [vmem:[%s5 + $0x1d8] sm:$0xff]
  %v5722 = vld [vmem:[%s5 + $0x1e0] sm:$0xff]
  %v5723 = vld [vmem:[%s5 + $0x1e8] sm:$0xff]
  %v5724 = vld [vmem:[%s5 + $0x1f0] sm:$0xff]
  %v5725 = vld [vmem:[%s5 + $0x1f8] sm:$0xff]
  %v5726 = vld [vmem:[%s5 + $0x200] sm:$0xff]
  %v5727 = vld [vmem:[%s5 + $0x208] sm:$0xff]
  %v5728 = vld [vmem:[%s5 + $0x210] sm:$0xff]
  %v5729 = vld [vmem:[%s5 + $0x218] sm:$0xff]
  %v5730 = vld [vmem:[%s5 + $0x220] sm:$0xff]
  %v5731 = vld [vmem:[%s5 + $0x228] sm:$0xff]
  %v5732 = vld [vmem:[%s5 + $0x230] sm:$0xff]
  %v5733 = vld [vmem:[%s5 + $0x238] sm:$0xff]
  %v5734 = vld [vmem:[%s5 + $0x240] sm:$0xff]
  %v5735 = vld [vmem:[%s5 + $0x248] sm:$0xff]
  %v5736 = vld [vmem:[%s5 + $0x250] sm:$0xff]
  %v5737 = vld [vmem:[%s5 + $0x258] sm:$0xff]
  %v5738 = vld [vmem:[%s5 + $0x260] sm:$0xff]
  %v5739 = vld [vmem:[%s5 + $0x268] sm:$0xff]
  %v5740 = vld [vmem:[%s5 + $0x270] sm:$0xff]
  %v5741 = vld [vmem:[%s5 + $0x278] sm:$0xff]
  %v5742 = vld [vmem:[%s5 + $0x280] sm:$0xff]
  %v5743 = vld [vmem:[%s5 + $0x288] sm:$0xff]
  %v5744 = vld [vmem:[%s5 + $0x290] sm:$0xff]
  %v5745 = vld [vmem:[%s5 + $0x298] sm:$0xff]
  %v5746 = vld [vmem:[%s5 + $0x2a0] sm:$0xff]
  %v5747 = vld [vmem:[%s5 + $0x2a8] sm:$0xff]
  %v5748 = vld [vmem:[%s5 + $0x2b0] sm:$0xff]
  %v5749 = vld [vmem:[%s5 + $0x2b8] sm:$0xff]
  %v5750 = vld [vmem:[%s5 + $0x2c0] sm:$0xff]
  %v5751 = vld [vmem:[%s5 + $0x2c8] sm:$0xff]
  %v5752 = vld [vmem:[%s5 + $0x2d0] sm:$0xff]
  %v5753 = vld [vmem:[%s5 + $0x2d8] sm:$0xff]
  %v5754 = vld [vmem:[%s5 + $0x2e0] sm:$0xff]
  %v5755 = vld [vmem:[%s5 + $0x2e8] sm:$0xff]
  %v5756 = vld [vmem:[%s5 + $0x2f0] sm:$0xff]
  %v5757 = vld [vmem:[%s5 + $0x2f8] sm:$0xff]
  %v5758 = vld [vmem:[%s5 + $0x300] sm:$0xff]
  %v5759 = vld [vmem:[%s5 + $0x308] sm:$0xff]
  %v5760 = vld [vmem:[%s5 + $0x310] sm:$0xff]
  %v5761 = vld [vmem:[%s5 + $0x318] sm:$0xff]
  %v5762 = vld [vmem:[%s5 + $0x320] sm:$0xff]
  %v5763 = vld [vmem:[%s5 + $0x328] sm:$0xff]
  %v5764 = vld [vmem:[%s5 + $0x330] sm:$0xff]
  %v5765 = vld [vmem:[%s5 + $0x338] sm:$0xff]
  %v5766 = vld [vmem:[%s5 + $0x340] sm:$0xff]
  %v5767 = vld [vmem:[%s5 + $0x348] sm:$0xff]
  %v5768 = vld [vmem:[%s5 + $0x350] sm:$0xff]
  %v5769 = vld [vmem:[%s5 + $0x358] sm:$0xff]
  %v5770 = vld [vmem:[%s5 + $0x360] sm:$0xff]
  %v5771 = vld [vmem:[%s5 + $0x368] sm:$0xff]
  %v5772 = vld [vmem:[%s5 + $0x370] sm:$0xff]
  %v5773 = vld [vmem:[%s5 + $0x378] sm:$0xff]
  %v5774 = vld [vmem:[%s5 + $0x380] sm:$0xff]
  %v5775 = vld [vmem:[%s5 + $0x388] sm:$0xff]
  %v5776 = vld [vmem:[%s5 + $0x390] sm:$0xff]
  %v5777 = vld [vmem:[%s5 + $0x398] sm:$0xff]
  %v5778 = vld [vmem:[%s5 + $0x3a0] sm:$0xff]
  %v5779 = vld [vmem:[%s5 + $0x3a8] sm:$0xff]
  %v5780 = vld [vmem:[%s5 + $0x3b0] sm:$0xff]
  %v5781 = vld [vmem:[%s5 + $0x3b8] sm:$0xff]
  %v5782 = vld [vmem:[%s5 + $0x3c0] sm:$0xff]
  %v5783 = vld [vmem:[%s5 + $0x3c8] sm:$0xff]
  %v5784 = vld [vmem:[%s5 + $0x3d0] sm:$0xff]
  %v5785 = vld [vmem:[%s5 + $0x3d8] sm:$0xff]
  %v5786 = vld [vmem:[%s5 + $0x3e0] sm:$0xff]
  %v5787 = vld [vmem:[%s5 + $0x3e8] sm:$0xff]
  %v5788 = vld [vmem:[%s5 + $0x3f0] sm:$0xff]
  %v5789 = vld [vmem:[%s5 + $0x3f8] sm:$0xff]
  %v5790 = vld [vmem:[%s6] sm:$0x1]
  %v5792 = vlaneseq
  %v5793 = vshrl.u32 %v5792, 7
  %v5794 = vsub.s32 0, %v5793
  %v5795 = vrot.slane %v5790, %v5794
  %5797 = vmatprep.subr.mxu0 0.0
  %5798 = vmatpush1.msra.mxu0 %v5677
  %5799 = vmatprep.subr.mxu0 0.0
  %5800 = vmatpush1.msra.mxu0 %v5676
  %5801 = vmatprep.subr.mxu0 0.0
  %5802 = vmatpush1.msra.mxu0 %v5675
  %5803 = vmatprep.subr.mxu0 0.0
  %5804 = vmatpush1.msra.mxu0 %v5674
  %5805 = vmatprep.subr.mxu0 0.0
  %5806 = vmatpush1.msra.mxu0 %v5673
  %5807 = vmatprep.subr.mxu0 0.0
  %5808 = vmatpush1.msra.mxu0 %v5672
  %5809 = vmatprep.subr.mxu0 0.0
  %5810 = vmatpush1.msra.mxu0 %v5671
  %5811 = vmatprep.subr.mxu0 0.0
  %5812 = vmatpush1.msra.mxu0 %v5670
  %5813 = vmatprep.subr.mxu0 0.0
  %5814 = vmatpush1.msra.mxu0 %v5669
  %5815 = vmatprep.subr.mxu0 0.0
  %5816 = vmatpush1.msra.mxu0 %v5668
  %5817 = vmatprep.subr.mxu0 0.0
  %5818 = vmatpush1.msra.mxu0 %v5667
  %5819 = vmatprep.subr.mxu0 0.0
  %5820 = vmatpush1.msra.mxu0 %v5666
  %5821 = vmatprep.subr.mxu0 0.0
  %5822 = vmatpush1.msra.mxu0 %v5665
  %5823 = vmatprep.subr.mxu0 0.0
  %5824 = vmatpush1.msra.mxu0 %v5664
  %5825 = vmatprep.subr.mxu0 0.0
  %5826 = vmatpush1.msra.mxu0 %v5663
  %5827 = vmatprep.subr.mxu0 0.0
  %5828 = vmatpush1.msra.mxu0 %v5662
  %5829 = vmatprep.subr.mxu0 0.0
  %5830 = vmatpush2.msra.mxu0 %v5693
  %5831 = vmatprep.subr.mxu0 0.0
  %5832 = vmatpush2.msra.mxu0 %v5692
  %5833 = vmatprep.subr.mxu0 0.0
  %5834 = vmatpush2.msra.mxu0 %v5691
  %5835 = vmatprep.subr.mxu0 0.0
  %5836 = vmatpush2.msra.mxu0 %v5690
  %5837 = vmatprep.subr.mxu0 0.0
  %5838 = vmatpush2.msra.mxu0 %v5689
  %5839 = vmatprep.subr.mxu0 0.0
  %5840 = vmatpush2.msra.mxu0 %v5688
  %5841 = vmatprep.subr.mxu0 0.0
  %5842 = vmatpush2.msra.mxu0 %v5687
  %5843 = vmatprep.subr.mxu0 0.0
  %5844 = vmatpush2.msra.mxu0 %v5686
  %5845 = vmatprep.subr.mxu0 0.0
  %5846 = vmatpush2.msra.mxu0 %v5685
  %5847 = vmatprep.subr.mxu0 0.0
  %5848 = vmatpush2.msra.mxu0 %v5684
  %5849 = vmatprep.subr.mxu0 0.0
  %5850 = vmatpush2.msra.mxu0 %v5683
  %5851 = vmatprep.subr.mxu0 0.0
  %5852 = vmatpush2.msra.mxu0 %v5682
  %5853 = vmatprep.subr.mxu0 0.0
  %5854 = vmatpush2.msra.mxu0 %v5681
  %5855 = vmatprep.subr.mxu0 0.0
  %5856 = vmatpush2.msra.mxu0 %v5680
  %5857 = vmatprep.subr.mxu0 0.0
  %5858 = vmatpush2.msra.mxu0 %v5679
  %5859 = vmatprep.subr.mxu0 0.0
  %5860 = vmatpush2.msra.mxu0 %v5678
  %5861 = vmatprep.mubr.f32.mxu0 %v5640
  %5862 = vmatmul.mubr.f32.gmra.mxu0 %v5630
  %v5863 = vpop.f32.mrf.mxu0
  %v5864 = vadd.f32 %v5795, %v5863
  %v5865 = vpop.f32.mrf.mxu0
  %5866 = vdwg.mxu0
  %5867 = vmatprep.subr.mxu0 0.0
  %5868 = vmatpush1.msra.mxu0 %v5709
  %5869 = vmatprep.subr.mxu0 0.0
  %5870 = vmatpush1.msra.mxu0 %v5708
  %5871 = vmatprep.subr.mxu0 0.0
  %5872 = vmatpush1.msra.mxu0 %v5707
  %5873 = vmatprep.subr.mxu0 0.0
  %5874 = vmatpush1.msra.mxu0 %v5706
  %5875 = vmatprep.subr.mxu0 0.0
  %5876 = vmatpush1.msra.mxu0 %v5705
  %5877 = vmatprep.subr.mxu0 0.0
  %5878 = vmatpush1.msra.mxu0 %v5704
  %5879 = vmatprep.subr.mxu0 0.0
  %5880 = vmatpush1.msra.mxu0 %v5703
  %5881 = vmatprep.subr.mxu0 0.0
  %5882 = vmatpush1.msra.mxu0 %v5702
  %5883 = vmatprep.subr.mxu0 0.0
  %5884 = vmatpush1.msra.mxu0 %v5701
  %5885 = vmatprep.subr.mxu0 0.0
  %5886 = vmatpush1.msra.mxu0 %v5700
  %5887 = vmatprep.subr.mxu0 0.0
  %5888 = vmatpush1.msra.mxu0 %v5699
  %5889 = vmatprep.subr.mxu0 0.0
  %5890 = vmatpush1.msra.mxu0 %v5698
  %5891 = vmatprep.subr.mxu0 0.0
  %5892 = vmatpush1.msra.mxu0 %v5697
  %5893 = vmatprep.subr.mxu0 0.0
  %5894 = vmatpush1.msra.mxu0 %v5696
  %5895 = vmatprep.subr.mxu0 0.0
  %5896 = vmatpush1.msra.mxu0 %v5695
  %5897 = vmatprep.subr.mxu0 0.0
  %5898 = vmatpush1.msra.mxu0 %v5694
  %5899 = vmatprep.subr.mxu0 0.0
  %5900 = vmatpush2.msra.mxu0 %v5725
  %5901 = vmatprep.subr.mxu0 0.0
  %5902 = vmatpush2.msra.mxu0 %v5724
  %5903 = vmatprep.subr.mxu0 0.0
  %5904 = vmatpush2.msra.mxu0 %v5723
  %5905 = vmatprep.subr.mxu0 0.0
  %5906 = vmatpush2.msra.mxu0 %v5722
  %5907 = vmatprep.subr.mxu0 0.0
  %5908 = vmatpush2.msra.mxu0 %v5721
  %5909 = vmatprep.subr.mxu0 0.0
  %5910 = vmatpush2.msra.mxu0 %v5720
  %5911 = vmatprep.subr.mxu0 0.0
  %5912 = vmatpush2.msra.mxu0 %v5719
  %5913 = vmatprep.subr.mxu0 0.0
  %5914 = vmatpush2.msra.mxu0 %v5718
  %5915 = vmatprep.subr.mxu0 0.0
  %5916 = vmatpush2.msra.mxu0 %v5717
  %5917 = vmatprep.subr.mxu0 0.0
  %5918 = vmatpush2.msra.mxu0 %v5716
  %5919 = vmatprep.subr.mxu0 0.0
  %5920 = vmatpush2.msra.mxu0 %v5715
  %5921 = vmatprep.subr.mxu0 0.0
  %5922 = vmatpush2.msra.mxu0 %v5714
  %5923 = vmatprep.subr.mxu0 0.0
  %5924 = vmatpush2.msra.mxu0 %v5713
  %5925 = vmatprep.subr.mxu0 0.0
  %5926 = vmatpush2.msra.mxu0 %v5712
  %5927 = vmatprep.subr.mxu0 0.0
  %5928 = vmatpush2.msra.mxu0 %v5711
  %5929 = vmatprep.subr.mxu0 0.0
  %5930 = vmatpush2.msra.mxu0 %v5710
  %5931 = vmatprep.mubr.f32.mxu0 %v5660
  %5932 = vmatmul.mubr.f32.gmra.mxu0 %v5650
  %v5933 = vpop.f32.mrf.mxu0
  %v5934 = vadd.f32 %v5864, %v5933
  %v5935 = vpop.f32.mrf.mxu0
  %5936 = vdwg.mxu0
  %5937 = vmatprep.subr.mxu0 0.0
  %5938 = vmatpush1.msra.mxu0 %v5741
  %5939 = vmatprep.subr.mxu0 0.0
  %5940 = vmatpush1.msra.mxu0 %v5740
  %5941 = vmatprep.subr.mxu0 0.0
  %5942 = vmatpush1.msra.mxu0 %v5739
  %5943 = vmatprep.subr.mxu0 0.0
  %5944 = vmatpush1.msra.mxu0 %v5738
  %5945 = vmatprep.subr.mxu0 0.0
  %5946 = vmatpush1.msra.mxu0 %v5737
  %5947 = vmatprep.subr.mxu0 0.0
  %5948 = vmatpush1.msra.mxu0 %v5736
  %5949 = vmatprep.subr.mxu0 0.0
  %5950 = vmatpush1.msra.mxu0 %v5735
  %5951 = vmatprep.subr.mxu0 0.0
  %5952 = vmatpush1.msra.mxu0 %v5734
  %5953 = vmatprep.subr.mxu0 0.0
  %5954 = vmatpush1.msra.mxu0 %v5733
  %5955 = vmatprep.subr.mxu0 0.0
  %5956 = vmatpush1.msra.mxu0 %v5732
  %5957 = vmatprep.subr.mxu0 0.0
  %5958 = vmatpush1.msra.mxu0 %v5731
  %5959 = vmatprep.subr.mxu0 0.0
  %5960 = vmatpush1.msra.mxu0 %v5730
  %5961 = vmatprep.subr.mxu0 0.0
  %5962 = vmatpush1.msra.mxu0 %v5729
  %5963 = vmatprep.subr.mxu0 0.0
  %5964 = vmatpush1.msra.mxu0 %v5728
  %5965 = vmatprep.subr.mxu0 0.0
  %5966 = vmatpush1.msra.mxu0 %v5727
  %5967 = vmatprep.subr.mxu0 0.0
  %5968 = vmatpush1.msra.mxu0 %v5726
  %5969 = vmatprep.subr.mxu0 0.0
  %5970 = vmatpush2.msra.mxu0 %v5757
  %5971 = vmatprep.subr.mxu0 0.0
  %5972 = vmatpush2.msra.mxu0 %v5756
  %5973 = vmatprep.subr.mxu0 0.0
  %5974 = vmatpush2.msra.mxu0 %v5755
  %5975 = vmatprep.subr.mxu0 0.0
  %5976 = vmatpush2.msra.mxu0 %v5754
  %5977 = vmatprep.subr.mxu0 0.0
  %5978 = vmatpush2.msra.mxu0 %v5753
  %5979 = vmatprep.subr.mxu0 0.0
  %5980 = vmatpush2.msra.mxu0 %v5752
  %5981 = vmatprep.subr.mxu0 0.0
  %5982 = vmatpush2.msra.mxu0 %v5751
  %5983 = vmatprep.subr.mxu0 0.0
  %5984 = vmatpush2.msra.mxu0 %v5750
  %5985 = vmatprep.subr.mxu0 0.0
  %5986 = vmatpush2.msra.mxu0 %v5749
  %5987 = vmatprep.subr.mxu0 0.0
  %5988 = vmatpush2.msra.mxu0 %v5748
  %5989 = vmatprep.subr.mxu0 0.0
  %5990 = vmatpush2.msra.mxu0 %v5747
  %5991 = vmatprep.subr.mxu0 0.0
  %5992 = vmatpush2.msra.mxu0 %v5746
  %5993 = vmatprep.subr.mxu0 0.0
  %5994 = vmatpush2.msra.mxu0 %v5745
  %5995 = vmatprep.subr.mxu0 0.0
  %5996 = vmatpush2.msra.mxu0 %v5744
  %5997 = vmatprep.subr.mxu0 0.0
  %5998 = vmatpush2.msra.mxu0 %v5743
  %5999 = vmatprep.subr.mxu0 0.0
  %6000 = vmatpush2.msra.mxu0 %v5742
  %6001 = vmatprep.mubr.f32.mxu0 %v5641
  %6002 = vmatmul.mubr.f32.gmra.mxu0 %v5631
  %v6003 = vpop.f32.mrf.mxu0
  %v6004 = vadd.f32 %v5934, %v6003
  %v6005 = vpop.f32.mrf.mxu0
  %6006 = vdwg.mxu0
  %6007 = vmatprep.subr.mxu0 0.0
  %6008 = vmatpush1.msra.mxu0 %v5773
  %6009 = vmatprep.subr.mxu0 0.0
  %6010 = vmatpush1.msra.mxu0 %v5772
  %6011 = vmatprep.subr.mxu0 0.0
  %6012 = vmatpush1.msra.mxu0 %v5771
  %6013 = vmatprep.subr.mxu0 0.0
  %6014 = vmatpush1.msra.mxu0 %v5770
  %6015 = vmatprep.subr.mxu0 0.0
  %6016 = vmatpush1.msra.mxu0 %v5769
  %6017 = vmatprep.subr.mxu0 0.0
  %6018 = vmatpush1.msra.mxu0 %v5768
  %6019 = vmatprep.subr.mxu0 0.0
  %6020 = vmatpush1.msra.mxu0 %v5767
  %6021 = vmatprep.subr.mxu0 0.0
  %6022 = vmatpush1.msra.mxu0 %v5766
  %6023 = vmatprep.subr.mxu0 0.0
  %6024 = vmatpush1.msra.mxu0 %v5765
  %6025 = vmatprep.subr.mxu0 0.0
  %6026 = vmatpush1.msra.mxu0 %v5764
  %6027 = vmatprep.subr.mxu0 0.0
  %6028 = vmatpush1.msra.mxu0 %v5763
  %6029 = vmatprep.subr.mxu0 0.0
  %6030 = vmatpush1.msra.mxu0 %v5762
  %6031 = vmatprep.subr.mxu0 0.0
  %6032 = vmatpush1.msra.mxu0 %v5761
  %6033 = vmatprep.subr.mxu0 0.0
  %6034 = vmatpush1.msra.mxu0 %v5760
  %6035 = vmatprep.subr.mxu0 0.0
  %6036 = vmatpush1.msra.mxu0 %v5759
  %6037 = vmatprep.subr.mxu0 0.0
  %6038 = vmatpush1.msra.mxu0 %v5758
  %6039 = vmatprep.subr.mxu0 0.0
  %6040 = vmatpush2.msra.mxu0 %v5789
  %6041 = vmatprep.subr.mxu0 0.0
  %6042 = vmatpush2.msra.mxu0 %v5788
  %6043 = vmatprep.subr.mxu0 0.0
  %6044 = vmatpush2.msra.mxu0 %v5787
  %6045 = vmatprep.subr.mxu0 0.0
  %6046 = vmatpush2.msra.mxu0 %v5786
  %6047 = vmatprep.subr.mxu0 0.0
  %6048 = vmatpush2.msra.mxu0 %v5785
  %6049 = vmatprep.subr.mxu0 0.0
  %6050 = vmatpush2.msra.mxu0 %v5784
  %6051 = vmatprep.subr.mxu0 0.0
  %6052 = vmatpush2.msra.mxu0 %v5783
  %6053 = vmatprep.subr.mxu0 0.0
  %6054 = vmatpush2.msra.mxu0 %v5782
  %6055 = vmatprep.subr.mxu0 0.0
  %6056 = vmatpush2.msra.mxu0 %v5781
  %6057 = vmatprep.subr.mxu0 0.0
  %6058 = vmatpush2.msra.mxu0 %v5780
  %6059 = vmatprep.subr.mxu0 0.0
  %6060 = vmatpush2.msra.mxu0 %v5779
  %6061 = vmatprep.subr.mxu0 0.0
  %6062 = vmatpush2.msra.mxu0 %v5778
  %6063 = vmatprep.subr.mxu0 0.0
  %6064 = vmatpush2.msra.mxu0 %v5777
  %6065 = vmatprep.subr.mxu0 0.0
  %6066 = vmatpush2.msra.mxu0 %v5776
  %6067 = vmatprep.subr.mxu0 0.0
  %6068 = vmatpush2.msra.mxu0 %v5775
  %6069 = vmatprep.subr.mxu0 0.0
  %6070 = vmatpush2.msra.mxu0 %v5774
  %6071 = vmatprep.mubr.f32.mxu0 %v5661
  %6072 = vmatmul.mubr.f32.gmra.mxu0 %v5651
  %v6073 = vpop.f32.mrf.mxu0
  %v6074 = vadd.f32 %v6004, %v6073
  %v6075 = vpop.f32.mrf.mxu0
  %6076 = vdwg.mxu0
  %v6077 = vmax.f32 %v6074, 0.0
  %v6078 = vld [vmem:[%s7] sm:$0xff]
  %v6079 = vld [vmem:[%s7 + $0x8] sm:$0xff]
  %v6080 = vld [vmem:[%s7 + $0x10] sm:$0xff]
  %v6081 = vld [vmem:[%s7 + $0x18] sm:$0xff]
  %v6082 = vld [vmem:[%s7 + $0x20] sm:$0xff]
  %v6083 = vld [vmem:[%s7 + $0x28] sm:$0xff]
  %v6084 = vld [vmem:[%s7 + $0x30] sm:$0xff]
  %v6085 = vld [vmem:[%s7 + $0x38] sm:$0xff]
  %v6086 = vld [vmem:[%s7 + $0x40] sm:$0xff]
  %v6087 = vld [vmem:[%s7 + $0x48] sm:$0xff]
  %v6088 = vld [vmem:[%s7 + $0x50] sm:$0xff]
  %v6089 = vld [vmem:[%s7 + $0x58] sm:$0xff]
  %v6090 = vld [vmem:[%s7 + $0x60] sm:$0xff]
  %v6091 = vld [vmem:[%s7 + $0x68] sm:$0xff]
  %v6092 = vld [vmem:[%s7 + $0x70] sm:$0xff]
  %v6093 = vld [vmem:[%s7 + $0x78] sm:$0xff]
  %v6094 = vld [vmem:[%s8] sm:$0x1]
  %v6096 = vlaneseq
  %v6097 = vshrl.u32 %v6096, 7
  %v6098 = vsub.s32 0, %v6097
  %v6099 = vrot.slane %v6094, %v6098
  %6101 = vmatprep.subr.mxu0 0.0
  %6102 = vmatpush1.msra.mxu0 %v6093
  %6103 = vmatprep.subr.mxu0 0.0
  %6104 = vmatpush1.msra.mxu0 %v6092
  %6105 = vmatprep.subr.mxu0 0.0
  %6106 = vmatpush1.msra.mxu0 %v6091
  %6107 = vmatprep.subr.mxu0 0.0
  %6108 = vmatpush1.msra.mxu0 %v6090
  %6109 = vmatprep.subr.mxu0 0.0
  %6110 = vmatpush1.msra.mxu0 %v6089
  %6111 = vmatprep.subr.mxu0 0.0
  %6112 = vmatpush1.msra.mxu0 %v6088
  %6113 = vmatprep.subr.mxu0 0.0
  %6114 = vmatpush1.msra.mxu0 %v6087
  %6115 = vmatprep.subr.mxu0 0.0
  %6116 = vmatpush1.msra.mxu0 %v6086
  %6117 = vmatprep.subr.mxu0 0.0
  %6118 = vmatpush1.msra.mxu0 %v6085
  %6119 = vmatprep.subr.mxu0 0.0
  %6120 = vmatpush1.msra.mxu0 %v6084
  %6121 = vmatprep.subr.mxu0 0.0
  %6122 = vmatpush1.msra.mxu0 %v6083
  %6123 = vmatprep.subr.mxu0 0.0
  %6124 = vmatpush1.msra.mxu0 %v6082
  %6125 = vmatprep.subr.mxu0 0.0
  %6126 = vmatpush1.msra.mxu0 %v6081
  %6127 = vmatprep.subr.mxu0 0.0
  %6128 = vmatpush1.msra.mxu0 %v6080
  %6129 = vmatprep.subr.mxu0 0.0
  %6130 = vmatpush1.msra.mxu0 %v6079
  %6131 = vmatprep.subr.mxu0 0.0
  %6132 = vmatpush1.msra.mxu0 %v6078
  %6133 = vmatprep.subr.mxu0 0.0
  %6134 = vmatpush2.msra.mxu0 0.0
  %6135 = vmatprep.subr.mxu0 0.0
  %6136 = vmatpush2.msra.mxu0 0.0
  %6137 = vmatprep.subr.mxu0 0.0
  %6138 = vmatpush2.msra.mxu0 0.0
  %6139 = vmatprep.subr.mxu0 0.0
  %6140 = vmatpush2.msra.mxu0 0.0
  %6141 = vmatprep.subr.mxu0 0.0
  %6142 = vmatpush2.msra.mxu0 0.0
  %6143 = vmatprep.subr.mxu0 0.0
  %6144 = vmatpush2.msra.mxu0 0.0
  %6145 = vmatprep.subr.mxu0 0.0
  %6146 = vmatpush2.msra.mxu0 0.0
  %6147 = vmatprep.subr.mxu0 0.0
  %6148 = vmatpush2.msra.mxu0 0.0
  %6149 = vmatprep.subr.mxu0 0.0
  %6150 = vmatpush2.msra.mxu0 0.0
  %6151 = vmatprep.subr.mxu0 0.0
  %6152 = vmatpush2.msra.mxu0 0.0
  %6153 = vmatprep.subr.mxu0 0.0
  %6154 = vmatpush2.msra.mxu0 0.0
  %6155 = vmatprep.subr.mxu0 0.0
  %6156 = vmatpush2.msra.mxu0 0.0
  %6157 = vmatprep.subr.mxu0 0.0
  %6158 = vmatpush2.msra.mxu0 0.0
  %6159 = vmatprep.subr.mxu0 0.0
  %6160 = vmatpush2.msra.mxu0 0.0
  %6161 = vmatprep.subr.mxu0 0.0
  %6162 = vmatpush2.msra.mxu0 0.0
  %6163 = vmatprep.subr.mxu0 0.0
  %6164 = vmatpush2.msra.mxu0 0.0
  %6165 = vmatprep.mubr.f32.mxu0 0.0
  %6166 = vmatmul.mubr.f32.gmra.mxu0 %v6077
  %v6167 = vpop.f32.mrf.mxu0
  %v6168 = vadd.f32 %v6099, %v6167
  %v6169 = vpop.f32.mrf.mxu0
  %6170 = vdwg.mxu0
  %v6171 = vmax.f32 %v6168, 0.0
  %v6172 = vld [vmem:[%s9] sm:$0xff]
  %v6173 = vld [vmem:[%s9 + $0x8] sm:$0x3]
  %v6174 = vld [vmem:[%s10] sm:$0x1]
  %v6176 = vlaneseq
  %v6177 = vshrl.u32 %v6176, 7
  %v6178 = vsub.s32 0, %v6177
  %v6179 = vrot.slane %v6174, %v6178
  %vm6181 = vcmask 80896
  %v6183 = vsel %vm6181, %v6171, 0
  %vm6185 = vcmask 1041408
  %v6187 = vsel %vm6185, %v6173, 0
  %6189 = vmatprep.subr.mxu0 0.0
  %6190 = vmatpush1.msra.mxu0 0.0
  %6191 = vmatprep.subr.mxu0 0.0
  %6192 = vmatpush1.msra.mxu0 0.0
  %6193 = vmatprep.subr.mxu0 0.0
  %6194 = vmatpush1.msra.mxu0 0.0
  %6195 = vmatprep.subr.mxu0 0.0
  %6196 = vmatpush1.msra.mxu0 0.0
  %6197 = vmatprep.subr.mxu0 0.0
  %6198 = vmatpush1.msra.mxu0 0.0
  %6199 = vmatprep.subr.mxu0 0.0
  %6200 = vmatpush1.msra.mxu0 0.0
  %6201 = vmatprep.subr.mxu0 0.0
  %6202 = vmatpush1.msra.mxu0 0.0
  %6203 = vmatprep.subr.mxu0 0.0
  %6204 = vmatpush1.msra.mxu0 0.0
  %6205 = vmatprep.subr.mxu0 0.0
  %6206 = vmatpush1.msra.mxu0 0.0
  %6207 = vmatprep.subr.mxu0 0.0
  %6208 = vmatpush1.msra.mxu0 0.0
  %6209 = vmatprep.subr.mxu0 0.0
  %6210 = vmatpush1.msra.mxu0 0.0
  %6211 = vmatprep.subr.mxu0 0.0
  %6212 = vmatpush1.msra.mxu0 0.0
  %6213 = vmatprep.subr.mxu0 0.0
  %6214 = vmatpush1.msra.mxu0 0.0
  %6215 = vmatprep.subr.mxu0 0.0
  %6216 = vmatpush1.msra.mxu0 0.0
  %6217 = vmatprep.subr.mxu0 0.0
  %6218 = vmatpush1.msra.mxu0 %v6187
  %6219 = vmatprep.subr.mxu0 0.0
  %6220 = vmatpush1.msra.mxu0 %v6172
  %6221 = vmatprep.subr.mxu0 0.0
  %6222 = vmatpush2.msra.mxu0 0.0
  %6223 = vmatprep.subr.mxu0 0.0
  %6224 = vmatpush2.msra.mxu0 0.0
  %6225 = vmatprep.subr.mxu0 0.0
  %6226 = vmatpush2.msra.mxu0 0.0
  %6227 = vmatprep.subr.mxu0 0.0
  %6228 = vmatpush2.msra.mxu0 0.0
  %6229 = vmatprep.subr.mxu0 0.0
  %6230 = vmatpush2.msra.mxu0 0.0
  %6231 = vmatprep.subr.mxu0 0.0
  %6232 = vmatpush2.msra.mxu0 0.0
  %6233 = vmatprep.subr.mxu0 0.0
  %6234 = vmatpush2.msra.mxu0 0.0
  %6235 = vmatprep.subr.mxu0 0.0
  %6236 = vmatpush2.msra.mxu0 0.0
  %6237 = vmatprep.subr.mxu0 0.0
  %6238 = vmatpush2.msra.mxu0 0.0
  %6239 = vmatprep.subr.mxu0 0.0
  %6240 = vmatpush2.msra.mxu0 0.0
  %6241 = vmatprep.subr.mxu0 0.0
  %6242 = vmatpush2.msra.mxu0 0.0
  %6243 = vmatprep.subr.mxu0 0.0
  %6244 = vmatpush2.msra.mxu0 0.0
  %6245 = vmatprep.subr.mxu0 0.0
  %6246 = vmatpush2.msra.mxu0 0.0
  %6247 = vmatprep.subr.mxu0 0.0
  %6248 = vmatpush2.msra.mxu0 0.0
  %6249 = vmatprep.subr.mxu0 0.0
  %6250 = vmatpush2.msra.mxu0 0.0
  %6251 = vmatprep.subr.mxu0 0.0
  %6252 = vmatpush2.msra.mxu0 0.0
  %6253 = vmatprep.mubr.f32.mxu0 0.0
  %6254 = vmatmul.mubr.f32.gmra.mxu0 %v6183
  %v6255 = vpop.f32.mrf.mxu0
  %v6256 = vadd.f32 %v6179, %v6255
  %v6257 = vpop.f32.mrf.mxu0
  %6258 = vdwg.mxu0
  %vm6259 = vcmask 15360
  %6260 = vst.msk [vmem:[%s11] sm:$0xff] %vm6259, %v6256
  // Predicated region
  $region46: #{ws_model_forward.1} parent=0 // pred_check
    _
  $region47: #{ws_model_forward.1} parent=0 // pred_check_branch
    %6262 = sbr.rel (0) target = $region49
  $region48: #{ws_model_forward.1} parent=0 // pred_region
    _
  $region49: #{ws_model_forward.1} parent=0 // pred_fallthru
    _
  // Predicated region
  $region50: #{ws_model_forward.1} parent=0 // pred_check
    _
  $region51: #{ws_model_forward.1} parent=0 // pred_check_branch
    %6264 = sbr.rel (0) target = $region53
  $region52: #{ws_model_forward.1} parent=0 // pred_region
    _
  $region53: #{ws_model_forward.1} parent=0 // pred_fallthru
    _

</llo_original>
